<compile_context>
chip_gen: v6e
topology: v6e:2x2x1
jax: 0.10.0
libtpu: 0.0.40
codegen_flags: <defaults>
</compile_context>

<pallas_src>
import math
import functools

import jax
import jax.numpy as jnp
from jax.experimental import pallas as pl
from jax.experimental.pallas import tpu as pltpu

LN_EPS = 1e-5                   # PyTorch nn.LayerNorm default eps
MATMUL_DTYPE = jnp.bfloat16     # MXU-native matmul operand dtype (f32 accumulation)

_LAYER_PARAM_NAMES = (
    "w_qkv", "b_qkv", "w_o_s", "b_o_s", "g1", "be1",
    "w_q_c", "b_q_c", "w_kv_c", "b_kv_c", "w_o_c", "b_o_c", "g2", "be2",
    "w_ff1", "b_ff1", "w_ff2", "b_ff2", "g3", "be3",
)


# ----------------------------------------------------------------------------
# One fused kernel == the whole decoder stack.  Grid = (batch_blocks, nlayers).
# Activations stay resident in a VMEM scratch across the layer axis.
# ----------------------------------------------------------------------------
def _decoder_stack_kernel(*refs, nhead, has_tgt_mask, has_mem_mask):
    it = iter(refs)
    x_ref, mem_ref = next(it), next(it)
    (w_qkv, b_qkv, w_o_s, b_o_s, g1, be1,
     w_q_c, b_q_c, w_kv_c, b_kv_c, w_o_c, b_o_c, g2, be2,
     w_ff1, b_ff1, w_ff2, b_ff2, g3, be3) = [next(it) for _ in range(20)]
    gf, bef = next(it), next(it)
    tmask_ref = next(it) if has_tgt_mask else None
    mmask_ref = next(it) if has_mem_mask else None
    o_ref = next(it)
    x_acc = next(it)                       # VMEM scratch (B_blk*T, E) f32

    B, T, E = x_ref.shape                  # B == batch block size
    S = mem_ref.shape[1]
    H = nhead
    dh = E // H
    BT = B * T
    cdt = MATMUL_DTYPE

    l = pl.program_id(1)
    n_layers = pl.num_programs(1)

    def layer_norm(z, g_r, b_r):
        mean = jnp.mean(z, axis=-1, keepdims=True)
        var = jnp.mean(jnp.square(z - mean), axis=-1, keepdims=True)
        return (z - mean) * jax.lax.rsqrt(var + LN_EPS) * g_r[...] + b_r[...]

    def proj(a, w_r, b_r):                 # bf16 x bf16 -> f32 accumulation (MXU)
        return jnp.dot(a.astype(cdt), w_r[...],
                       preferred_element_type=jnp.float32) + b_r[...]

    def mha(q_flat, k3, v3, w_o_r, b_o_r, mask):
        """softmax(q k^T [+ mask]) v for all heads, then output projection.

        q_flat: (B*T, E);  k3, v3: (B, S_kv, E) f32.  The 1/sqrt(dh) scale is
        pre-folded into the Q projection weights.  Per head: one rank-3 dot
        batched over the B batch rows (leading-batch dot_general, the safe
        Mosaic form); lane-sliced heads are merged with a single lane-dense
        concat before one (E, E) out-projection matmul."""
        q3 = q_flat.reshape(B, T, E)
        heads = []
        for h in range(H):                                 # small static H
            sl = slice(h * dh, (h + 1) * dh)
            s = jnp.einsum("btd,bsd->bts",
                           q3[:, :, sl].astype(cdt), k3[:, :, sl].astype(cdt),
                           preferred_element_type=jnp.float32)   # (B, T, S_kv)
            if mask is not None:
                # NOTE: a row that is entirely -inf produces NaN (same as torch).
                s = s + mask
            s = s - jnp.max(s, axis=-1, keepdims=True)
            p = jnp.exp(s)
            p = p * pl.reciprocal(jnp.sum(p, axis=-1, keepdims=True), approx=True)
            o_h = jnp.einsum("bts,bsd->btd",
                             p.astype(cdt), v3[:, :, sl].astype(cdt),
                             preferred_element_type=jnp.float32)  # (B, T, dh)
            heads.append(o_h.reshape(BT, dh))
        o = jnp.concatenate(heads, axis=-1)                # (B*T, E), lane-dense
        return proj(o, w_o_r, b_o_r)

    # Load the embedded input once (layer 0); otherwise continue from scratch.
    @pl.when(l == 0)
    def _():
        x_acc[...] = x_ref[...].reshape(BT, E)

    x = x_acc[...]                                         # (B*T, E) f32
    memb = mem_ref[...]                                    # (B, S, E) f32

    tmask = tmask_ref[...] if has_tgt_mask else None       # (T, T) additive
    mmask = mmask_ref[...] if has_mem_mask else None       # (T, S) additive

    # -- self-attention block: x = LN1(x + SelfAttn(x)) -----------------------
    qkv = proj(x, w_qkv, b_qkv)                            # fused (E, 3E) matmul
    sa = mha(qkv[:, :E],
             qkv[:, E:2 * E].reshape(B, T, E),
             qkv[:, 2 * E:].reshape(B, T, E),
             w_o_s, b_o_s, tmask)
    x = layer_norm(x + sa, g1, be1)

    # -- cross-attention block: x = LN2(x + CrossAttn(x, memory)) -------------
    qc = proj(x, w_q_c, b_q_c)                             # (B*T, E)
    kv = proj(memb.reshape(B * S, E), w_kv_c, b_kv_c)      # fused (E, 2E) matmul
    ca = mha(qc,
             kv[:, :E].reshape(B, S, E),
             kv[:, E:].reshape(B, S, E),
             w_o_c, b_o_c, mmask)
    x = layer_norm(x + ca, g2, be2)

    # -- feed-forward block: x = LN3(x + W2 relu(W1 x)) ------------------------
    hdn = jnp.maximum(proj(x, w_ff1, b_ff1), 0.0)          # (B*T, nhid) in VMEM
    x = layer_norm(x + proj(hdn, w_ff2, b_ff2), g3, be3)

    x_acc[...] = x                                         # carry to next layer

    # -- TransformerDecoder's final LayerNorm, only after the last layer -------
    @pl.when(l == n_layers - 1)
    def _():
        o_ref[...] = layer_norm(x, gf, bef).reshape(B, T, E)


# ----------------------------------------------------------------------------
# Wrapper: builds BlockSpecs / grid and calls the fused kernel.
# ----------------------------------------------------------------------------
def _to_additive_mask(mask, shape):
    if mask is None:
        return None
    mask = jnp.asarray(mask)
    if mask.dtype == jnp.bool_:
        # PyTorch boolean convention: True = masked out.
        mask = jnp.where(mask, jnp.float32(-jnp.inf), jnp.float32(0.0))
    return mask.astype(jnp.float32).reshape(shape)


def _pick_batch_block(B, T, target_rows=256):
    """Largest divisor of B with B_blk*T <= target_rows (fills MXU rows)."""
    best = 1
    for d in range(1, B + 1):
        if B % d == 0 and d * T <= target_rows:
            best = d
    return best


def _vmem_limit_bytes(bb, T, S, E, nhid):
    wd = jnp.dtype(MATMUL_DTYPE).itemsize
    weights = (3 * E * E + 3 * E * E + 2 * E * E + E * nhid + nhid * E) * wd
    small = (16 * E + 3 * E + 2 * E + nhid) * 4
    blocks = (2 * bb * T * E + bb * S * E) * 4              # x, out, memory blocks
    interm = (bb * T * 3 * E + bb * S * 2 * E + bb * T * nhid
              + 2 * bb * T * max(T, S) + 4 * bb * T * E) * 4
    est = 2 * (weights + small + blocks) + bb * T * E * 4 + interm
    return int(min(64 * 2 ** 20, max(32 * 2 ** 20, 2 * est)))


def decoder_stack(x, mem, params, nhead, tgt_mask=None, memory_mask=None,
                  batch_block=None):
    """Full decoder stack.  x: (N, T, E) f32, mem: (N, S, E) f32 -> (N, T, E)."""
    B, T, E = x.shape
    S = mem.shape[1]
    L = params["w_qkv"].shape[0]
    nhid = params["w_ff1"].shape[-1]
    assert E % nhead == 0

    bb = batch_block or _pick_batch_block(B, T)
    assert B % bb == 0

    tgt_mask = _to_additive_mask(tgt_mask, (T, T))
    memory_mask = _to_additive_mask(memory_mask, (T, S))

    args = [x, mem]
    in_specs = [pl.BlockSpec((bb, T, E), lambda b, l: (b, 0, 0)),
                pl.BlockSpec((bb, S, E), lambda b, l: (b, 0, 0))]

    # Per-layer parameters: stacked (L, ...), indexed by the layer grid coord so
    # layer l+1's weights DMA while layer l computes (default double-buffering).
    for name in _LAYER_PARAM_NAMES:
        w = params[name]
        args.append(w)
        in_specs.append(pl.BlockSpec((None,) + w.shape[1:],
                                     lambda b, l: (l, 0, 0)))

    # Final LayerNorm parameters + optional masks: constant block index, so they
    # are DMA'd once and stay resident.
    for w in (params["final_g"], params["final_b"]):
        args.append(w)
        in_specs.append(pl.BlockSpec(w.shape, lambda b, l: (0, 0)))
    if tgt_mask is not None:
        args.append(tgt_mask)
        in_specs.append(pl.BlockSpec(tgt_mask.shape, lambda b, l: (0, 0)))
    if memory_mask is not None:
        args.append(memory_mask)
        in_specs.append(pl.BlockSpec(memory_mask.shape, lambda b, l: (0, 0)))

    kernel = functools.partial(_decoder_stack_kernel, nhead=nhead,
                               has_tgt_mask=tgt_mask is not None,
                               has_mem_mask=memory_mask is not None)

    return pl.pallas_call(
        kernel,
        grid=(B // bb, L),                       # batch outermost (parallel)
        in_specs=in_specs,
        out_specs=pl.BlockSpec((bb, T, E), lambda b, l: (b, 0, 0)),
        out_shape=jax.ShapeDtypeStruct((B, T, E), jnp.float32),
        scratch_shapes=[pltpu.VMEM((bb * T, E), jnp.float32)],
        compiler_params=pltpu.CompilerParams(
            dimension_semantics=("parallel", "arbitrary"),
            vmem_limit_bytes=_vmem_limit_bytes(bb, T, S, E, nhid)),
    )(*args)


# ----------------------------- model glue (plain JAX) ------------------------
def decoder_forward(params, tgt_ids, memory, nhead, tgt_mask=None,
                    memory_mask=None, batch_block=None):
    """Reproduces Decoder.forward with dropout = identity (eval mode)."""
    ninp = params["embedding"].shape[1]
    # Token-embedding gather (data-dependent gather -> left to XLA).
    emb = jnp.take(params["embedding"], tgt_ids, axis=0) * math.sqrt(ninp)  # (B,T,E)
    # PositionalEncoding mirrors the reference exactly: pe[: x.size(0)] is applied
    # *before* the (0,1) transpose, i.e. sliced along the batch dimension.
    x = emb + params["pe"][: emb.shape[0]]                                  # (B,T,E)
    # Single (S,N,E)->(N,S,E) relayout outside the kernel (kept deliberately:
    # doing it in-kernel would need an unsupported sublane transpose).
    mem = jnp.transpose(memory, (1, 0, 2))
    return decoder_stack(x, mem, params, nhead, tgt_mask, memory_mask, batch_block)


# ----------------------------- deterministic param init ----------------------
def init_params(key, vocab_size, ninp, nhead, nhid, nlayers, max_len=512):
    """Per-layer weights stacked along a leading L axis, pre-transposed ((in,out))
    and pre-cast to MATMUL_DTYPE.  The 1/sqrt(dh) attention scale is folded into
    the Q projection weights/biases.  Biases & LayerNorm params stay f32."""
    dh = ninp // nhead
    scale = 1.0 / math.sqrt(dh)
    wdt = MATMUL_DTYPE

    def normal(k, shape, s=0.05):
        return s * jax.random.normal(k, shape, jnp.float32)

    keys = jax.random.split(key, 1 + nlayers)
    emb = normal(keys[0], (vocab_size, ninp)).at[0].set(0.0)       # padding_idx=0

    # PositionalEncoding buffer (max_len, 1, ninp), identical to the reference.
    position = jnp.arange(max_len, dtype=jnp.float32)[:, None]
    div_term = jnp.exp(jnp.arange(0, ninp, 2, dtype=jnp.float32)
                       * (-math.log(10000.0) / ninp))
    pe = jnp.zeros((max_len, ninp), jnp.float32)
    pe = pe.at[:, 0::2].set(jnp.sin(position * div_term))
    pe = pe.at[:, 1::2].set(jnp.cos(position * div_term))
    pe = pe[:, None, :]

    per_layer = {name: [] for name in _LAYER_PARAM_NAMES}
    for li in range(nlayers):
        lk = jax.random.split(keys[1 + li], 7)
        w_qkv = normal(lk[0], (ninp, 3 * ninp))
        w_qkv = w_qkv.at[:, :ninp].multiply(scale)       # fold 1/sqrt(dh) into Q
        b_qkv = jnp.zeros((1, 3 * ninp), jnp.float32).at[:, :ninp].multiply(scale)
        vals = dict(
            w_qkv=w_qkv.astype(wdt), b_qkv=b_qkv,
            w_o_s=normal(lk[1], (ninp, ninp)).astype(wdt),
            b_o_s=jnp.zeros((1, ninp), jnp.float32),
            g1=jnp.ones((1, ninp), jnp.float32), be1=jnp.zeros((1, ninp), jnp.float32),
            w_q_c=(normal(lk[2], (ninp, ninp)) * scale).astype(wdt),
            b_q_c=jnp.zeros((1, ninp), jnp.float32),
            w_kv_c=normal(lk[3], (ninp, 2 * ninp)).astype(wdt),
            b_kv_c=jnp.zeros((1, 2 * ninp), jnp.float32),
            w_o_c=normal(lk[4], (ninp, ninp)).astype(wdt),
            b_o_c=jnp.zeros((1, ninp), jnp.float32),
            g2=jnp.ones((1, ninp), jnp.float32), be2=jnp.zeros((1, ninp), jnp.float32),
            w_ff1=normal(lk[5], (ninp, nhid)).astype(wdt),
            b_ff1=jnp.zeros((1, nhid), jnp.float32),
            w_ff2=normal(lk[6], (nhid, ninp)).astype(wdt),
            b_ff2=jnp.zeros((1, ninp), jnp.float32),
            g3=jnp.ones((1, ninp), jnp.float32), be3=jnp.zeros((1, ninp), jnp.float32),
        )
        for name in _LAYER_PARAM_NAMES:
            per_layer[name].append(vals[name])

    stacked = {name: jnp.stack(v, axis=0) for name, v in per_layer.items()}
    return dict(embedding=emb, pe=pe,
                final_g=jnp.ones((1, ninp), jnp.float32),
                final_b=jnp.zeros((1, ninp), jnp.float32),
                **stacked)


# ----------------------------- demo -------------------------------------------
if __name__ == "__main__":
    # ninp/nhid multiples of 128 keep every matmul N-dim and every store lane-dense.
    vocab_size, ninp, nhead, nhid, nlayers = 64, 128, 4, 256, 2
    batch, tgt_len, src_len = 2, 8, 16

    root = jax.random.PRNGKey(0)
    k_par, k_tgt, k_mem = jax.random.split(root, 3)

    params = init_params(k_par, vocab_size, ninp, nhead, nhid, nlayers, max_len=512)
    tgt_ids = jax.random.randint(k_tgt, (batch, tgt_len), 0, vocab_size,
                                 dtype=jnp.int32)
    memory = jax.random.normal(k_mem, (src_len, batch, ninp), jnp.float32)

    fwd = jax.jit(functools.partial(decoder_forward, nhead=nhead))
    out = fwd(params, tgt_ids, memory)       # masks default to None (no-mask path)
    out = jax.block_until_ready(out)

    assert out.shape == (batch, tgt_len, ninp)
    assert bool(jnp.all(jnp.isfinite(out)))
    print("KERNEL_OK")
</pallas_src>

<mosaic_0001>
module attributes {stable_mosaic.version = 11 : i64} {
  func.func @_decoder_stack_kernel(%arg0: i32, %arg1: i32, %arg2: memref<2x8x128xf32, #tpu.memory_space<vmem>>, %arg3: memref<2x16x128xf32, #tpu.memory_space<vmem>>, %arg4: memref<1x128x384xbf16, #tpu.memory_space<vmem>>, %arg5: memref<1x1x384xf32, #tpu.memory_space<vmem>>, %arg6: memref<1x128x128xbf16, #tpu.memory_space<vmem>>, %arg7: memref<1x1x128xf32, #tpu.memory_space<vmem>>, %arg8: memref<1x1x128xf32, #tpu.memory_space<vmem>>, %arg9: memref<1x1x128xf32, #tpu.memory_space<vmem>>, %arg10: memref<1x128x128xbf16, #tpu.memory_space<vmem>>, %arg11: memref<1x1x128xf32, #tpu.memory_space<vmem>>, %arg12: memref<1x128x256xbf16, #tpu.memory_space<vmem>>, %arg13: memref<1x1x256xf32, #tpu.memory_space<vmem>>, %arg14: memref<1x128x128xbf16, #tpu.memory_space<vmem>>, %arg15: memref<1x1x128xf32, #tpu.memory_space<vmem>>, %arg16: memref<1x1x128xf32, #tpu.memory_space<vmem>>, %arg17: memref<1x1x128xf32, #tpu.memory_space<vmem>>, %arg18: memref<1x128x256xbf16, #tpu.memory_space<vmem>>, %arg19: memref<1x1x256xf32, #tpu.memory_space<vmem>>, %arg20: memref<1x256x128xbf16, #tpu.memory_space<vmem>>, %arg21: memref<1x1x128xf32, #tpu.memory_space<vmem>>, %arg22: memref<1x1x128xf32, #tpu.memory_space<vmem>>, %arg23: memref<1x1x128xf32, #tpu.memory_space<vmem>>, %arg24: memref<1x128xf32, #tpu.memory_space<vmem>>, %arg25: memref<1x128xf32, #tpu.memory_space<vmem>>, %arg26: memref<2x8x128xf32, #tpu.memory_space<vmem>>, %arg27: memref<16x128xf32, #tpu.memory_space<vmem>>) attributes {dimension_semantics = [#tpu.dimension_semantics<parallel>, #tpu.dimension_semantics<arbitrary>], iteration_bounds = array<i64: 1, 2>, scalar_prefetch = 0 : i64, scratch_operands = 1 : i64, tpu.core_type = #tpu.core_type<tc>, window_params = [{transform_indices = @transform_0, window_bounds = array<i64: 2, 8, 128>}, {transform_indices = @transform_1, window_bounds = array<i64: 2, 16, 128>}, {transform_indices = @transform_2, window_bounds = array<i64: 1, 128, 384>}, {transform_indices = @transform_3, window_bounds = array<i64: 1, 1, 384>}, {transform_indices = @transform_4, window_bounds = array<i64: 1, 128, 128>}, {transform_indices = @transform_5, window_bounds = array<i64: 1, 1, 128>}, {transform_indices = @transform_6, window_bounds = array<i64: 1, 1, 128>}, {transform_indices = @transform_7, window_bounds = array<i64: 1, 1, 128>}, {transform_indices = @transform_8, window_bounds = array<i64: 1, 128, 128>}, {transform_indices = @transform_9, window_bounds = array<i64: 1, 1, 128>}, {transform_indices = @transform_10, window_bounds = array<i64: 1, 128, 256>}, {transform_indices = @transform_11, window_bounds = array<i64: 1, 1, 256>}, {transform_indices = @transform_12, window_bounds = array<i64: 1, 128, 128>}, {transform_indices = @transform_13, window_bounds = array<i64: 1, 1, 128>}, {transform_indices = @transform_14, window_bounds = array<i64: 1, 1, 128>}, {transform_indices = @transform_15, window_bounds = array<i64: 1, 1, 128>}, {transform_indices = @transform_16, window_bounds = array<i64: 1, 128, 256>}, {transform_indices = @transform_17, window_bounds = array<i64: 1, 1, 256>}, {transform_indices = @transform_18, window_bounds = array<i64: 1, 256, 128>}, {transform_indices = @transform_19, window_bounds = array<i64: 1, 1, 128>}, {transform_indices = @transform_20, window_bounds = array<i64: 1, 1, 128>}, {transform_indices = @transform_21, window_bounds = array<i64: 1, 1, 128>}, {pipeline_mode = #tpu.pipeline_mode<synchronous>, transform_indices = @transform_22, window_bounds = array<i64: 1, 128>}, {pipeline_mode = #tpu.pipeline_mode<synchronous>, transform_indices = @transform_23, window_bounds = array<i64: 1, 128>}, {transform_indices = @transform_24, window_bounds = array<i64: 2, 8, 128>}]} {
    %c0_i32 = arith.constant 0 : i32
    %0 = arith.cmpi eq, %arg1, %c0_i32 : i32
    %1 = arith.extui %0 : i1 to i32
    %c0_i32_0 = arith.constant 0 : i32
    %2 = arith.cmpi ne, %1, %c0_i32_0 : i32
    scf.if %2 {
      %c0_122 = arith.constant 0 : index
      %c0_123 = arith.constant 0 : index
      %c0_124 = arith.constant 0 : index
      %322 = vector.load %arg2[%c0_122, %c0_123, %c0_124] : memref<2x8x128xf32, #tpu.memory_space<vmem>>, vector<2x8x128xf32>
      %323 = vector.shape_cast %322 : vector<2x8x128xf32> to vector<16x128xf32>
      %c0_125 = arith.constant 0 : index
      %c0_126 = arith.constant 0 : index
      %324 = vector.load %arg27[%c0_125, %c0_126] : memref<16x128xf32, #tpu.memory_space<vmem>>, vector<16x128xf32>
      tpu.vector_store %arg27[%c0_125, %c0_126], %323 {strides = array<i32>} : memref<16x128xf32, #tpu.memory_space<vmem>>, vector<16x128xf32>,
    } else {
    }
    %c0 = arith.constant 0 : index
    %c0_1 = arith.constant 0 : index
    %3 = vector.load %arg27[%c0, %c0_1] : memref<16x128xf32, #tpu.memory_space<vmem>>, vector<16x128xf32>
    %c0_2 = arith.constant 0 : index
    %c0_3 = arith.constant 0 : index
    %c0_4 = arith.constant 0 : index
    %4 = vector.load %arg3[%c0_2, %c0_3, %c0_4] : memref<2x16x128xf32, #tpu.memory_space<vmem>>, vector<2x16x128xf32>
    %5 = arith.truncf %3 : vector<16x128xf32> to vector<16x128xbf16>
    %c0_5 = arith.constant 0 : index
    %c0_6 = arith.constant 0 : index
    %c0_7 = arith.constant 0 : index
    %6 = vector.load %arg4[%c0_5, %c0_6, %c0_7] : memref<1x128x384xbf16, #tpu.memory_space<vmem>>, vector<1x128x384xbf16>
    %7 = vector.shape_cast %6 : vector<1x128x384xbf16> to vector<128x384xbf16>
    %cst = arith.constant dense<0.000000e+00> : vector<16x384xf32>
    %8 = tpu.matmul %5, %7, %cst {dimension_numbers = #tpu.dot_dimension_numbers<[1], [0], [0], [1], [0, 0, 1, 1], [], []>} : vector<16x128xbf16>, vector<128x384xbf16>, vector<16x384xf32> -> vector<16x384xf32>
    %c0_8 = arith.constant 0 : index
    %c0_9 = arith.constant 0 : index
    %c0_10 = arith.constant 0 : index
    %9 = vector.load %arg5[%c0_8, %c0_9, %c0_10] : memref<1x1x384xf32, #tpu.memory_space<vmem>>, vector<1x1x384xf32>
    %10 = vector.shape_cast %9 : vector<1x1x384xf32> to vector<1x384xf32>
    %11 = vector.broadcast %10 : vector<1x384xf32> to vector<16x384xf32>
    %12 = arith.addf %8, %11 : vector<16x384xf32>
    %13 = vector.extract_strided_slice %12 {offsets = [0, 0], sizes = [16, 128], strides = [1, 1]} : vector<16x384xf32> to vector<16x128xf32>
    %14 = vector.extract_strided_slice %12 {offsets = [0, 128], sizes = [16, 128], strides = [1, 1]} : vector<16x384xf32> to vector<16x128xf32>
    %15 = vector.shape_cast %14 : vector<16x128xf32> to vector<2x8x128xf32>
    %16 = vector.extract_strided_slice %12 {offsets = [0, 256], sizes = [16, 128], strides = [1, 1]} : vector<16x384xf32> to vector<16x128xf32>
    %17 = vector.shape_cast %16 : vector<16x128xf32> to vector<2x8x128xf32>
    %18 = vector.shape_cast %13 : vector<16x128xf32> to vector<2x8x128xf32>
    %19 = vector.extract_strided_slice %18 {offsets = [0, 0, 0], sizes = [2, 8, 32], strides = [1, 1, 1]} : vector<2x8x128xf32> to vector<2x8x32xf32>
    %20 = arith.truncf %19 : vector<2x8x32xf32> to vector<2x8x32xbf16>
    %21 = vector.extract_strided_slice %15 {offsets = [0, 0, 0], sizes = [2, 8, 32], strides = [1, 1, 1]} : vector<2x8x128xf32> to vector<2x8x32xf32>
    %22 = arith.truncf %21 : vector<2x8x32xf32> to vector<2x8x32xbf16>
    "tpu.trace_start"() <{level = 10 : i32, message = "btd,bsd->bts"}> : () -> ()
    %cst_11 = arith.constant dense<0.000000e+00> : vector<2x8x8xf32>
    %23 = tpu.matmul %20, %22, %cst_11 {dimension_numbers = #tpu.dot_dimension_numbers<[2], [2], [1], [1], [0, 0, 0, 1, 1, 1], [0], [0]>} : vector<2x8x32xbf16>, vector<2x8x32xbf16>, vector<2x8x8xf32> -> vector<2x8x8xf32>
    "tpu.trace_stop"() : () -> ()
    %cst_12 = arith.constant dense<0xFF800000> : vector<2x8xf32>
    %24 = vector.multi_reduction <maximumf>, %23, %cst_12 [2] : vector<2x8x8xf32> to vector<2x8xf32>
    %25 = vector.shape_cast %24 : vector<2x8xf32> to vector<2x8x1xf32>
    %26 = vector.broadcast %25 : vector<2x8x1xf32> to vector<2x8x8xf32>
    %27 = arith.subf %23, %26 : vector<2x8x8xf32>
    %28 = math.exp %27 : vector<2x8x8xf32>
    %cst_13 = arith.constant dense<0.000000e+00> : vector<2x8xf32>
    %29 = vector.multi_reduction <add>, %28, %cst_13 [2] : vector<2x8x8xf32> to vector<2x8xf32>
    %30 = vector.shape_cast %29 : vector<2x8xf32> to vector<2x8x1xf32>
    %31 = tpu.reciprocal %30 {approx = true} : vector<2x8x1xf32> -> vector<2x8x1xf32>
    %32 = vector.broadcast %31 : vector<2x8x1xf32> to vector<2x8x8xf32>
    %33 = arith.mulf %28, %32 : vector<2x8x8xf32>
    %34 = arith.truncf %33 : vector<2x8x8xf32> to vector<2x8x8xbf16>
    %35 = vector.extract_strided_slice %17 {offsets = [0, 0, 0], sizes = [2, 8, 32], strides = [1, 1, 1]} : vector<2x8x128xf32> to vector<2x8x32xf32>
    %36 = arith.truncf %35 : vector<2x8x32xf32> to vector<2x8x32xbf16>
    "tpu.trace_start"() <{level = 10 : i32, message = "bts,bsd->btd"}> : () -> ()
    %cst_14 = arith.constant dense<0.000000e+00> : vector<2x8x32xf32>
    %37 = tpu.matmul %34, %36, %cst_14 {dimension_numbers = #tpu.dot_dimension_numbers<[2], [1], [1], [2], [0, 0, 0, 1, 1, 2], [0], [0]>} : vector<2x8x8xbf16>, vector<2x8x32xbf16>, vector<2x8x32xf32> -> vector<2x8x32xf32>
    "tpu.trace_stop"() : () -> ()
    %38 = vector.shape_cast %37 : vector<2x8x32xf32> to vector<16x32xf32>
    %39 = vector.extract_strided_slice %18 {offsets = [0, 0, 32], sizes = [2, 8, 32], strides = [1, 1, 1]} : vector<2x8x128xf32> to vector<2x8x32xf32>
    %40 = arith.truncf %39 : vector<2x8x32xf32> to vector<2x8x32xbf16>
    %41 = vector.extract_strided_slice %15 {offsets = [0, 0, 32], sizes = [2, 8, 32], strides = [1, 1, 1]} : vector<2x8x128xf32> to vector<2x8x32xf32>
    %42 = arith.truncf %41 : vector<2x8x32xf32> to vector<2x8x32xbf16>
    "tpu.trace_start"() <{level = 10 : i32, message = "btd,bsd->bts"}> : () -> ()
    %cst_15 = arith.constant dense<0.000000e+00> : vector<2x8x8xf32>
    %43 = tpu.matmul %40, %42, %cst_15 {dimension_numbers = #tpu.dot_dimension_numbers<[2], [2], [1], [1], [0, 0, 0, 1, 1, 1], [0], [0]>} : vector<2x8x32xbf16>, vector<2x8x32xbf16>, vector<2x8x8xf32> -> vector<2x8x8xf32>
    "tpu.trace_stop"() : () -> ()
    %cst_16 = arith.constant dense<0xFF800000> : vector<2x8xf32>
    %44 = vector.multi_reduction <maximumf>, %43, %cst_16 [2] : vector<2x8x8xf32> to vector<2x8xf32>
    %45 = vector.shape_cast %44 : vector<2x8xf32> to vector<2x8x1xf32>
    %46 = vector.broadcast %45 : vector<2x8x1xf32> to vector<2x8x8xf32>
    %47 = arith.subf %43, %46 : vector<2x8x8xf32>
    %48 = math.exp %47 : vector<2x8x8xf32>
    %cst_17 = arith.constant dense<0.000000e+00> : vector<2x8xf32>
    %49 = vector.multi_reduction <add>, %48, %cst_17 [2] : vector<2x8x8xf32> to vector<2x8xf32>
    %50 = vector.shape_cast %49 : vector<2x8xf32> to vector<2x8x1xf32>
    %51 = tpu.reciprocal %50 {approx = true} : vector<2x8x1xf32> -> vector<2x8x1xf32>
    %52 = vector.broadcast %51 : vector<2x8x1xf32> to vector<2x8x8xf32>
    %53 = arith.mulf %48, %52 : vector<2x8x8xf32>
    %54 = arith.truncf %53 : vector<2x8x8xf32> to vector<2x8x8xbf16>
    %55 = vector.extract_strided_slice %17 {offsets = [0, 0, 32], sizes = [2, 8, 32], strides = [1, 1, 1]} : vector<2x8x128xf32> to vector<2x8x32xf32>
    %56 = arith.truncf %55 : vector<2x8x32xf32> to vector<2x8x32xbf16>
    "tpu.trace_start"() <{level = 10 : i32, message = "bts,bsd->btd"}> : () -> ()
    %cst_18 = arith.constant dense<0.000000e+00> : vector<2x8x32xf32>
    %57 = tpu.matmul %54, %56, %cst_18 {dimension_numbers = #tpu.dot_dimension_numbers<[2], [1], [1], [2], [0, 0, 0, 1, 1, 2], [0], [0]>} : vector<2x8x8xbf16>, vector<2x8x32xbf16>, vector<2x8x32xf32> -> vector<2x8x32xf32>
    "tpu.trace_stop"() : () -> ()
    %58 = vector.shape_cast %57 : vector<2x8x32xf32> to vector<16x32xf32>
    %59 = vector.extract_strided_slice %18 {offsets = [0, 0, 64], sizes = [2, 8, 32], strides = [1, 1, 1]} : vector<2x8x128xf32> to vector<2x8x32xf32>
    %60 = arith.truncf %59 : vector<2x8x32xf32> to vector<2x8x32xbf16>
    %61 = vector.extract_strided_slice %15 {offsets = [0, 0, 64], sizes = [2, 8, 32], strides = [1, 1, 1]} : vector<2x8x128xf32> to vector<2x8x32xf32>
    %62 = arith.truncf %61 : vector<2x8x32xf32> to vector<2x8x32xbf16>
    "tpu.trace_start"() <{level = 10 : i32, message = "btd,bsd->bts"}> : () -> ()
    %cst_19 = arith.constant dense<0.000000e+00> : vector<2x8x8xf32>
    %63 = tpu.matmul %60, %62, %cst_19 {dimension_numbers = #tpu.dot_dimension_numbers<[2], [2], [1], [1], [0, 0, 0, 1, 1, 1], [0], [0]>} : vector<2x8x32xbf16>, vector<2x8x32xbf16>, vector<2x8x8xf32> -> vector<2x8x8xf32>
    "tpu.trace_stop"() : () -> ()
    %cst_20 = arith.constant dense<0xFF800000> : vector<2x8xf32>
    %64 = vector.multi_reduction <maximumf>, %63, %cst_20 [2] : vector<2x8x8xf32> to vector<2x8xf32>
    %65 = vector.shape_cast %64 : vector<2x8xf32> to vector<2x8x1xf32>
    %66 = vector.broadcast %65 : vector<2x8x1xf32> to vector<2x8x8xf32>
    %67 = arith.subf %63, %66 : vector<2x8x8xf32>
    %68 = math.exp %67 : vector<2x8x8xf32>
    %cst_21 = arith.constant dense<0.000000e+00> : vector<2x8xf32>
    %69 = vector.multi_reduction <add>, %68, %cst_21 [2] : vector<2x8x8xf32> to vector<2x8xf32>
    %70 = vector.shape_cast %69 : vector<2x8xf32> to vector<2x8x1xf32>
    %71 = tpu.reciprocal %70 {approx = true} : vector<2x8x1xf32> -> vector<2x8x1xf32>
    %72 = vector.broadcast %71 : vector<2x8x1xf32> to vector<2x8x8xf32>
    %73 = arith.mulf %68, %72 : vector<2x8x8xf32>
    %74 = arith.truncf %73 : vector<2x8x8xf32> to vector<2x8x8xbf16>
    %75 = vector.extract_strided_slice %17 {offsets = [0, 0, 64], sizes = [2, 8, 32], strides = [1, 1, 1]} : vector<2x8x128xf32> to vector<2x8x32xf32>
    %76 = arith.truncf %75 : vector<2x8x32xf32> to vector<2x8x32xbf16>
    "tpu.trace_start"() <{level = 10 : i32, message = "bts,bsd->btd"}> : () -> ()
    %cst_22 = arith.constant dense<0.000000e+00> : vector<2x8x32xf32>
    %77 = tpu.matmul %74, %76, %cst_22 {dimension_numbers = #tpu.dot_dimension_numbers<[2], [1], [1], [2], [0, 0, 0, 1, 1, 2], [0], [0]>} : vector<2x8x8xbf16>, vector<2x8x32xbf16>, vector<2x8x32xf32> -> vector<2x8x32xf32>
    "tpu.trace_stop"() : () -> ()
    %78 = vector.shape_cast %77 : vector<2x8x32xf32> to vector<16x32xf32>
    %79 = vector.extract_strided_slice %18 {offsets = [0, 0, 96], sizes = [2, 8, 32], strides = [1, 1, 1]} : vector<2x8x128xf32> to vector<2x8x32xf32>
    %80 = arith.truncf %79 : vector<2x8x32xf32> to vector<2x8x32xbf16>
    %81 = vector.extract_strided_slice %15 {offsets = [0, 0, 96], sizes = [2, 8, 32], strides = [1, 1, 1]} : vector<2x8x128xf32> to vector<2x8x32xf32>
    %82 = arith.truncf %81 : vector<2x8x32xf32> to vector<2x8x32xbf16>
    "tpu.trace_start"() <{level = 10 : i32, message = "btd,bsd->bts"}> : () -> ()
    %cst_23 = arith.constant dense<0.000000e+00> : vector<2x8x8xf32>
    %83 = tpu.matmul %80, %82, %cst_23 {dimension_numbers = #tpu.dot_dimension_numbers<[2], [2], [1], [1], [0, 0, 0, 1, 1, 1], [0], [0]>} : vector<2x8x32xbf16>, vector<2x8x32xbf16>, vector<2x8x8xf32> -> vector<2x8x8xf32>
    "tpu.trace_stop"() : () -> ()
    %cst_24 = arith.constant dense<0xFF800000> : vector<2x8xf32>
    %84 = vector.multi_reduction <maximumf>, %83, %cst_24 [2] : vector<2x8x8xf32> to vector<2x8xf32>
    %85 = vector.shape_cast %84 : vector<2x8xf32> to vector<2x8x1xf32>
    %86 = vector.broadcast %85 : vector<2x8x1xf32> to vector<2x8x8xf32>
    %87 = arith.subf %83, %86 : vector<2x8x8xf32>
    %88 = math.exp %87 : vector<2x8x8xf32>
    %cst_25 = arith.constant dense<0.000000e+00> : vector<2x8xf32>
    %89 = vector.multi_reduction <add>, %88, %cst_25 [2] : vector<2x8x8xf32> to vector<2x8xf32>
    %90 = vector.shape_cast %89 : vector<2x8xf32> to vector<2x8x1xf32>
    %91 = tpu.reciprocal %90 {approx = true} : vector<2x8x1xf32> -> vector<2x8x1xf32>
    %92 = vector.broadcast %91 : vector<2x8x1xf32> to vector<2x8x8xf32>
    %93 = arith.mulf %88, %92 : vector<2x8x8xf32>
    %94 = arith.truncf %93 : vector<2x8x8xf32> to vector<2x8x8xbf16>
    %95 = vector.extract_strided_slice %17 {offsets = [0, 0, 96], sizes = [2, 8, 32], strides = [1, 1, 1]} : vector<2x8x128xf32> to vector<2x8x32xf32>
    %96 = arith.truncf %95 : vector<2x8x32xf32> to vector<2x8x32xbf16>
    "tpu.trace_start"() <{level = 10 : i32, message = "bts,bsd->btd"}> : () -> ()
    %cst_26 = arith.constant dense<0.000000e+00> : vector<2x8x32xf32>
    %97 = tpu.matmul %94, %96, %cst_26 {dimension_numbers = #tpu.dot_dimension_numbers<[2], [1], [1], [2], [0, 0, 0, 1, 1, 2], [0], [0]>} : vector<2x8x8xbf16>, vector<2x8x32xbf16>, vector<2x8x32xf32> -> vector<2x8x32xf32>
    "tpu.trace_stop"() : () -> ()
    %98 = vector.shape_cast %97 : vector<2x8x32xf32> to vector<16x32xf32>
    %99 = tpu.concatenate %38, %58, %78, %98 in 1 : vector<16x32xf32>, vector<16x32xf32>, vector<16x32xf32>, vector<16x32xf32> -> vector<16x128xf32>
    %100 = arith.truncf %99 : vector<16x128xf32> to vector<16x128xbf16>
    %c0_27 = arith.constant 0 : index
    %c0_28 = arith.constant 0 : index
    %c0_29 = arith.constant 0 : index
    %101 = vector.load %arg6[%c0_27, %c0_28, %c0_29] : memref<1x128x128xbf16, #tpu.memory_space<vmem>>, vector<1x128x128xbf16>
    %102 = vector.shape_cast %101 : vector<1x128x128xbf16> to vector<128x128xbf16>
    %cst_30 = arith.constant dense<0.000000e+00> : vector<16x128xf32>
    %103 = tpu.matmul %100, %102, %cst_30 {dimension_numbers = #tpu.dot_dimension_numbers<[1], [0], [0], [1], [0, 0, 1, 1], [], []>} : vector<16x128xbf16>, vector<128x128xbf16>, vector<16x128xf32> -> vector<16x128xf32>
    %c0_31 = arith.constant 0 : index
    %c0_32 = arith.constant 0 : index
    %c0_33 = arith.constant 0 : index
    %104 = vector.load %arg7[%c0_31, %c0_32, %c0_33] : memref<1x1x128xf32, #tpu.memory_space<vmem>>, vector<1x1x128xf32>
    %105 = vector.shape_cast %104 : vector<1x1x128xf32> to vector<1x128xf32>
    %106 = vector.broadcast %105 : vector<1x128xf32> to vector<16x128xf32>
    %107 = arith.addf %103, %106 : vector<16x128xf32>
    %108 = arith.addf %3, %107 : vector<16x128xf32>
    %cst_34 = arith.constant dense<0.000000e+00> : vector<16xf32>
    %109 = vector.multi_reduction <add>, %108, %cst_34 [1] : vector<16x128xf32> to vector<16xf32>
    %110 = vector.shape_cast %109 : vector<16xf32> to vector<16x1xf32>
    %cst_35 = arith.constant 1.280000e+02 : f32
    %111 = vector.broadcast %cst_35 : f32 to vector<16x1xf32>
    %112 = arith.divf %110, %111 : vector<16x1xf32>
    %113 = vector.broadcast %112 : vector<16x1xf32> to vector<16x128xf32>
    %114 = arith.subf %108, %113 : vector<16x128xf32>
    %115 = arith.mulf %114, %114 : vector<16x128xf32>
    %cst_36 = arith.constant dense<0.000000e+00> : vector<16xf32>
    %116 = vector.multi_reduction <add>, %115, %cst_36 [1] : vector<16x128xf32> to vector<16xf32>
    %117 = vector.shape_cast %116 : vector<16xf32> to vector<16x1xf32>
    %cst_37 = arith.constant 1.280000e+02 : f32
    %118 = vector.broadcast %cst_37 : f32 to vector<16x1xf32>
    %119 = arith.divf %117, %118 : vector<16x1xf32>
    %120 = vector.broadcast %112 : vector<16x1xf32> to vector<16x128xf32>
    %121 = arith.subf %108, %120 : vector<16x128xf32>
    %cst_38 = arith.constant 9.99999974E-6 : f32
    %122 = vector.broadcast %cst_38 : f32 to vector<16x1xf32>
    %123 = arith.addf %119, %122 : vector<16x1xf32>
    %124 = math.rsqrt %123 : vector<16x1xf32>
    %125 = vector.broadcast %124 : vector<16x1xf32> to vector<16x128xf32>
    %126 = arith.mulf %121, %125 : vector<16x128xf32>
    %c0_39 = arith.constant 0 : index
    %c0_40 = arith.constant 0 : index
    %c0_41 = arith.constant 0 : index
    %127 = vector.load %arg8[%c0_39, %c0_40, %c0_41] : memref<1x1x128xf32, #tpu.memory_space<vmem>>, vector<1x1x128xf32>
    %128 = vector.shape_cast %127 : vector<1x1x128xf32> to vector<1x128xf32>
    %129 = vector.broadcast %128 : vector<1x128xf32> to vector<16x128xf32>
    %130 = arith.mulf %126, %129 : vector<16x128xf32>
    %c0_42 = arith.constant 0 : index
    %c0_43 = arith.constant 0 : index
    %c0_44 = arith.constant 0 : index
    %131 = vector.load %arg9[%c0_42, %c0_43, %c0_44] : memref<1x1x128xf32, #tpu.memory_space<vmem>>, vector<1x1x128xf32>
    %132 = vector.shape_cast %131 : vector<1x1x128xf32> to vector<1x128xf32>
    %133 = vector.broadcast %132 : vector<1x128xf32> to vector<16x128xf32>
    %134 = arith.addf %130, %133 : vector<16x128xf32>
    %135 = arith.truncf %134 : vector<16x128xf32> to vector<16x128xbf16>
    %c0_45 = arith.constant 0 : index
    %c0_46 = arith.constant 0 : index
    %c0_47 = arith.constant 0 : index
    %136 = vector.load %arg10[%c0_45, %c0_46, %c0_47] : memref<1x128x128xbf16, #tpu.memory_space<vmem>>, vector<1x128x128xbf16>
    %137 = vector.shape_cast %136 : vector<1x128x128xbf16> to vector<128x128xbf16>
    %cst_48 = arith.constant dense<0.000000e+00> : vector<16x128xf32>
    %138 = tpu.matmul %135, %137, %cst_48 {dimension_numbers = #tpu.dot_dimension_numbers<[1], [0], [0], [1], [0, 0, 1, 1], [], []>} : vector<16x128xbf16>, vector<128x128xbf16>, vector<16x128xf32> -> vector<16x128xf32>
    %c0_49 = arith.constant 0 : index
    %c0_50 = arith.constant 0 : index
    %c0_51 = arith.constant 0 : index
    %139 = vector.load %arg11[%c0_49, %c0_50, %c0_51] : memref<1x1x128xf32, #tpu.memory_space<vmem>>, vector<1x1x128xf32>
    %140 = vector.shape_cast %139 : vector<1x1x128xf32> to vector<1x128xf32>
    %141 = vector.broadcast %140 : vector<1x128xf32> to vector<16x128xf32>
    %142 = arith.addf %138, %141 : vector<16x128xf32>
    %143 = vector.shape_cast %4 : vector<2x16x128xf32> to vector<32x128xf32>
    %144 = arith.truncf %143 : vector<32x128xf32> to vector<32x128xbf16>
    %c0_52 = arith.constant 0 : index
    %c0_53 = arith.constant 0 : index
    %c0_54 = arith.constant 0 : index
    %145 = vector.load %arg12[%c0_52, %c0_53, %c0_54] : memref<1x128x256xbf16, #tpu.memory_space<vmem>>, vector<1x128x256xbf16>
    %146 = vector.shape_cast %145 : vector<1x128x256xbf16> to vector<128x256xbf16>
    %cst_55 = arith.constant dense<0.000000e+00> : vector<32x256xf32>
    %147 = tpu.matmul %144, %146, %cst_55 {dimension_numbers = #tpu.dot_dimension_numbers<[1], [0], [0], [1], [0, 0, 1, 1], [], []>} : vector<32x128xbf16>, vector<128x256xbf16>, vector<32x256xf32> -> vector<32x256xf32>
    %c0_56 = arith.constant 0 : index
    %c0_57 = arith.constant 0 : index
    %c0_58 = arith.constant 0 : index
    %148 = vector.load %arg13[%c0_56, %c0_57, %c0_58] : memref<1x1x256xf32, #tpu.memory_space<vmem>>, vector<1x1x256xf32>
    %149 = vector.shape_cast %148 : vector<1x1x256xf32> to vector<1x256xf32>
    %150 = vector.broadcast %149 : vector<1x256xf32> to vector<32x256xf32>
    %151 = arith.addf %147, %150 : vector<32x256xf32>
    %152 = vector.extract_strided_slice %151 {offsets = [0, 0], sizes = [32, 128], strides = [1, 1]} : vector<32x256xf32> to vector<32x128xf32>
    %153 = vector.shape_cast %152 : vector<32x128xf32> to vector<2x16x128xf32>
    %154 = vector.extract_strided_slice %151 {offsets = [0, 128], sizes = [32, 128], strides = [1, 1]} : vector<32x256xf32> to vector<32x128xf32>
    %155 = vector.shape_cast %154 : vector<32x128xf32> to vector<2x16x128xf32>
    %156 = vector.shape_cast %142 : vector<16x128xf32> to vector<2x8x128xf32>
    %157 = vector.extract_strided_slice %156 {offsets = [0, 0, 0], sizes = [2, 8, 32], strides = [1, 1, 1]} : vector<2x8x128xf32> to vector<2x8x32xf32>
    %158 = arith.truncf %157 : vector<2x8x32xf32> to vector<2x8x32xbf16>
    %159 = vector.extract_strided_slice %153 {offsets = [0, 0, 0], sizes = [2, 16, 32], strides = [1, 1, 1]} : vector<2x16x128xf32> to vector<2x16x32xf32>
    %160 = arith.truncf %159 : vector<2x16x32xf32> to vector<2x16x32xbf16>
    "tpu.trace_start"() <{level = 10 : i32, message = "btd,bsd->bts"}> : () -> ()
    %cst_59 = arith.constant dense<0.000000e+00> : vector<2x8x16xf32>
    %161 = tpu.matmul %158, %160, %cst_59 {dimension_numbers = #tpu.dot_dimension_numbers<[2], [2], [1], [1], [0, 0, 0, 1, 1, 1], [0], [0]>} : vector<2x8x32xbf16>, vector<2x16x32xbf16>, vector<2x8x16xf32> -> vector<2x8x16xf32>
    "tpu.trace_stop"() : () -> ()
    %cst_60 = arith.constant dense<0xFF800000> : vector<2x8xf32>
    %162 = vector.multi_reduction <maximumf>, %161, %cst_60 [2] : vector<2x8x16xf32> to vector<2x8xf32>
    %163 = vector.shape_cast %162 : vector<2x8xf32> to vector<2x8x1xf32>
    %164 = vector.broadcast %163 : vector<2x8x1xf32> to vector<2x8x16xf32>
    %165 = arith.subf %161, %164 : vector<2x8x16xf32>
    %166 = math.exp %165 : vector<2x8x16xf32>
    %cst_61 = arith.constant dense<0.000000e+00> : vector<2x8xf32>
    %167 = vector.multi_reduction <add>, %166, %cst_61 [2] : vector<2x8x16xf32> to vector<2x8xf32>
    %168 = vector.shape_cast %167 : vector<2x8xf32> to vector<2x8x1xf32>
    %169 = tpu.reciprocal %168 {approx = true} : vector<2x8x1xf32> -> vector<2x8x1xf32>
    %170 = vector.broadcast %169 : vector<2x8x1xf32> to vector<2x8x16xf32>
    %171 = arith.mulf %166, %170 : vector<2x8x16xf32>
    %172 = arith.truncf %171 : vector<2x8x16xf32> to vector<2x8x16xbf16>
    %173 = vector.extract_strided_slice %155 {offsets = [0, 0, 0], sizes = [2, 16, 32], strides = [1, 1, 1]} : vector<2x16x128xf32> to vector<2x16x32xf32>
    %174 = arith.truncf %173 : vector<2x16x32xf32> to vector<2x16x32xbf16>
    "tpu.trace_start"() <{level = 10 : i32, message = "bts,bsd->btd"}> : () -> ()
    %cst_62 = arith.constant dense<0.000000e+00> : vector<2x8x32xf32>
    %175 = tpu.matmul %172, %174, %cst_62 {dimension_numbers = #tpu.dot_dimension_numbers<[2], [1], [1], [2], [0, 0, 0, 1, 1, 2], [0], [0]>} : vector<2x8x16xbf16>, vector<2x16x32xbf16>, vector<2x8x32xf32> -> vector<2x8x32xf32>
    "tpu.trace_stop"() : () -> ()
    %176 = vector.shape_cast %175 : vector<2x8x32xf32> to vector<16x32xf32>
    %177 = vector.extract_strided_slice %156 {offsets = [0, 0, 32], sizes = [2, 8, 32], strides = [1, 1, 1]} : vector<2x8x128xf32> to vector<2x8x32xf32>
    %178 = arith.truncf %177 : vector<2x8x32xf32> to vector<2x8x32xbf16>
    %179 = vector.extract_strided_slice %153 {offsets = [0, 0, 32], sizes = [2, 16, 32], strides = [1, 1, 1]} : vector<2x16x128xf32> to vector<2x16x32xf32>
    %180 = arith.truncf %179 : vector<2x16x32xf32> to vector<2x16x32xbf16>
    "tpu.trace_start"() <{level = 10 : i32, message = "btd,bsd->bts"}> : () -> ()
    %cst_63 = arith.constant dense<0.000000e+00> : vector<2x8x16xf32>
    %181 = tpu.matmul %178, %180, %cst_63 {dimension_numbers = #tpu.dot_dimension_numbers<[2], [2], [1], [1], [0, 0, 0, 1, 1, 1], [0], [0]>} : vector<2x8x32xbf16>, vector<2x16x32xbf16>, vector<2x8x16xf32> -> vector<2x8x16xf32>
    "tpu.trace_stop"() : () -> ()
    %cst_64 = arith.constant dense<0xFF800000> : vector<2x8xf32>
    %182 = vector.multi_reduction <maximumf>, %181, %cst_64 [2] : vector<2x8x16xf32> to vector<2x8xf32>
    %183 = vector.shape_cast %182 : vector<2x8xf32> to vector<2x8x1xf32>
    %184 = vector.broadcast %183 : vector<2x8x1xf32> to vector<2x8x16xf32>
    %185 = arith.subf %181, %184 : vector<2x8x16xf32>
    %186 = math.exp %185 : vector<2x8x16xf32>
    %cst_65 = arith.constant dense<0.000000e+00> : vector<2x8xf32>
    %187 = vector.multi_reduction <add>, %186, %cst_65 [2] : vector<2x8x16xf32> to vector<2x8xf32>
    %188 = vector.shape_cast %187 : vector<2x8xf32> to vector<2x8x1xf32>
    %189 = tpu.reciprocal %188 {approx = true} : vector<2x8x1xf32> -> vector<2x8x1xf32>
    %190 = vector.broadcast %189 : vector<2x8x1xf32> to vector<2x8x16xf32>
    %191 = arith.mulf %186, %190 : vector<2x8x16xf32>
    %192 = arith.truncf %191 : vector<2x8x16xf32> to vector<2x8x16xbf16>
    %193 = vector.extract_strided_slice %155 {offsets = [0, 0, 32], sizes = [2, 16, 32], strides = [1, 1, 1]} : vector<2x16x128xf32> to vector<2x16x32xf32>
    %194 = arith.truncf %193 : vector<2x16x32xf32> to vector<2x16x32xbf16>
    "tpu.trace_start"() <{level = 10 : i32, message = "bts,bsd->btd"}> : () -> ()
    %cst_66 = arith.constant dense<0.000000e+00> : vector<2x8x32xf32>
    %195 = tpu.matmul %192, %194, %cst_66 {dimension_numbers = #tpu.dot_dimension_numbers<[2], [1], [1], [2], [0, 0, 0, 1, 1, 2], [0], [0]>} : vector<2x8x16xbf16>, vector<2x16x32xbf16>, vector<2x8x32xf32> -> vector<2x8x32xf32>
    "tpu.trace_stop"() : () -> ()
    %196 = vector.shape_cast %195 : vector<2x8x32xf32> to vector<16x32xf32>
    %197 = vector.extract_strided_slice %156 {offsets = [0, 0, 64], sizes = [2, 8, 32], strides = [1, 1, 1]} : vector<2x8x128xf32> to vector<2x8x32xf32>
    %198 = arith.truncf %197 : vector<2x8x32xf32> to vector<2x8x32xbf16>
    %199 = vector.extract_strided_slice %153 {offsets = [0, 0, 64], sizes = [2, 16, 32], strides = [1, 1, 1]} : vector<2x16x128xf32> to vector<2x16x32xf32>
    %200 = arith.truncf %199 : vector<2x16x32xf32> to vector<2x16x32xbf16>
    "tpu.trace_start"() <{level = 10 : i32, message = "btd,bsd->bts"}> : () -> ()
    %cst_67 = arith.constant dense<0.000000e+00> : vector<2x8x16xf32>
    %201 = tpu.matmul %198, %200, %cst_67 {dimension_numbers = #tpu.dot_dimension_numbers<[2], [2], [1], [1], [0, 0, 0, 1, 1, 1], [0], [0]>} : vector<2x8x32xbf16>, vector<2x16x32xbf16>, vector<2x8x16xf32> -> vector<2x8x16xf32>
    "tpu.trace_stop"() : () -> ()
    %cst_68 = arith.constant dense<0xFF800000> : vector<2x8xf32>
    %202 = vector.multi_reduction <maximumf>, %201, %cst_68 [2] : vector<2x8x16xf32> to vector<2x8xf32>
    %203 = vector.shape_cast %202 : vector<2x8xf32> to vector<2x8x1xf32>
    %204 = vector.broadcast %203 : vector<2x8x1xf32> to vector<2x8x16xf32>
    %205 = arith.subf %201, %204 : vector<2x8x16xf32>
    %206 = math.exp %205 : vector<2x8x16xf32>
    %cst_69 = arith.constant dense<0.000000e+00> : vector<2x8xf32>
    %207 = vector.multi_reduction <add>, %206, %cst_69 [2] : vector<2x8x16xf32> to vector<2x8xf32>
    %208 = vector.shape_cast %207 : vector<2x8xf32> to vector<2x8x1xf32>
    %209 = tpu.reciprocal %208 {approx = true} : vector<2x8x1xf32> -> vector<2x8x1xf32>
    %210 = vector.broadcast %209 : vector<2x8x1xf32> to vector<2x8x16xf32>
    %211 = arith.mulf %206, %210 : vector<2x8x16xf32>
    %212 = arith.truncf %211 : vector<2x8x16xf32> to vector<2x8x16xbf16>
    %213 = vector.extract_strided_slice %155 {offsets = [0, 0, 64], sizes = [2, 16, 32], strides = [1, 1, 1]} : vector<2x16x128xf32> to vector<2x16x32xf32>
    %214 = arith.truncf %213 : vector<2x16x32xf32> to vector<2x16x32xbf16>
    "tpu.trace_start"() <{level = 10 : i32, message = "bts,bsd->btd"}> : () -> ()
    %cst_70 = arith.constant dense<0.000000e+00> : vector<2x8x32xf32>
    %215 = tpu.matmul %212, %214, %cst_70 {dimension_numbers = #tpu.dot_dimension_numbers<[2], [1], [1], [2], [0, 0, 0, 1, 1, 2], [0], [0]>} : vector<2x8x16xbf16>, vector<2x16x32xbf16>, vector<2x8x32xf32> -> vector<2x8x32xf32>
    "tpu.trace_stop"() : () -> ()
    %216 = vector.shape_cast %215 : vector<2x8x32xf32> to vector<16x32xf32>
    %217 = vector.extract_strided_slice %156 {offsets = [0, 0, 96], sizes = [2, 8, 32], strides = [1, 1, 1]} : vector<2x8x128xf32> to vector<2x8x32xf32>
    %218 = arith.truncf %217 : vector<2x8x32xf32> to vector<2x8x32xbf16>
    %219 = vector.extract_strided_slice %153 {offsets = [0, 0, 96], sizes = [2, 16, 32], strides = [1, 1, 1]} : vector<2x16x128xf32> to vector<2x16x32xf32>
    %220 = arith.truncf %219 : vector<2x16x32xf32> to vector<2x16x32xbf16>
    "tpu.trace_start"() <{level = 10 : i32, message = "btd,bsd->bts"}> : () -> ()
    %cst_71 = arith.constant dense<0.000000e+00> : vector<2x8x16xf32>
    %221 = tpu.matmul %218, %220, %cst_71 {dimension_numbers = #tpu.dot_dimension_numbers<[2], [2], [1], [1], [0, 0, 0, 1, 1, 1], [0], [0]>} : vector<2x8x32xbf16>, vector<2x16x32xbf16>, vector<2x8x16xf32> -> vector<2x8x16xf32>
    "tpu.trace_stop"() : () -> ()
    %cst_72 = arith.constant dense<0xFF800000> : vector<2x8xf32>
    %222 = vector.multi_reduction <maximumf>, %221, %cst_72 [2] : vector<2x8x16xf32> to vector<2x8xf32>
    %223 = vector.shape_cast %222 : vector<2x8xf32> to vector<2x8x1xf32>
    %224 = vector.broadcast %223 : vector<2x8x1xf32> to vector<2x8x16xf32>
    %225 = arith.subf %221, %224 : vector<2x8x16xf32>
    %226 = math.exp %225 : vector<2x8x16xf32>
    %cst_73 = arith.constant dense<0.000000e+00> : vector<2x8xf32>
    %227 = vector.multi_reduction <add>, %226, %cst_73 [2] : vector<2x8x16xf32> to vector<2x8xf32>
    %228 = vector.shape_cast %227 : vector<2x8xf32> to vector<2x8x1xf32>
    %229 = tpu.reciprocal %228 {approx = true} : vector<2x8x1xf32> -> vector<2x8x1xf32>
    %230 = vector.broadcast %229 : vector<2x8x1xf32> to vector<2x8x16xf32>
    %231 = arith.mulf %226, %230 : vector<2x8x16xf32>
    %232 = arith.truncf %231 : vector<2x8x16xf32> to vector<2x8x16xbf16>
    %233 = vector.extract_strided_slice %155 {offsets = [0, 0, 96], sizes = [2, 16, 32], strides = [1, 1, 1]} : vector<2x16x128xf32> to vector<2x16x32xf32>
    %234 = arith.truncf %233 : vector<2x16x32xf32> to vector<2x16x32xbf16>
    "tpu.trace_start"() <{level = 10 : i32, message = "bts,bsd->btd"}> : () -> ()
    %cst_74 = arith.constant dense<0.000000e+00> : vector<2x8x32xf32>
    %235 = tpu.matmul %232, %234, %cst_74 {dimension_numbers = #tpu.dot_dimension_numbers<[2], [1], [1], [2], [0, 0, 0, 1, 1, 2], [0], [0]>} : vector<2x8x16xbf16>, vector<2x16x32xbf16>, vector<2x8x32xf32> -> vector<2x8x32xf32>
    "tpu.trace_stop"() : () -> ()
    %236 = vector.shape_cast %235 : vector<2x8x32xf32> to vector<16x32xf32>
    %237 = tpu.concatenate %176, %196, %216, %236 in 1 : vector<16x32xf32>, vector<16x32xf32>, vector<16x32xf32>, vector<16x32xf32> -> vector<16x128xf32>
    %238 = arith.truncf %237 : vector<16x128xf32> to vector<16x128xbf16>
    %c0_75 = arith.constant 0 : index
    %c0_76 = arith.constant 0 : index
    %c0_77 = arith.constant 0 : index
    %239 = vector.load %arg14[%c0_75, %c0_76, %c0_77] : memref<1x128x128xbf16, #tpu.memory_space<vmem>>, vector<1x128x128xbf16>
    %240 = vector.shape_cast %239 : vector<1x128x128xbf16> to vector<128x128xbf16>
    %cst_78 = arith.constant dense<0.000000e+00> : vector<16x128xf32>
    %241 = tpu.matmul %238, %240, %cst_78 {dimension_numbers = #tpu.dot_dimension_numbers<[1], [0], [0], [1], [0, 0, 1, 1], [], []>} : vector<16x128xbf16>, vector<128x128xbf16>, vector<16x128xf32> -> vector<16x128xf32>
    %c0_79 = arith.constant 0 : index
    %c0_80 = arith.constant 0 : index
    %c0_81 = arith.constant 0 : index
    %242 = vector.load %arg15[%c0_79, %c0_80, %c0_81] : memref<1x1x128xf32, #tpu.memory_space<vmem>>, vector<1x1x128xf32>
    %243 = vector.shape_cast %242 : vector<1x1x128xf32> to vector<1x128xf32>
    %244 = vector.broadcast %243 : vector<1x128xf32> to vector<16x128xf32>
    %245 = arith.addf %241, %244 : vector<16x128xf32>
    %246 = arith.addf %134, %245 : vector<16x128xf32>
    %cst_82 = arith.constant dense<0.000000e+00> : vector<16xf32>
    %247 = vector.multi_reduction <add>, %246, %cst_82 [1] : vector<16x128xf32> to vector<16xf32>
    %248 = vector.shape_cast %247 : vector<16xf32> to vector<16x1xf32>
    %cst_83 = arith.constant 1.280000e+02 : f32
    %249 = vector.broadcast %cst_83 : f32 to vector<16x1xf32>
    %250 = arith.divf %248, %249 : vector<16x1xf32>
    %251 = vector.broadcast %250 : vector<16x1xf32> to vector<16x128xf32>
    %252 = arith.subf %246, %251 : vector<16x128xf32>
    %253 = arith.mulf %252, %252 : vector<16x128xf32>
    %cst_84 = arith.constant dense<0.000000e+00> : vector<16xf32>
    %254 = vector.multi_reduction <add>, %253, %cst_84 [1] : vector<16x128xf32> to vector<16xf32>
    %255 = vector.shape_cast %254 : vector<16xf32> to vector<16x1xf32>
    %cst_85 = arith.constant 1.280000e+02 : f32
    %256 = vector.broadcast %cst_85 : f32 to vector<16x1xf32>
    %257 = arith.divf %255, %256 : vector<16x1xf32>
    %258 = vector.broadcast %250 : vector<16x1xf32> to vector<16x128xf32>
    %259 = arith.subf %246, %258 : vector<16x128xf32>
    %cst_86 = arith.constant 9.99999974E-6 : f32
    %260 = vector.broadcast %cst_86 : f32 to vector<16x1xf32>
    %261 = arith.addf %257, %260 : vector<16x1xf32>
    %262 = math.rsqrt %261 : vector<16x1xf32>
    %263 = vector.broadcast %262 : vector<16x1xf32> to vector<16x128xf32>
    %264 = arith.mulf %259, %263 : vector<16x128xf32>
    %c0_87 = arith.constant 0 : index
    %c0_88 = arith.constant 0 : index
    %c0_89 = arith.constant 0 : index
    %265 = vector.load %arg16[%c0_87, %c0_88, %c0_89] : memref<1x1x128xf32, #tpu.memory_space<vmem>>, vector<1x1x128xf32>
    %266 = vector.shape_cast %265 : vector<1x1x128xf32> to vector<1x128xf32>
    %267 = vector.broadcast %266 : vector<1x128xf32> to vector<16x128xf32>
    %268 = arith.mulf %264, %267 : vector<16x128xf32>
    %c0_90 = arith.constant 0 : index
    %c0_91 = arith.constant 0 : index
    %c0_92 = arith.constant 0 : index
    %269 = vector.load %arg17[%c0_90, %c0_91, %c0_92] : memref<1x1x128xf32, #tpu.memory_space<vmem>>, vector<1x1x128xf32>
    %270 = vector.shape_cast %269 : vector<1x1x128xf32> to vector<1x128xf32>
    %271 = vector.broadcast %270 : vector<1x128xf32> to vector<16x128xf32>
    %272 = arith.addf %268, %271 : vector<16x128xf32>
    %273 = arith.truncf %272 : vector<16x128xf32> to vector<16x128xbf16>
    %c0_93 = arith.constant 0 : index
    %c0_94 = arith.constant 0 : index
    %c0_95 = arith.constant 0 : index
    %274 = vector.load %arg18[%c0_93, %c0_94, %c0_95] : memref<1x128x256xbf16, #tpu.memory_space<vmem>>, vector<1x128x256xbf16>
    %275 = vector.shape_cast %274 : vector<1x128x256xbf16> to vector<128x256xbf16>
    %cst_96 = arith.constant dense<0.000000e+00> : vector<16x256xf32>
    %276 = tpu.matmul %273, %275, %cst_96 {dimension_numbers = #tpu.dot_dimension_numbers<[1], [0], [0], [1], [0, 0, 1, 1], [], []>} : vector<16x128xbf16>, vector<128x256xbf16>, vector<16x256xf32> -> vector<16x256xf32>
    %c0_97 = arith.constant 0 : index
    %c0_98 = arith.constant 0 : index
    %c0_99 = arith.constant 0 : index
    %277 = vector.load %arg19[%c0_97, %c0_98, %c0_99] : memref<1x1x256xf32, #tpu.memory_space<vmem>>, vector<1x1x256xf32>
    %278 = vector.shape_cast %277 : vector<1x1x256xf32> to vector<1x256xf32>
    %279 = vector.broadcast %278 : vector<1x256xf32> to vector<16x256xf32>
    %280 = arith.addf %276, %279 : vector<16x256xf32>
    %cst_100 = arith.constant 0.000000e+00 : f32
    %281 = vector.broadcast %cst_100 : f32 to vector<16x256xf32>
    %282 = arith.maximumf %280, %281 : vector<16x256xf32>
    %283 = arith.truncf %282 : vector<16x256xf32> to vector<16x256xbf16>
    %c0_101 = arith.constant 0 : index
    %c0_102 = arith.constant 0 : index
    %c0_103 = arith.constant 0 : index
    %284 = vector.load %arg20[%c0_101, %c0_102, %c0_103] : memref<1x256x128xbf16, #tpu.memory_space<vmem>>, vector<1x256x128xbf16>
    %285 = vector.shape_cast %284 : vector<1x256x128xbf16> to vector<256x128xbf16>
    %cst_104 = arith.constant dense<0.000000e+00> : vector<16x128xf32>
    %286 = tpu.matmul %283, %285, %cst_104 {dimension_numbers = #tpu.dot_dimension_numbers<[1], [0], [0], [1], [0, 0, 1, 1], [], []>} : vector<16x256xbf16>, vector<256x128xbf16>, vector<16x128xf32> -> vector<16x128xf32>
    %c0_105 = arith.constant 0 : index
    %c0_106 = arith.constant 0 : index
    %c0_107 = arith.constant 0 : index
    %287 = vector.load %arg21[%c0_105, %c0_106, %c0_107] : memref<1x1x128xf32, #tpu.memory_space<vmem>>, vector<1x1x128xf32>
    %288 = vector.shape_cast %287 : vector<1x1x128xf32> to vector<1x128xf32>
    %289 = vector.broadcast %288 : vector<1x128xf32> to vector<16x128xf32>
    %290 = arith.addf %286, %289 : vector<16x128xf32>
    %291 = arith.addf %272, %290 : vector<16x128xf32>
    %cst_108 = arith.constant dense<0.000000e+00> : vector<16xf32>
    %292 = vector.multi_reduction <add>, %291, %cst_108 [1] : vector<16x128xf32> to vector<16xf32>
    %293 = vector.shape_cast %292 : vector<16xf32> to vector<16x1xf32>
    %cst_109 = arith.constant 1.280000e+02 : f32
    %294 = vector.broadcast %cst_109 : f32 to vector<16x1xf32>
    %295 = arith.divf %293, %294 : vector<16x1xf32>
    %296 = vector.broadcast %295 : vector<16x1xf32> to vector<16x128xf32>
    %297 = arith.subf %291, %296 : vector<16x128xf32>
    %298 = arith.mulf %297, %297 : vector<16x128xf32>
    %cst_110 = arith.constant dense<0.000000e+00> : vector<16xf32>
    %299 = vector.multi_reduction <add>, %298, %cst_110 [1] : vector<16x128xf32> to vector<16xf32>
    %300 = vector.shape_cast %299 : vector<16xf32> to vector<16x1xf32>
    %cst_111 = arith.constant 1.280000e+02 : f32
    %301 = vector.broadcast %cst_111 : f32 to vector<16x1xf32>
    %302 = arith.divf %300, %301 : vector<16x1xf32>
    %303 = vector.broadcast %295 : vector<16x1xf32> to vector<16x128xf32>
    %304 = arith.subf %291, %303 : vector<16x128xf32>
    %cst_112 = arith.constant 9.99999974E-6 : f32
    %305 = vector.broadcast %cst_112 : f32 to vector<16x1xf32>
    %306 = arith.addf %302, %305 : vector<16x1xf32>
    %307 = math.rsqrt %306 : vector<16x1xf32>
    %308 = vector.broadcast %307 : vector<16x1xf32> to vector<16x128xf32>
    %309 = arith.mulf %304, %308 : vector<16x128xf32>
    %c0_113 = arith.constant 0 : index
    %c0_114 = arith.constant 0 : index
    %c0_115 = arith.constant 0 : index
    %310 = vector.load %arg22[%c0_113, %c0_114, %c0_115] : memref<1x1x128xf32, #tpu.memory_space<vmem>>, vector<1x1x128xf32>
    %311 = vector.shape_cast %310 : vector<1x1x128xf32> to vector<1x128xf32>
    %312 = vector.broadcast %311 : vector<1x128xf32> to vector<16x128xf32>
    %313 = arith.mulf %309, %312 : vector<16x128xf32>
    %c0_116 = arith.constant 0 : index
    %c0_117 = arith.constant 0 : index
    %c0_118 = arith.constant 0 : index
    %314 = vector.load %arg23[%c0_116, %c0_117, %c0_118] : memref<1x1x128xf32, #tpu.memory_space<vmem>>, vector<1x1x128xf32>
    %315 = vector.shape_cast %314 : vector<1x1x128xf32> to vector<1x128xf32>
    %316 = vector.broadcast %315 : vector<1x128xf32> to vector<16x128xf32>
    %317 = arith.addf %313, %316 : vector<16x128xf32>
    %c0_119 = arith.constant 0 : index
    %c0_120 = arith.constant 0 : index
    %318 = vector.load %arg27[%c0_119, %c0_120] : memref<16x128xf32, #tpu.memory_space<vmem>>, vector<16x128xf32>
    tpu.vector_store %arg27[%c0_119, %c0_120], %317 {strides = array<i32>} : memref<16x128xf32, #tpu.memory_space<vmem>>, vector<16x128xf32>,
    %c1_i32 = arith.constant 1 : i32
    %319 = arith.cmpi eq, %arg1, %c1_i32 : i32
    %320 = arith.extui %319 : i1 to i32
    %c0_i32_121 = arith.constant 0 : i32
    %321 = arith.cmpi ne, %320, %c0_i32_121 : i32
    scf.if %321 {
      %cst_122 = arith.constant dense<0.000000e+00> : vector<16xf32>
      %322 = vector.multi_reduction <add>, %317, %cst_122 [1] : vector<16x128xf32> to vector<16xf32>
      %323 = vector.shape_cast %322 : vector<16xf32> to vector<16x1xf32>
      %cst_123 = arith.constant 1.280000e+02 : f32
      %324 = vector.broadcast %cst_123 : f32 to vector<16x1xf32>
      %325 = arith.divf %323, %324 : vector<16x1xf32>
      %326 = vector.broadcast %325 : vector<16x1xf32> to vector<16x128xf32>
      %327 = arith.subf %317, %326 : vector<16x128xf32>
      %328 = arith.mulf %327, %327 : vector<16x128xf32>
      %cst_124 = arith.constant dense<0.000000e+00> : vector<16xf32>
      %329 = vector.multi_reduction <add>, %328, %cst_124 [1] : vector<16x128xf32> to vector<16xf32>
      %330 = vector.shape_cast %329 : vector<16xf32> to vector<16x1xf32>
      %cst_125 = arith.constant 1.280000e+02 : f32
      %331 = vector.broadcast %cst_125 : f32 to vector<16x1xf32>
      %332 = arith.divf %330, %331 : vector<16x1xf32>
      %333 = vector.broadcast %325 : vector<16x1xf32> to vector<16x128xf32>
      %334 = arith.subf %317, %333 : vector<16x128xf32>
      %cst_126 = arith.constant 9.99999974E-6 : f32
      %335 = vector.broadcast %cst_126 : f32 to vector<16x1xf32>
      %336 = arith.addf %332, %335 : vector<16x1xf32>
      %337 = math.rsqrt %336 : vector<16x1xf32>
      %338 = vector.broadcast %337 : vector<16x1xf32> to vector<16x128xf32>
      %339 = arith.mulf %334, %338 : vector<16x128xf32>
      %c0_127 = arith.constant 0 : index
      %c0_128 = arith.constant 0 : index
      %340 = vector.load %arg24[%c0_127, %c0_128] : memref<1x128xf32, #tpu.memory_space<vmem>>, vector<1x128xf32>
      %341 = vector.broadcast %340 : vector<1x128xf32> to vector<16x128xf32>
      %342 = arith.mulf %339, %341 : vector<16x128xf32>
      %c0_129 = arith.constant 0 : index
      %c0_130 = arith.constant 0 : index
      %343 = vector.load %arg25[%c0_129, %c0_130] : memref<1x128xf32, #tpu.memory_space<vmem>>, vector<1x128xf32>
      %344 = vector.broadcast %343 : vector<1x128xf32> to vector<16x128xf32>
      %345 = arith.addf %342, %344 : vector<16x128xf32>
      %346 = vector.shape_cast %345 : vector<16x128xf32> to vector<2x8x128xf32>
      %c0_131 = arith.constant 0 : index
      %c0_132 = arith.constant 0 : index
      %c0_133 = arith.constant 0 : index
      %347 = vector.load %arg26[%c0_131, %c0_132, %c0_133] : memref<2x8x128xf32, #tpu.memory_space<vmem>>, vector<2x8x128xf32>
      tpu.vector_store %arg26[%c0_131, %c0_132, %c0_133], %346 {strides = array<i32>} : memref<2x8x128xf32, #tpu.memory_space<vmem>>, vector<2x8x128xf32>,
    } else {
    }
    return
  }
  func.func @transform_0(%arg0: i32, %arg1: i32) -> (i32, i32, i32) {
    %c0_i32 = arith.constant 0 : i32
    %c0_i32_0 = arith.constant 0 : i32
    %c0_i32_1 = arith.constant 0 : i32
    return %arg0, %c0_i32, %c0_i32_0 : i32, i32, i32
  }
  func.func @transform_1(%arg0: i32, %arg1: i32) -> (i32, i32, i32) {
    %c0_i32 = arith.constant 0 : i32
    %c0_i32_0 = arith.constant 0 : i32
    %c0_i32_1 = arith.constant 0 : i32
    return %arg0, %c0_i32, %c0_i32_0 : i32, i32, i32
  }
  func.func @transform_2(%arg0: i32, %arg1: i32) -> (i32, i32, i32) {
    %c0_i32 = arith.constant 0 : i32
    %c0_i32_0 = arith.constant 0 : i32
    %c0_i32_1 = arith.constant 0 : i32
    return %arg1, %c0_i32, %c0_i32_0 : i32, i32, i32
  }
  func.func @transform_3(%arg0: i32, %arg1: i32) -> (i32, i32, i32) {
    %c0_i32 = arith.constant 0 : i32
    %c0_i32_0 = arith.constant 0 : i32
    %c0_i32_1 = arith.constant 0 : i32
    return %arg1, %c0_i32, %c0_i32_0 : i32, i32, i32
  }
  func.func @transform_4(%arg0: i32, %arg1: i32) -> (i32, i32, i32) {
    %c0_i32 = arith.constant 0 : i32
    %c0_i32_0 = arith.constant 0 : i32
    %c0_i32_1 = arith.constant 0 : i32
    return %arg1, %c0_i32, %c0_i32_0 : i32, i32, i32
  }
  func.func @transform_5(%arg0: i32, %arg1: i32) -> (i32, i32, i32) {
    %c0_i32 = arith.constant 0 : i32
    %c0_i32_0 = arith.constant 0 : i32
    %c0_i32_1 = arith.constant 0 : i32
    return %arg1, %c0_i32, %c0_i32_0 : i32, i32, i32
  }
  func.func @transform_6(%arg0: i32, %arg1: i32) -> (i32, i32, i32) {
    %c0_i32 = arith.constant 0 : i32
    %c0_i32_0 = arith.constant 0 : i32
    %c0_i32_1 = arith.constant 0 : i32
    return %arg1, %c0_i32, %c0_i32_0 : i32, i32, i32
  }
  func.func @transform_7(%arg0: i32, %arg1: i32) -> (i32, i32, i32) {
    %c0_i32 = arith.constant 0 : i32
    %c0_i32_0 = arith.constant 0 : i32
    %c0_i32_1 = arith.constant 0 : i32
    return %arg1, %c0_i32, %c0_i32_0 : i32, i32, i32
  }
  func.func @transform_8(%arg0: i32, %arg1: i32) -> (i32, i32, i32) {
    %c0_i32 = arith.constant 0 : i32
    %c0_i32_0 = arith.constant 0 : i32
    %c0_i32_1 = arith.constant 0 : i32
    return %arg1, %c0_i32, %c0_i32_0 : i32, i32, i32
  }
  func.func @transform_9(%arg0: i32, %arg1: i32) -> (i32, i32, i32) {
    %c0_i32 = arith.constant 0 : i32
    %c0_i32_0 = arith.constant 0 : i32
    %c0_i32_1 = arith.constant 0 : i32
    return %arg1, %c0_i32, %c0_i32_0 : i32, i32, i32
  }
  func.func @transform_10(%arg0: i32, %arg1: i32) -> (i32, i32, i32) {
    %c0_i32 = arith.constant 0 : i32
    %c0_i32_0 = arith.constant 0 : i32
    %c0_i32_1 = arith.constant 0 : i32
    return %arg1, %c0_i32, %c0_i32_0 : i32, i32, i32
  }
  func.func @transform_11(%arg0: i32, %arg1: i32) -> (i32, i32, i32) {
    %c0_i32 = arith.constant 0 : i32
    %c0_i32_0 = arith.constant 0 : i32
    %c0_i32_1 = arith.constant 0 : i32
    return %arg1, %c0_i32, %c0_i32_0 : i32, i32, i32
  }
  func.func @transform_12(%arg0: i32, %arg1: i32) -> (i32, i32, i32) {
    %c0_i32 = arith.constant 0 : i32
    %c0_i32_0 = arith.constant 0 : i32
    %c0_i32_1 = arith.constant 0 : i32
    return %arg1, %c0_i32, %c0_i32_0 : i32, i32, i32
  }
  func.func @transform_13(%arg0: i32, %arg1: i32) -> (i32, i32, i32) {
    %c0_i32 = arith.constant 0 : i32
    %c0_i32_0 = arith.constant 0 : i32
    %c0_i32_1 = arith.constant 0 : i32
    return %arg1, %c0_i32, %c0_i32_0 : i32, i32, i32
  }
  func.func @transform_14(%arg0: i32, %arg1: i32) -> (i32, i32, i32) {
    %c0_i32 = arith.constant 0 : i32
    %c0_i32_0 = arith.constant 0 : i32
    %c0_i32_1 = arith.constant 0 : i32
    return %arg1, %c0_i32, %c0_i32_0 : i32, i32, i32
  }
  func.func @transform_15(%arg0: i32, %arg1: i32) -> (i32, i32, i32) {
    %c0_i32 = arith.constant 0 : i32
    %c0_i32_0 = arith.constant 0 : i32
    %c0_i32_1 = arith.constant 0 : i32
    return %arg1, %c0_i32, %c0_i32_0 : i32, i32, i32
  }
  func.func @transform_16(%arg0: i32, %arg1: i32) -> (i32, i32, i32) {
    %c0_i32 = arith.constant 0 : i32
    %c0_i32_0 = arith.constant 0 : i32
    %c0_i32_1 = arith.constant 0 : i32
    return %arg1, %c0_i32, %c0_i32_0 : i32, i32, i32
  }
  func.func @transform_17(%arg0: i32, %arg1: i32) -> (i32, i32, i32) {
    %c0_i32 = arith.constant 0 : i32
    %c0_i32_0 = arith.constant 0 : i32
    %c0_i32_1 = arith.constant 0 : i32
    return %arg1, %c0_i32, %c0_i32_0 : i32, i32, i32
  }
  func.func @transform_18(%arg0: i32, %arg1: i32) -> (i32, i32, i32) {
    %c0_i32 = arith.constant 0 : i32
    %c0_i32_0 = arith.constant 0 : i32
    %c0_i32_1 = arith.constant 0 : i32
    return %arg1, %c0_i32, %c0_i32_0 : i32, i32, i32
  }
  func.func @transform_19(%arg0: i32, %arg1: i32) -> (i32, i32, i32) {
    %c0_i32 = arith.constant 0 : i32
    %c0_i32_0 = arith.constant 0 : i32
    %c0_i32_1 = arith.constant 0 : i32
    return %arg1, %c0_i32, %c0_i32_0 : i32, i32, i32
  }
  func.func @transform_20(%arg0: i32, %arg1: i32) -> (i32, i32, i32) {
    %c0_i32 = arith.constant 0 : i32
    %c0_i32_0 = arith.constant 0 : i32
    %c0_i32_1 = arith.constant 0 : i32
    return %arg1, %c0_i32, %c0_i32_0 : i32, i32, i32
  }
  func.func @transform_21(%arg0: i32, %arg1: i32) -> (i32, i32, i32) {
    %c0_i32 = arith.constant 0 : i32
    %c0_i32_0 = arith.constant 0 : i32
    %c0_i32_1 = arith.constant 0 : i32
    return %arg1, %c0_i32, %c0_i32_0 : i32, i32, i32
  }
  func.func @transform_22(%arg0: i32, %arg1: i32) -> (i32, i32) {
    %c0_i32 = arith.constant 0 : i32
    %c0_i32_0 = arith.constant 0 : i32
    %c0_i32_1 = arith.constant 0 : i32
    return %c0_i32, %c0_i32_0 : i32, i32
  }
  func.func @transform_23(%arg0: i32, %arg1: i32) -> (i32, i32) {
    %c0_i32 = arith.constant 0 : i32
    %c0_i32_0 = arith.constant 0 : i32
    %c0_i32_1 = arith.constant 0 : i32
    return %c0_i32, %c0_i32_0 : i32, i32
  }
  func.func @transform_24(%arg0: i32, %arg1: i32) -> (i32, i32, i32) {
    %c0_i32 = arith.constant 0 : i32
    %c0_i32_0 = arith.constant 0 : i32
    %c0_i32_1 = arith.constant 0 : i32
    return %arg0, %c0_i32, %c0_i32_0 : i32, i32, i32
  }
}

</mosaic_0001>

<llo_original>
// kernel: decoder_forward.1
$region0: #{decoder_forward.1}
  #allocation0 [shape = 'u32[]', space=smem, size = 0x4, offset = 0x4, fixed_abs, tag = 'smem constant byte address 0x4 - core index']
  #allocation1 [shape = 'u32[144,128]{1,0:T(1,128)}', space=vmem, size = 0x12000, scoped, tag = 'internal scratch']
  #allocation2 [shape = 'f32[16,128]{1,0:T(8,128)}', space=vmem, size = 0x2000, scoped, tag = 'scratch operand']
  %s0 = inlined_call_operand.vmem [shape: f32[2,8,128], index: 0, kind: input, shape index: {}]
  %s1 = inlined_call_operand.vmem [shape: f32[2,16,128], index: 1, kind: input, shape index: {}]
  %s2 = inlined_call_operand.hbm [shape: bf16[2,128,384], index: 2, kind: input, shape index: {}]
  %s3 = inlined_call_operand.vmem [shape: f32[2,1,384], index: 3, kind: input, shape index: {}]
  %s4 = inlined_call_operand.hbm [shape: bf16[2,128,128], index: 4, kind: input, shape index: {}]
  %s5 = inlined_call_operand.vmem [shape: f32[2,1,128], index: 5, kind: input, shape index: {}]
  %s6 = inlined_call_operand.hbm [shape: f32[2,1,128], index: 6, kind: input, shape index: {}]
  %s7 = inlined_call_operand.hbm [shape: f32[2,1,128], index: 7, kind: input, shape index: {}]
  %s8 = inlined_call_operand.hbm [shape: bf16[2,128,128], index: 8, kind: input, shape index: {}]
  %s9 = inlined_call_operand.hbm [shape: f32[2,1,128], index: 9, kind: input, shape index: {}]
  %s10 = inlined_call_operand.vmem [shape: bf16[2,128,256], index: 10, kind: input, shape index: {}]
  %s11 = inlined_call_operand.vmem [shape: f32[2,1,256], index: 11, kind: input, shape index: {}]
  %s12 = inlined_call_operand.hbm [shape: bf16[2,128,128], index: 12, kind: input, shape index: {}]
  %s13 = inlined_call_operand.hbm [shape: f32[2,1,128], index: 13, kind: input, shape index: {}]
  %s14 = inlined_call_operand.hbm [shape: f32[2,1,128], index: 14, kind: input, shape index: {}]
  %s15 = inlined_call_operand.hbm [shape: f32[2,1,128], index: 15, kind: input, shape index: {}]
  %s16 = inlined_call_operand.hbm [shape: bf16[2,128,256], index: 16, kind: input, shape index: {}]
  %s17 = inlined_call_operand.vmem [shape: f32[2,1,256], index: 17, kind: input, shape index: {}]
  %s18 = inlined_call_operand.hbm [shape: bf16[2,256,128], index: 18, kind: input, shape index: {}]
  %s19 = inlined_call_operand.hbm [shape: f32[2,1,128], index: 19, kind: input, shape index: {}]
  %s20 = inlined_call_operand.hbm [shape: f32[2,1,128], index: 20, kind: input, shape index: {}]
  %s21 = inlined_call_operand.hbm [shape: f32[2,1,128], index: 21, kind: input, shape index: {}]
  %s22 = inlined_call_operand.hbm [shape: f32[1,128], index: 22, kind: input, shape index: {}]
  %s23 = inlined_call_operand.hbm [shape: f32[1,128], index: 23, kind: input, shape index: {}]
  %s24 = inlined_call_operand.hbm [shape: f32[2,8,128], index: 24, kind: output, shape index: {}]
  %s25 = sld [smem:[#allocation0]]
  $region205: #{decoder_forward.1} parent=0
    _
  %s27 = ssub.s32 1, %s25
  %s28 = scalar_select 0, %s27, %s25
  $region1: #{decoder_forward.1} parent=0
    #allocation3 [shape = 'u8[196608]{0}', space=vmem, size = 0x30000, scoped, tag = 'input window, operand 2']
    #allocation4 [shape = 's32[2]{0}', space=sflag, size = 0x8, scoped, tag = 'scoped memory for decoder_forward.1']
    #allocation5 [shape = 's32[2]{0}', space=sflag, size = 0x8, scoped, tag = 'scoped memory for decoder_forward.1']
    #allocation6 [shape = 'u8[65536]{0}', space=vmem, size = 0x10000, scoped, tag = 'input window, operand 4']
    #allocation7 [shape = 's32[2]{0}', space=sflag, size = 0x8, scoped, tag = 'scoped memory for decoder_forward.1']
    #allocation8 [shape = 'u8[1024]{0}', space=vmem, size = 0x400, scoped, tag = 'input window, operand 6']
    #allocation9 [shape = 'u8[1024]{0}', space=vmem, size = 0x400, scoped, tag = 'input window, operand 7']
    #allocation10 [shape = 's32[2]{0}', space=sflag, size = 0x8, scoped, tag = 'scoped memory for decoder_forward.1']
    #allocation11 [shape = 'u8[65536]{0}', space=vmem, size = 0x10000, scoped, tag = 'input window, operand 8']
    #allocation12 [shape = 'u8[1024]{0}', space=vmem, size = 0x400, scoped, tag = 'input window, operand 9']
    #allocation13 [shape = 's32[2]{0}', space=sflag, size = 0x8, scoped, tag = 'scoped memory for decoder_forward.1']
    #allocation14 [shape = 'u8[65536]{0}', space=vmem, size = 0x10000, scoped, tag = 'input window, operand 12']
    #allocation15 [shape = 'u8[1024]{0}', space=vmem, size = 0x400, scoped, tag = 'input window, operand 13']
    #allocation16 [shape = 's32[2]{0}', space=sflag, size = 0x8, scoped, tag = 'scoped memory for decoder_forward.1']
    #allocation17 [shape = 'u8[1024]{0}', space=vmem, size = 0x400, scoped, tag = 'input window, operand 14']
    #allocation18 [shape = 'u8[1024]{0}', space=vmem, size = 0x400, scoped, tag = 'input window, operand 15']
    #allocation19 [shape = 's32[2]{0}', space=sflag, size = 0x8, scoped, tag = 'scoped memory for decoder_forward.1']
    #allocation20 [shape = 'u8[131072]{0}', space=vmem, size = 0x20000, scoped, tag = 'input window, operand 16']
    #allocation21 [shape = 'u8[131072]{0}', space=vmem, size = 0x20000, scoped, tag = 'input window, operand 18']
    #allocation22 [shape = 's32[2]{0}', space=sflag, size = 0x8, scoped, tag = 'scoped memory for decoder_forward.1']
    #allocation23 [shape = 'u8[1024]{0}', space=vmem, size = 0x400, scoped, tag = 'input window, operand 19']
    #allocation24 [shape = 'u8[1024]{0}', space=vmem, size = 0x400, scoped, tag = 'input window, operand 20']
    #allocation25 [shape = 's32[2]{0}', space=sflag, size = 0x8, scoped, tag = 'scoped memory for decoder_forward.1']
    #allocation26 [shape = 'u8[1024]{0}', space=vmem, size = 0x400, scoped, tag = 'input window, operand 21']
    #allocation27 [shape = 'u8[512]{0}', space=vmem, size = 0x400, scoped, tag = 'input window, operand 22, single buffered']
    #allocation28 [shape = 's32[1]{0}', space=sflag, size = 0x4, scoped, tag = 'scoped memory for decoder_forward.1']
    #allocation29 [shape = 'u8[512]{0}', space=vmem, size = 0x400, scoped, tag = 'input window, operand 23, single buffered']
    #allocation30 [shape = 'u8[8192]{0}', space=vmem, size = 0x2000, scoped, tag = 'output window, operand 0, single buffered']
    %29 = vsyncpa [#allocation4], 0
    %s30 = scalar_lea.sflag [#allocation4], 1
    %31 = vsyncpa %s30, 0
    %32 = vsyncpa [#allocation7], 0
    %s33 = scalar_lea.sflag [#allocation7], 1
    %34 = vsyncpa %s33, 0
    %35 = vsyncpa [#allocation10], 0
    %s36 = scalar_lea.sflag [#allocation10], 1
    %37 = vsyncpa %s36, 0
    %38 = vsyncpa [#allocation13], 0
    %s39 = scalar_lea.sflag [#allocation13], 1
    %40 = vsyncpa %s39, 0
    %41 = vsyncpa [#allocation16], 0
    %s42 = scalar_lea.sflag [#allocation16], 1
    %43 = vsyncpa %s42, 0
    %44 = vsyncpa [#allocation19], 0
    %s45 = scalar_lea.sflag [#allocation19], 1
    %46 = vsyncpa %s45, 0
    %47 = vsyncpa [#allocation22], 0
    %s48 = scalar_lea.sflag [#allocation22], 1
    %49 = vsyncpa %s48, 0
    %50 = vsyncpa [#allocation25], 0
    %s51 = scalar_lea.sflag [#allocation25], 1
    %52 = vsyncpa %s51, 0
    %53 = vsyncpa [#allocation28], 0
    %54 = vsyncpa [#allocation5], 0
    loop: start=0, step=1, limit=4
    $region2: #{decoder_forward.1} parent=1 // loop_pre_header
      _
    $region3: #{decoder_forward.1} parent=1 // loop_header
      %s56 = sphi 0, %s60
      %p57 = scmp.ge.s32.totalorder %s56, 4
      %s63 = sphi 0, %s75
      %s64 = sphi 0, %s71
      %s65 = sphi 0, %s63
      %s66 = sphi 0, %s64
      %s67 = sphi 0, %s65
      %s68 = sphi 0, %s66
      %s78 = sphi 0, %s80
      %s81 = sphi 0, %s78
      %s82 = sphi 0, %s81
      %s98 = sphi 0, %s82
      %s104 = sphi 0, %s106
      %s107 = sphi 0, %s104
      %s108 = sphi 0, %s107
      %s124 = sphi 0, %s108
      %s130 = sphi 0, %s132
      %s133 = sphi 0, %s130
      %s134 = sphi 0, %s133
      %s150 = sphi 0, %s134
      %s156 = sphi 0, %s158
      %s159 = sphi 0, %s156
      %s160 = sphi 0, %s159
      %s176 = sphi 0, %s160
      %s182 = sphi 0, %s184
      %s185 = sphi 0, %s182
      %s186 = sphi 0, %s185
      %s202 = sphi 0, %s186
      %s208 = sphi 0, %s210
      %s211 = sphi 0, %s208
      %s212 = sphi 0, %s211
      %s228 = sphi 0, %s212
      %s234 = sphi 0, %s236
      %s237 = sphi 0, %s234
      %s238 = sphi 0, %s237
      %s254 = sphi 0, %s238
      %s260 = sphi 0, %s262
      %s263 = sphi 0, %s260
      %s264 = sphi 0, %s263
      %s280 = sphi 0, %s264
      %s286 = sphi 0, %s288
      %s289 = sphi 0, %s286
      %s290 = sphi 0, %s289
      %s306 = sphi 0, %s290
      %s312 = sphi 0, %s314
      %s315 = sphi 0, %s312
      %s316 = sphi 0, %s315
      %s332 = sphi 0, %s316
      %s338 = sphi 0, %s340
      %s341 = sphi 0, %s338
      %s342 = sphi 0, %s341
      %s358 = sphi 0, %s342
      %s364 = sphi 0, %s366
      %s367 = sphi 0, %s364
      %s368 = sphi 0, %s367
      %s384 = sphi 0, %s368
      %s390 = sphi 0, %s392
      %s393 = sphi 0, %s390
      %s394 = sphi 0, %s393
      %s410 = sphi 0, %s394
      %s416 = sphi 0, %s418
      %s419 = sphi 0, %s416
      %s420 = sphi 0, %s419
      %s436 = sphi 0, %s420
      %s442 = sphi 0, %s444
      %s445 = sphi 0, %s442
      %s446 = sphi 0, %s445
      %s462 = sphi 0, %s446
      %s468 = sphi 0, %s470
      %s471 = sphi 0, %s468
      %s472 = sphi 0, %s471
      %s488 = sphi 0, %s472
      %s494 = sphi 0, %s496
      %s497 = sphi 0, %s494
      %s498 = sphi 0, %s497
      %s514 = sphi 0, %s498
      %s520 = sphi 0, %s522
      %s523 = sphi 0, %s520
      %s524 = sphi 0, %s523
      %s540 = sphi 0, %s524
      %s546 = sphi 0, %s548
      %s549 = sphi 0, %s546
      %s550 = sphi 0, %s549
      %s566 = sphi 0, %s550
      %s572 = sphi 0, %s574
      %s575 = sphi 0, %s572
      %s576 = sphi 0, %s575
      %s592 = sphi 0, %s576
      %s598 = sphi 0, %s600
      %s601 = sphi 0, %s598
      %s602 = sphi 0, %s601
      %s618 = sphi 0, %s602
      %s624 = sphi 0, %s626
      %s627 = sphi 0, %s624
      %s628 = sphi 0, %s627
      %s644 = sphi 0, %s628
      %s648 = sphi 0, %s648
      %s650 = sphi 0, %s648
      %s651 = sphi 0, %s650
      %s665 = sphi 0, %s651
      %s669 = sphi 0, %s669
      %s671 = sphi 0, %s669
      %s672 = sphi 0, %s671
      %s686 = sphi 0, %s672
      %s692 = sphi 0, %s694
      %s695 = sphi 0, %s692
      %s696 = sphi 0, %s695
      %s712 = sphi 0, %s696
    $region4: #{decoder_forward.1} parent=1 // loop_header_branch
      %59 = sbr.rel (%p57) target = $region8
    $region5: #{decoder_forward.1} parent=1 // loop_body
      %s61 = ssub.s32 %s56, 1
      %s62 = ssub.s32 %s56, 2
      %s69 = sadd.s32 1, %s64
      %p70 = scmp.ge.s32.totalorder %s69, 2
      %s71 = scalar_select %p70, 0, %s69
      %s72 = sadd.s32 1, %s63
      %s73 = scalar_select %p70, %s72, %s63
      %p74 = scmp.ge.s32.totalorder %s73, 1
      %s75 = scalar_select %p74, 0, %s73
      %s76 = ssub.s32 %s63, %s75
      %p77 = scmp.eq.s32.totalorder %s76, 0
      %s79 = sadd.s32 %s78, 1
      %s80 = scalar_select %p77, %s78, %s79
      %p83 = pneg %p77
      %p84 = scmp.eq.s32.totalorder %s56, 1
      %p85 = por %p83, %p84
      %p86 = scmp.ne.s32.totalorder %s78, %s81
      %p87 = scmp.eq.s32.totalorder %s56, 0
      %p88 = por %p86, %p87
      %p89 = scmp.ne.s32.totalorder %s78, %s81
      %p90 = scmp.eq.s32.totalorder %s61, 1
      %p91 = por %p89, %p90
      %p92 = scmp.ne.s32.totalorder %s81, %s82
      %p93 = scmp.eq.s32.totalorder %s61, 0
      %p94 = por %p92, %p93
      %p95 = scmp.ne.s32.totalorder %s81, %s82
      %p96 = scmp.eq.s32.totalorder %s62, 1
      %p97 = por %p95, %p96
      %p99 = scmp.ne.s32.totalorder %s82, %s98
      %p100 = scmp.eq.s32.totalorder %s62, 0
      %p101 = por %p99, %p100
      %s102 = ssub.s32 %s63, %s75
      %p103 = scmp.eq.s32.totalorder %s102, 0
      %s105 = sadd.s32 %s104, 1
      %s106 = scalar_select %p103, %s104, %s105
      %p109 = pneg %p103
      %p110 = scmp.eq.s32.totalorder %s56, 1
      %p111 = por %p109, %p110
      %p112 = scmp.ne.s32.totalorder %s104, %s107
      %p113 = scmp.eq.s32.totalorder %s56, 0
      %p114 = por %p112, %p113
      %p115 = scmp.ne.s32.totalorder %s104, %s107
      %p116 = scmp.eq.s32.totalorder %s61, 1
      %p117 = por %p115, %p116
      %p118 = scmp.ne.s32.totalorder %s107, %s108
      %p119 = scmp.eq.s32.totalorder %s61, 0
      %p120 = por %p118, %p119
      %p121 = scmp.ne.s32.totalorder %s107, %s108
      %p122 = scmp.eq.s32.totalorder %s62, 1
      %p123 = por %p121, %p122
      %p125 = scmp.ne.s32.totalorder %s108, %s124
      %p126 = scmp.eq.s32.totalorder %s62, 0
      %p127 = por %p125, %p126
      %s128 = ssub.s32 %s64, %s71
      %p129 = scmp.eq.s32.totalorder %s128, 0
      %s131 = sadd.s32 %s130, 1
      %s132 = scalar_select %p129, %s130, %s131
      %p135 = pneg %p129
      %p136 = scmp.eq.s32.totalorder %s56, 1
      %p137 = por %p135, %p136
      %p138 = scmp.ne.s32.totalorder %s130, %s133
      %p139 = scmp.eq.s32.totalorder %s56, 0
      %p140 = por %p138, %p139
      %p141 = scmp.ne.s32.totalorder %s130, %s133
      %p142 = scmp.eq.s32.totalorder %s61, 1
      %p143 = por %p141, %p142
      %p144 = scmp.ne.s32.totalorder %s133, %s134
      %p145 = scmp.eq.s32.totalorder %s61, 0
      %p146 = por %p144, %p145
      %p147 = scmp.ne.s32.totalorder %s133, %s134
      %p148 = scmp.eq.s32.totalorder %s62, 1
      %p149 = por %p147, %p148
      %p151 = scmp.ne.s32.totalorder %s134, %s150
      %p152 = scmp.eq.s32.totalorder %s62, 0
      %p153 = por %p151, %p152
      %s154 = ssub.s32 %s64, %s71
      %p155 = scmp.eq.s32.totalorder %s154, 0
      %s157 = sadd.s32 %s156, 1
      %s158 = scalar_select %p155, %s156, %s157
      %p161 = pneg %p155
      %p162 = scmp.eq.s32.totalorder %s56, 1
      %p163 = por %p161, %p162
      %p164 = scmp.ne.s32.totalorder %s156, %s159
      %p165 = scmp.eq.s32.totalorder %s56, 0
      %p166 = por %p164, %p165
      %p167 = scmp.ne.s32.totalorder %s156, %s159
      %p168 = scmp.eq.s32.totalorder %s61, 1
      %p169 = por %p167, %p168
      %p170 = scmp.ne.s32.totalorder %s159, %s160
      %p171 = scmp.eq.s32.totalorder %s61, 0
      %p172 = por %p170, %p171
      %p173 = scmp.ne.s32.totalorder %s159, %s160
      %p174 = scmp.eq.s32.totalorder %s62, 1
      %p175 = por %p173, %p174
      %p177 = scmp.ne.s32.totalorder %s160, %s176
      %p178 = scmp.eq.s32.totalorder %s62, 0
      %p179 = por %p177, %p178
      %s180 = ssub.s32 %s64, %s71
      %p181 = scmp.eq.s32.totalorder %s180, 0
      %s183 = sadd.s32 %s182, 1
      %s184 = scalar_select %p181, %s182, %s183
      %p187 = pneg %p181
      %p188 = scmp.eq.s32.totalorder %s56, 1
      %p189 = por %p187, %p188
      %p190 = scmp.ne.s32.totalorder %s182, %s185
      %p191 = scmp.eq.s32.totalorder %s56, 0
      %p192 = por %p190, %p191
      %p193 = scmp.ne.s32.totalorder %s182, %s185
      %p194 = scmp.eq.s32.totalorder %s61, 1
      %p195 = por %p193, %p194
      %p196 = scmp.ne.s32.totalorder %s185, %s186
      %p197 = scmp.eq.s32.totalorder %s61, 0
      %p198 = por %p196, %p197
      %p199 = scmp.ne.s32.totalorder %s185, %s186
      %p200 = scmp.eq.s32.totalorder %s62, 1
      %p201 = por %p199, %p200
      %p203 = scmp.ne.s32.totalorder %s186, %s202
      %p204 = scmp.eq.s32.totalorder %s62, 0
      %p205 = por %p203, %p204
      %s206 = ssub.s32 %s64, %s71
      %p207 = scmp.eq.s32.totalorder %s206, 0
      %s209 = sadd.s32 %s208, 1
      %s210 = scalar_select %p207, %s208, %s209
      %p213 = pneg %p207
      %p214 = scmp.eq.s32.totalorder %s56, 1
      %p215 = por %p213, %p214
      %p216 = scmp.ne.s32.totalorder %s208, %s211
      %p217 = scmp.eq.s32.totalorder %s56, 0
      %p218 = por %p216, %p217
      %p219 = scmp.ne.s32.totalorder %s208, %s211
      %p220 = scmp.eq.s32.totalorder %s61, 1
      %p221 = por %p219, %p220
      %p222 = scmp.ne.s32.totalorder %s211, %s212
      %p223 = scmp.eq.s32.totalorder %s61, 0
      %p224 = por %p222, %p223
      %p225 = scmp.ne.s32.totalorder %s211, %s212
      %p226 = scmp.eq.s32.totalorder %s62, 1
      %p227 = por %p225, %p226
      %p229 = scmp.ne.s32.totalorder %s212, %s228
      %p230 = scmp.eq.s32.totalorder %s62, 0
      %p231 = por %p229, %p230
      %s232 = ssub.s32 %s64, %s71
      %p233 = scmp.eq.s32.totalorder %s232, 0
      %s235 = sadd.s32 %s234, 1
      %s236 = scalar_select %p233, %s234, %s235
      %p239 = pneg %p233
      %p240 = scmp.eq.s32.totalorder %s56, 1
      %p241 = por %p239, %p240
      %p242 = scmp.ne.s32.totalorder %s234, %s237
      %p243 = scmp.eq.s32.totalorder %s56, 0
      %p244 = por %p242, %p243
      %p245 = scmp.ne.s32.totalorder %s234, %s237
      %p246 = scmp.eq.s32.totalorder %s61, 1
      %p247 = por %p245, %p246
      %p248 = scmp.ne.s32.totalorder %s237, %s238
      %p249 = scmp.eq.s32.totalorder %s61, 0
      %p250 = por %p248, %p249
      %p251 = scmp.ne.s32.totalorder %s237, %s238
      %p252 = scmp.eq.s32.totalorder %s62, 1
      %p253 = por %p251, %p252
      %p255 = scmp.ne.s32.totalorder %s238, %s254
      %p256 = scmp.eq.s32.totalorder %s62, 0
      %p257 = por %p255, %p256
      %s258 = ssub.s32 %s64, %s71
      %p259 = scmp.eq.s32.totalorder %s258, 0
      %s261 = sadd.s32 %s260, 1
      %s262 = scalar_select %p259, %s260, %s261
      %p265 = pneg %p259
      %p266 = scmp.eq.s32.totalorder %s56, 1
      %p267 = por %p265, %p266
      %p268 = scmp.ne.s32.totalorder %s260, %s263
      %p269 = scmp.eq.s32.totalorder %s56, 0
      %p270 = por %p268, %p269
      %p271 = scmp.ne.s32.totalorder %s260, %s263
      %p272 = scmp.eq.s32.totalorder %s61, 1
      %p273 = por %p271, %p272
      %p274 = scmp.ne.s32.totalorder %s263, %s264
      %p275 = scmp.eq.s32.totalorder %s61, 0
      %p276 = por %p274, %p275
      %p277 = scmp.ne.s32.totalorder %s263, %s264
      %p278 = scmp.eq.s32.totalorder %s62, 1
      %p279 = por %p277, %p278
      %p281 = scmp.ne.s32.totalorder %s264, %s280
      %p282 = scmp.eq.s32.totalorder %s62, 0
      %p283 = por %p281, %p282
      %s284 = ssub.s32 %s64, %s71
      %p285 = scmp.eq.s32.totalorder %s284, 0
      %s287 = sadd.s32 %s286, 1
      %s288 = scalar_select %p285, %s286, %s287
      %p291 = pneg %p285
      %p292 = scmp.eq.s32.totalorder %s56, 1
      %p293 = por %p291, %p292
      %p294 = scmp.ne.s32.totalorder %s286, %s289
      %p295 = scmp.eq.s32.totalorder %s56, 0
      %p296 = por %p294, %p295
      %p297 = scmp.ne.s32.totalorder %s286, %s289
      %p298 = scmp.eq.s32.totalorder %s61, 1
      %p299 = por %p297, %p298
      %p300 = scmp.ne.s32.totalorder %s289, %s290
      %p301 = scmp.eq.s32.totalorder %s61, 0
      %p302 = por %p300, %p301
      %p303 = scmp.ne.s32.totalorder %s289, %s290
      %p304 = scmp.eq.s32.totalorder %s62, 1
      %p305 = por %p303, %p304
      %p307 = scmp.ne.s32.totalorder %s290, %s306
      %p308 = scmp.eq.s32.totalorder %s62, 0
      %p309 = por %p307, %p308
      %s310 = ssub.s32 %s64, %s71
      %p311 = scmp.eq.s32.totalorder %s310, 0
      %s313 = sadd.s32 %s312, 1
      %s314 = scalar_select %p311, %s312, %s313
      %p317 = pneg %p311
      %p318 = scmp.eq.s32.totalorder %s56, 1
      %p319 = por %p317, %p318
      %p320 = scmp.ne.s32.totalorder %s312, %s315
      %p321 = scmp.eq.s32.totalorder %s56, 0
      %p322 = por %p320, %p321
      %p323 = scmp.ne.s32.totalorder %s312, %s315
      %p324 = scmp.eq.s32.totalorder %s61, 1
      %p325 = por %p323, %p324
      %p326 = scmp.ne.s32.totalorder %s315, %s316
      %p327 = scmp.eq.s32.totalorder %s61, 0
      %p328 = por %p326, %p327
      %p329 = scmp.ne.s32.totalorder %s315, %s316
      %p330 = scmp.eq.s32.totalorder %s62, 1
      %p331 = por %p329, %p330
      %p333 = scmp.ne.s32.totalorder %s316, %s332
      %p334 = scmp.eq.s32.totalorder %s62, 0
      %p335 = por %p333, %p334
      %s336 = ssub.s32 %s64, %s71
      %p337 = scmp.eq.s32.totalorder %s336, 0
      %s339 = sadd.s32 %s338, 1
      %s340 = scalar_select %p337, %s338, %s339
      %p343 = pneg %p337
      %p344 = scmp.eq.s32.totalorder %s56, 1
      %p345 = por %p343, %p344
      %p346 = scmp.ne.s32.totalorder %s338, %s341
      %p347 = scmp.eq.s32.totalorder %s56, 0
      %p348 = por %p346, %p347
      %p349 = scmp.ne.s32.totalorder %s338, %s341
      %p350 = scmp.eq.s32.totalorder %s61, 1
      %p351 = por %p349, %p350
      %p352 = scmp.ne.s32.totalorder %s341, %s342
      %p353 = scmp.eq.s32.totalorder %s61, 0
      %p354 = por %p352, %p353
      %p355 = scmp.ne.s32.totalorder %s341, %s342
      %p356 = scmp.eq.s32.totalorder %s62, 1
      %p357 = por %p355, %p356
      %p359 = scmp.ne.s32.totalorder %s342, %s358
      %p360 = scmp.eq.s32.totalorder %s62, 0
      %p361 = por %p359, %p360
      %s362 = ssub.s32 %s64, %s71
      %p363 = scmp.eq.s32.totalorder %s362, 0
      %s365 = sadd.s32 %s364, 1
      %s366 = scalar_select %p363, %s364, %s365
      %p369 = pneg %p363
      %p370 = scmp.eq.s32.totalorder %s56, 1
      %p371 = por %p369, %p370
      %p372 = scmp.ne.s32.totalorder %s364, %s367
      %p373 = scmp.eq.s32.totalorder %s56, 0
      %p374 = por %p372, %p373
      %p375 = scmp.ne.s32.totalorder %s364, %s367
      %p376 = scmp.eq.s32.totalorder %s61, 1
      %p377 = por %p375, %p376
      %p378 = scmp.ne.s32.totalorder %s367, %s368
      %p379 = scmp.eq.s32.totalorder %s61, 0
      %p380 = por %p378, %p379
      %p381 = scmp.ne.s32.totalorder %s367, %s368
      %p382 = scmp.eq.s32.totalorder %s62, 1
      %p383 = por %p381, %p382
      %p385 = scmp.ne.s32.totalorder %s368, %s384
      %p386 = scmp.eq.s32.totalorder %s62, 0
      %p387 = por %p385, %p386
      %s388 = ssub.s32 %s64, %s71
      %p389 = scmp.eq.s32.totalorder %s388, 0
      %s391 = sadd.s32 %s390, 1
      %s392 = scalar_select %p389, %s390, %s391
      %p395 = pneg %p389
      %p396 = scmp.eq.s32.totalorder %s56, 1
      %p397 = por %p395, %p396
      %p398 = scmp.ne.s32.totalorder %s390, %s393
      %p399 = scmp.eq.s32.totalorder %s56, 0
      %p400 = por %p398, %p399
      %p401 = scmp.ne.s32.totalorder %s390, %s393
      %p402 = scmp.eq.s32.totalorder %s61, 1
      %p403 = por %p401, %p402
      %p404 = scmp.ne.s32.totalorder %s393, %s394
      %p405 = scmp.eq.s32.totalorder %s61, 0
      %p406 = por %p404, %p405
      %p407 = scmp.ne.s32.totalorder %s393, %s394
      %p408 = scmp.eq.s32.totalorder %s62, 1
      %p409 = por %p407, %p408
      %p411 = scmp.ne.s32.totalorder %s394, %s410
      %p412 = scmp.eq.s32.totalorder %s62, 0
      %p413 = por %p411, %p412
      %s414 = ssub.s32 %s64, %s71
      %p415 = scmp.eq.s32.totalorder %s414, 0
      %s417 = sadd.s32 %s416, 1
      %s418 = scalar_select %p415, %s416, %s417
      %p421 = pneg %p415
      %p422 = scmp.eq.s32.totalorder %s56, 1
      %p423 = por %p421, %p422
      %p424 = scmp.ne.s32.totalorder %s416, %s419
      %p425 = scmp.eq.s32.totalorder %s56, 0
      %p426 = por %p424, %p425
      %p427 = scmp.ne.s32.totalorder %s416, %s419
      %p428 = scmp.eq.s32.totalorder %s61, 1
      %p429 = por %p427, %p428
      %p430 = scmp.ne.s32.totalorder %s419, %s420
      %p431 = scmp.eq.s32.totalorder %s61, 0
      %p432 = por %p430, %p431
      %p433 = scmp.ne.s32.totalorder %s419, %s420
      %p434 = scmp.eq.s32.totalorder %s62, 1
      %p435 = por %p433, %p434
      %p437 = scmp.ne.s32.totalorder %s420, %s436
      %p438 = scmp.eq.s32.totalorder %s62, 0
      %p439 = por %p437, %p438
      %s440 = ssub.s32 %s64, %s71
      %p441 = scmp.eq.s32.totalorder %s440, 0
      %s443 = sadd.s32 %s442, 1
      %s444 = scalar_select %p441, %s442, %s443
      %p447 = pneg %p441
      %p448 = scmp.eq.s32.totalorder %s56, 1
      %p449 = por %p447, %p448
      %p450 = scmp.ne.s32.totalorder %s442, %s445
      %p451 = scmp.eq.s32.totalorder %s56, 0
      %p452 = por %p450, %p451
      %p453 = scmp.ne.s32.totalorder %s442, %s445
      %p454 = scmp.eq.s32.totalorder %s61, 1
      %p455 = por %p453, %p454
      %p456 = scmp.ne.s32.totalorder %s445, %s446
      %p457 = scmp.eq.s32.totalorder %s61, 0
      %p458 = por %p456, %p457
      %p459 = scmp.ne.s32.totalorder %s445, %s446
      %p460 = scmp.eq.s32.totalorder %s62, 1
      %p461 = por %p459, %p460
      %p463 = scmp.ne.s32.totalorder %s446, %s462
      %p464 = scmp.eq.s32.totalorder %s62, 0
      %p465 = por %p463, %p464
      %s466 = ssub.s32 %s64, %s71
      %p467 = scmp.eq.s32.totalorder %s466, 0
      %s469 = sadd.s32 %s468, 1
      %s470 = scalar_select %p467, %s468, %s469
      %p473 = pneg %p467
      %p474 = scmp.eq.s32.totalorder %s56, 1
      %p475 = por %p473, %p474
      %p476 = scmp.ne.s32.totalorder %s468, %s471
      %p477 = scmp.eq.s32.totalorder %s56, 0
      %p478 = por %p476, %p477
      %p479 = scmp.ne.s32.totalorder %s468, %s471
      %p480 = scmp.eq.s32.totalorder %s61, 1
      %p481 = por %p479, %p480
      %p482 = scmp.ne.s32.totalorder %s471, %s472
      %p483 = scmp.eq.s32.totalorder %s61, 0
      %p484 = por %p482, %p483
      %p485 = scmp.ne.s32.totalorder %s471, %s472
      %p486 = scmp.eq.s32.totalorder %s62, 1
      %p487 = por %p485, %p486
      %p489 = scmp.ne.s32.totalorder %s472, %s488
      %p490 = scmp.eq.s32.totalorder %s62, 0
      %p491 = por %p489, %p490
      %s492 = ssub.s32 %s64, %s71
      %p493 = scmp.eq.s32.totalorder %s492, 0
      %s495 = sadd.s32 %s494, 1
      %s496 = scalar_select %p493, %s494, %s495
      %p499 = pneg %p493
      %p500 = scmp.eq.s32.totalorder %s56, 1
      %p501 = por %p499, %p500
      %p502 = scmp.ne.s32.totalorder %s494, %s497
      %p503 = scmp.eq.s32.totalorder %s56, 0
      %p504 = por %p502, %p503
      %p505 = scmp.ne.s32.totalorder %s494, %s497
      %p506 = scmp.eq.s32.totalorder %s61, 1
      %p507 = por %p505, %p506
      %p508 = scmp.ne.s32.totalorder %s497, %s498
      %p509 = scmp.eq.s32.totalorder %s61, 0
      %p510 = por %p508, %p509
      %p511 = scmp.ne.s32.totalorder %s497, %s498
      %p512 = scmp.eq.s32.totalorder %s62, 1
      %p513 = por %p511, %p512
      %p515 = scmp.ne.s32.totalorder %s498, %s514
      %p516 = scmp.eq.s32.totalorder %s62, 0
      %p517 = por %p515, %p516
      %s518 = ssub.s32 %s64, %s71
      %p519 = scmp.eq.s32.totalorder %s518, 0
      %s521 = sadd.s32 %s520, 1
      %s522 = scalar_select %p519, %s520, %s521
      %p525 = pneg %p519
      %p526 = scmp.eq.s32.totalorder %s56, 1
      %p527 = por %p525, %p526
      %p528 = scmp.ne.s32.totalorder %s520, %s523
      %p529 = scmp.eq.s32.totalorder %s56, 0
      %p530 = por %p528, %p529
      %p531 = scmp.ne.s32.totalorder %s520, %s523
      %p532 = scmp.eq.s32.totalorder %s61, 1
      %p533 = por %p531, %p532
      %p534 = scmp.ne.s32.totalorder %s523, %s524
      %p535 = scmp.eq.s32.totalorder %s61, 0
      %p536 = por %p534, %p535
      %p537 = scmp.ne.s32.totalorder %s523, %s524
      %p538 = scmp.eq.s32.totalorder %s62, 1
      %p539 = por %p537, %p538
      %p541 = scmp.ne.s32.totalorder %s524, %s540
      %p542 = scmp.eq.s32.totalorder %s62, 0
      %p543 = por %p541, %p542
      %s544 = ssub.s32 %s64, %s71
      %p545 = scmp.eq.s32.totalorder %s544, 0
      %s547 = sadd.s32 %s546, 1
      %s548 = scalar_select %p545, %s546, %s547
      %p551 = pneg %p545
      %p552 = scmp.eq.s32.totalorder %s56, 1
      %p553 = por %p551, %p552
      %p554 = scmp.ne.s32.totalorder %s546, %s549
      %p555 = scmp.eq.s32.totalorder %s56, 0
      %p556 = por %p554, %p555
      %p557 = scmp.ne.s32.totalorder %s546, %s549
      %p558 = scmp.eq.s32.totalorder %s61, 1
      %p559 = por %p557, %p558
      %p560 = scmp.ne.s32.totalorder %s549, %s550
      %p561 = scmp.eq.s32.totalorder %s61, 0
      %p562 = por %p560, %p561
      %p563 = scmp.ne.s32.totalorder %s549, %s550
      %p564 = scmp.eq.s32.totalorder %s62, 1
      %p565 = por %p563, %p564
      %p567 = scmp.ne.s32.totalorder %s550, %s566
      %p568 = scmp.eq.s32.totalorder %s62, 0
      %p569 = por %p567, %p568
      %s570 = ssub.s32 %s64, %s71
      %p571 = scmp.eq.s32.totalorder %s570, 0
      %s573 = sadd.s32 %s572, 1
      %s574 = scalar_select %p571, %s572, %s573
      %p577 = pneg %p571
      %p578 = scmp.eq.s32.totalorder %s56, 1
      %p579 = por %p577, %p578
      %p580 = scmp.ne.s32.totalorder %s572, %s575
      %p581 = scmp.eq.s32.totalorder %s56, 0
      %p582 = por %p580, %p581
      %p583 = scmp.ne.s32.totalorder %s572, %s575
      %p584 = scmp.eq.s32.totalorder %s61, 1
      %p585 = por %p583, %p584
      %p586 = scmp.ne.s32.totalorder %s575, %s576
      %p587 = scmp.eq.s32.totalorder %s61, 0
      %p588 = por %p586, %p587
      %p589 = scmp.ne.s32.totalorder %s575, %s576
      %p590 = scmp.eq.s32.totalorder %s62, 1
      %p591 = por %p589, %p590
      %p593 = scmp.ne.s32.totalorder %s576, %s592
      %p594 = scmp.eq.s32.totalorder %s62, 0
      %p595 = por %p593, %p594
      %s596 = ssub.s32 %s64, %s71
      %p597 = scmp.eq.s32.totalorder %s596, 0
      %s599 = sadd.s32 %s598, 1
      %s600 = scalar_select %p597, %s598, %s599
      %p603 = pneg %p597
      %p604 = scmp.eq.s32.totalorder %s56, 1
      %p605 = por %p603, %p604
      %p606 = scmp.ne.s32.totalorder %s598, %s601
      %p607 = scmp.eq.s32.totalorder %s56, 0
      %p608 = por %p606, %p607
      %p609 = scmp.ne.s32.totalorder %s598, %s601
      %p610 = scmp.eq.s32.totalorder %s61, 1
      %p611 = por %p609, %p610
      %p612 = scmp.ne.s32.totalorder %s601, %s602
      %p613 = scmp.eq.s32.totalorder %s61, 0
      %p614 = por %p612, %p613
      %p615 = scmp.ne.s32.totalorder %s601, %s602
      %p616 = scmp.eq.s32.totalorder %s62, 1
      %p617 = por %p615, %p616
      %p619 = scmp.ne.s32.totalorder %s602, %s618
      %p620 = scmp.eq.s32.totalorder %s62, 0
      %p621 = por %p619, %p620
      %s622 = ssub.s32 %s64, %s71
      %p623 = scmp.eq.s32.totalorder %s622, 0
      %s625 = sadd.s32 %s624, 1
      %s626 = scalar_select %p623, %s624, %s625
      %p629 = pneg %p623
      %p630 = scmp.eq.s32.totalorder %s56, 1
      %p631 = por %p629, %p630
      %p632 = scmp.ne.s32.totalorder %s624, %s627
      %p633 = scmp.eq.s32.totalorder %s56, 0
      %p634 = por %p632, %p633
      %p635 = scmp.ne.s32.totalorder %s624, %s627
      %p636 = scmp.eq.s32.totalorder %s61, 1
      %p637 = por %p635, %p636
      %p638 = scmp.ne.s32.totalorder %s627, %s628
      %p639 = scmp.eq.s32.totalorder %s61, 0
      %p640 = por %p638, %p639
      %p641 = scmp.ne.s32.totalorder %s627, %s628
      %p642 = scmp.eq.s32.totalorder %s62, 1
      %p643 = por %p641, %p642
      %p645 = scmp.ne.s32.totalorder %s628, %s644
      %p646 = scmp.eq.s32.totalorder %s62, 0
      %p647 = por %p645, %p646
      %s649 = sadd.s32 %s648, 1
      %p652 = scmp.eq.s32.totalorder %s56, 1
      %p653 = scmp.ne.s32.totalorder %s648, %s650
      %p654 = scmp.eq.s32.totalorder %s56, 0
      %p655 = por %p653, %p654
      %p656 = scmp.ne.s32.totalorder %s648, %s650
      %p657 = scmp.eq.s32.totalorder %s61, 1
      %p658 = por %p656, %p657
      %p659 = scmp.ne.s32.totalorder %s650, %s651
      %p660 = scmp.eq.s32.totalorder %s61, 0
      %p661 = por %p659, %p660
      %p662 = scmp.ne.s32.totalorder %s650, %s651
      %p663 = scmp.eq.s32.totalorder %s62, 1
      %p664 = por %p662, %p663
      %p666 = scmp.ne.s32.totalorder %s651, %s665
      %p667 = scmp.eq.s32.totalorder %s62, 0
      %p668 = por %p666, %p667
      %s670 = sadd.s32 %s669, 1
      %p673 = scmp.eq.s32.totalorder %s56, 1
      %p674 = scmp.ne.s32.totalorder %s669, %s671
      %p675 = scmp.eq.s32.totalorder %s56, 0
      %p676 = por %p674, %p675
      %p677 = scmp.ne.s32.totalorder %s669, %s671
      %p678 = scmp.eq.s32.totalorder %s61, 1
      %p679 = por %p677, %p678
      %p680 = scmp.ne.s32.totalorder %s671, %s672
      %p681 = scmp.eq.s32.totalorder %s61, 0
      %p682 = por %p680, %p681
      %p683 = scmp.ne.s32.totalorder %s671, %s672
      %p684 = scmp.eq.s32.totalorder %s62, 1
      %p685 = por %p683, %p684
      %p687 = scmp.ne.s32.totalorder %s672, %s686
      %p688 = scmp.eq.s32.totalorder %s62, 0
      %p689 = por %p687, %p688
      %s690 = ssub.s32 %s63, %s75
      %p691 = scmp.eq.s32.totalorder %s690, 0
      %s693 = sadd.s32 %s692, 1
      %s694 = scalar_select %p691, %s692, %s693
      %p697 = pneg %p691
      %p698 = scmp.eq.s32.totalorder %s56, 1
      %p699 = por %p697, %p698
      %p700 = scmp.ne.s32.totalorder %s692, %s695
      %p701 = scmp.eq.s32.totalorder %s56, 0
      %p702 = por %p700, %p701
      %p703 = scmp.ne.s32.totalorder %s692, %s695
      %p704 = scmp.eq.s32.totalorder %s61, 1
      %p705 = por %p703, %p704
      %p706 = scmp.ne.s32.totalorder %s695, %s696
      %p707 = scmp.eq.s32.totalorder %s61, 0
      %p708 = por %p706, %p707
      %p709 = scmp.ne.s32.totalorder %s695, %s696
      %p710 = scmp.eq.s32.totalorder %s62, 1
      %p711 = por %p709, %p710
      %p713 = scmp.ne.s32.totalorder %s696, %s712
      %p714 = scmp.eq.s32.totalorder %s62, 0
      %p715 = por %p713, %p714
      %p716 = scmp.le.s32.totalorder 1, %s56
      %p717 = scmp.lt.s32.totalorder %s56, 3
      %p718 = pnand %p716, %p717
      %p719 = pneg %p718
      // Predicated region
      $region9: #{decoder_forward.1} parent=5 // pred_check
        _
      $region10: #{decoder_forward.1} parent=5 // pred_check_branch
        %721 = sbr.rel (%p718) target = $region12
      $region11: #{decoder_forward.1} parent=5 // pred_region
        %s722 = ssub.s32 %s56, 1
        // Predicated region
        $region13: #{decoder_forward.1} parent=11 // pred_check
          %p723 = pneg %p94
        $region14: #{decoder_forward.1} parent=11 // pred_check_branch
          %725 = sbr.rel (%p723) target = $region16
        $region15: #{decoder_forward.1} parent=11 // pred_region
          %s726 = smul.u32 2, %s65
          %p727 = scmp.lt.s32.totalorder %s726, 1
          %s728 = scalar_select %p727, %s726, 1
          %s729 = smul.addr %s728, 8
          %s730 = scalar_lea.vmem %s0, %s729
          %s731 = smul.u32 2, %s65
        $region16: #{decoder_forward.1} parent=11 // pred_fallthru
          _
        // Predicated region
        $region17: #{decoder_forward.1} parent=11 // pred_check
          %p732 = pneg %p120
        $region18: #{decoder_forward.1} parent=11 // pred_check_branch
          %734 = sbr.rel (%p732) target = $region20
        $region19: #{decoder_forward.1} parent=11 // pred_region
          %s735 = smul.u32 2, %s65
          %p736 = scmp.lt.s32.totalorder %s735, 1
          %s737 = scalar_select %p736, %s735, 1
          %s738 = smul.addr %s737, 2
          %s739 = smul.addr %s738, 8
          %s740 = scalar_lea.vmem %s1, %s739
          %s741 = smul.u32 2, %s65
        $region20: #{decoder_forward.1} parent=11 // pred_fallthru
          _
        // Predicated region
        $region21: #{decoder_forward.1} parent=11 // pred_check
          %p742 = pneg %p661
        $region22: #{decoder_forward.1} parent=11 // pred_check_branch
          %744 = sbr.rel (%p742) target = $region24
        $region23: #{decoder_forward.1} parent=11 // pred_region
          %s746 = ssub.s32 16, 16
          %747 = vsyncadd [#allocation28], %s746
          %s749 = sshll.u32 [#allocation27], 4
          %s750 = int_to_ptr.vmem [resolvable:$true] %s749
          %752 = dma.hbm_to_vmem [thread:$0]  %s22, 16, %s750, [#allocation28]
        $region24: #{decoder_forward.1} parent=11 // pred_fallthru
          _
        // Predicated region
        $region25: #{decoder_forward.1} parent=11 // pred_check
          %p753 = pneg %p682
        $region26: #{decoder_forward.1} parent=11 // pred_check_branch
          %755 = sbr.rel (%p753) target = $region28
        $region27: #{decoder_forward.1} parent=11 // pred_region
          %s757 = ssub.s32 16, 16
          %758 = vsyncadd [#allocation28], %s757
          %s760 = sshll.u32 [#allocation29], 4
          %s761 = int_to_ptr.vmem [resolvable:$true] %s760
          %763 = dma.hbm_to_vmem [thread:$0]  %s23, 16, %s761, [#allocation28]
        $region28: #{decoder_forward.1} parent=11 // pred_fallthru
          _
      $region12: #{decoder_forward.1} parent=5 // pred_fallthru
        _
      %p764 = scmp.lt.s32.totalorder %s56, 2
      // Predicated region
      $region29: #{decoder_forward.1} parent=5 // pred_check
        %p765 = pneg %p764
      $region30: #{decoder_forward.1} parent=5 // pred_check_branch
        %767 = sbr.rel (%p765) target = $region32
      $region31: #{decoder_forward.1} parent=5 // pred_region
        // Predicated region
        $region33: #{decoder_forward.1} parent=31 // pred_check
          %p768 = pneg %p140
        $region34: #{decoder_forward.1} parent=31 // pred_check_branch
          %770 = sbr.rel (%p768) target = $region36
        $region35: #{decoder_forward.1} parent=31 // pred_region
          %s771 = sand.u32 %s130, 1
          %s772 = scalar_lea.sflag [#allocation4], %s771
          %s773 = sand.u32 %s130, 1
          %s774 = smul.addr %s773, 192
          %s775 = scalar_lea.vmem [#allocation3], %s774
          %s777 = ssub.s32 3072, 3072
          %778 = vsyncadd %s772, %s777
          %s779 = smul.addr %s64, 48
          %s780 = smul.addr %s779, 64
          %s781 = scalar_lea.hbm %s2, %s780
          %s782 = sshll.u32 %s775, 4
          %s783 = int_to_ptr.vmem [resolvable:$true] %s782
          %788 = dma.hbm_to_vmem [thread:$0]  %s781, 3072, %s783, %s772, 192, 192, 12
        $region36: #{decoder_forward.1} parent=31 // pred_fallthru
          _
        // Predicated region
        $region37: #{decoder_forward.1} parent=31 // pred_check
          %p789 = pneg %p166
        $region38: #{decoder_forward.1} parent=31 // pred_check_branch
          %791 = sbr.rel (%p789) target = $region40
        $region39: #{decoder_forward.1} parent=31 // pred_region
          %p792 = scmp.lt.s32.totalorder %s64, 1
          %s793 = scalar_select %p792, %s64, 1
          %s794 = smul.addr %s793, 3
          %s795 = scalar_lea.vmem %s3, %s794
        $region40: #{decoder_forward.1} parent=31 // pred_fallthru
          _
        // Predicated region
        $region41: #{decoder_forward.1} parent=31 // pred_check
          %p796 = pneg %p192
        $region42: #{decoder_forward.1} parent=31 // pred_check_branch
          %798 = sbr.rel (%p796) target = $region44
        $region43: #{decoder_forward.1} parent=31 // pred_region
          %s799 = sand.u32 %s56, 1
          %s800 = scalar_lea.sflag [#allocation7], %s799
          %s801 = sand.u32 %s182, 1
          %s802 = smul.addr %s801, 64
          %s803 = scalar_lea.vmem [#allocation6], %s802
          %s805 = ssub.s32 1024, 1024
          %806 = vsyncadd %s800, %s805
          %s807 = smul.addr %s64, 16
          %s808 = smul.addr %s807, 64
          %s809 = scalar_lea.hbm %s4, %s808
          %s810 = sshll.u32 %s803, 4
          %s811 = int_to_ptr.vmem [resolvable:$true] %s810
          %816 = dma.hbm_to_vmem [thread:$0]  %s809, 1024, %s811, %s800, 64, 64, 4
        $region44: #{decoder_forward.1} parent=31 // pred_fallthru
          _
        // Predicated region
        $region45: #{decoder_forward.1} parent=31 // pred_check
          %p817 = pneg %p218
        $region46: #{decoder_forward.1} parent=31 // pred_check_branch
          %819 = sbr.rel (%p817) target = $region48
        $region47: #{decoder_forward.1} parent=31 // pred_region
          %p820 = scmp.lt.s32.totalorder %s64, 1
          %s821 = scalar_select %p820, %s64, 1
          %s822 = scalar_lea.vmem %s5, %s821
        $region48: #{decoder_forward.1} parent=31 // pred_fallthru
          _
        // Predicated region
        $region49: #{decoder_forward.1} parent=31 // pred_check
          %p823 = pneg %p244
        $region50: #{decoder_forward.1} parent=31 // pred_check_branch
          %825 = sbr.rel (%p823) target = $region52
        $region51: #{decoder_forward.1} parent=31 // pred_region
          %s826 = sand.u32 %s56, 1
          %s827 = scalar_lea.sflag [#allocation7], %s826
          %s828 = sand.u32 %s234, 1
          %s829 = scalar_lea.vmem [#allocation8], %s828
          %s831 = ssub.s32 16, 16
          %832 = vsyncadd %s827, %s831
          %s833 = smul.addr %s64, 16
          %s834 = scalar_lea.hbm %s6, %s833
          %s836 = sshll.u32 %s829, 4
          %s837 = int_to_ptr.vmem [resolvable:$true] %s836
          %839 = dma.hbm_to_vmem [thread:$0]  %s834, 16, %s837, %s827
        $region52: #{decoder_forward.1} parent=31 // pred_fallthru
          _
        // Predicated region
        $region53: #{decoder_forward.1} parent=31 // pred_check
          %p840 = pneg %p270
        $region54: #{decoder_forward.1} parent=31 // pred_check_branch
          %842 = sbr.rel (%p840) target = $region56
        $region55: #{decoder_forward.1} parent=31 // pred_region
          %s843 = sand.u32 %s56, 1
          %s844 = scalar_lea.sflag [#allocation10], %s843
          %s845 = sand.u32 %s260, 1
          %s846 = scalar_lea.vmem [#allocation9], %s845
          %s848 = ssub.s32 16, 16
          %849 = vsyncadd %s844, %s848
          %s850 = smul.addr %s64, 16
          %s851 = scalar_lea.hbm %s7, %s850
          %s853 = sshll.u32 %s846, 4
          %s854 = int_to_ptr.vmem [resolvable:$true] %s853
          %856 = dma.hbm_to_vmem [thread:$0]  %s851, 16, %s854, %s844
        $region56: #{decoder_forward.1} parent=31 // pred_fallthru
          _
        // Predicated region
        $region57: #{decoder_forward.1} parent=31 // pred_check
          %p857 = pneg %p296
        $region58: #{decoder_forward.1} parent=31 // pred_check_branch
          %859 = sbr.rel (%p857) target = $region60
        $region59: #{decoder_forward.1} parent=31 // pred_region
          %s860 = sand.u32 %s56, 1
          %s861 = scalar_lea.sflag [#allocation10], %s860
          %s862 = sand.u32 %s286, 1
          %s863 = smul.addr %s862, 64
          %s864 = scalar_lea.vmem [#allocation11], %s863
          %s866 = ssub.s32 1024, 1024
          %867 = vsyncadd %s861, %s866
          %s868 = smul.addr %s64, 16
          %s869 = smul.addr %s868, 64
          %s870 = scalar_lea.hbm %s8, %s869
          %s871 = sshll.u32 %s864, 4
          %s872 = int_to_ptr.vmem [resolvable:$true] %s871
          %877 = dma.hbm_to_vmem [thread:$0]  %s870, 1024, %s872, %s861, 64, 64, 4
        $region60: #{decoder_forward.1} parent=31 // pred_fallthru
          _
        // Predicated region
        $region61: #{decoder_forward.1} parent=31 // pred_check
          %p878 = pneg %p322
        $region62: #{decoder_forward.1} parent=31 // pred_check_branch
          %880 = sbr.rel (%p878) target = $region64
        $region63: #{decoder_forward.1} parent=31 // pred_region
          %s881 = sand.u32 %s56, 1
          %s882 = scalar_lea.sflag [#allocation13], %s881
          %s883 = sand.u32 %s312, 1
          %s884 = scalar_lea.vmem [#allocation12], %s883
          %s886 = ssub.s32 16, 16
          %887 = vsyncadd %s882, %s886
          %s888 = smul.addr %s64, 16
          %s889 = scalar_lea.hbm %s9, %s888
          %s891 = sshll.u32 %s884, 4
          %s892 = int_to_ptr.vmem [resolvable:$true] %s891
          %894 = dma.hbm_to_vmem [thread:$0]  %s889, 16, %s892, %s882
        $region64: #{decoder_forward.1} parent=31 // pred_fallthru
          _
        // Predicated region
        $region65: #{decoder_forward.1} parent=31 // pred_check
          %p895 = pneg %p348
        $region66: #{decoder_forward.1} parent=31 // pred_check_branch
          %897 = sbr.rel (%p895) target = $region68
        $region67: #{decoder_forward.1} parent=31 // pred_region
          %p898 = scmp.lt.s32.totalorder %s64, 1
          %s899 = scalar_select %p898, %s64, 1
          %s900 = smul.addr %s899, 32
          %s901 = smul.addr %s900, 4
          %s902 = scalar_lea.vmem %s10, %s901
        $region68: #{decoder_forward.1} parent=31 // pred_fallthru
          _
        // Predicated region
        $region69: #{decoder_forward.1} parent=31 // pred_check
          %p903 = pneg %p374
        $region70: #{decoder_forward.1} parent=31 // pred_check_branch
          %905 = sbr.rel (%p903) target = $region72
        $region71: #{decoder_forward.1} parent=31 // pred_region
          %p906 = scmp.lt.s32.totalorder %s64, 1
          %s907 = scalar_select %p906, %s64, 1
          %s908 = smul.addr %s907, 2
          %s909 = scalar_lea.vmem %s11, %s908
        $region72: #{decoder_forward.1} parent=31 // pred_fallthru
          _
        // Predicated region
        $region73: #{decoder_forward.1} parent=31 // pred_check
          %p910 = pneg %p400
        $region74: #{decoder_forward.1} parent=31 // pred_check_branch
          %912 = sbr.rel (%p910) target = $region76
        $region75: #{decoder_forward.1} parent=31 // pred_region
          %s913 = sand.u32 %s56, 1
          %s914 = scalar_lea.sflag [#allocation13], %s913
          %s915 = sand.u32 %s390, 1
          %s916 = smul.addr %s915, 64
          %s917 = scalar_lea.vmem [#allocation14], %s916
          %s919 = ssub.s32 1024, 1024
          %920 = vsyncadd %s914, %s919
          %s921 = smul.addr %s64, 16
          %s922 = smul.addr %s921, 64
          %s923 = scalar_lea.hbm %s12, %s922
          %s924 = sshll.u32 %s917, 4
          %s925 = int_to_ptr.vmem [resolvable:$true] %s924
          %930 = dma.hbm_to_vmem [thread:$0]  %s923, 1024, %s925, %s914, 64, 64, 4
        $region76: #{decoder_forward.1} parent=31 // pred_fallthru
          _
        // Predicated region
        $region77: #{decoder_forward.1} parent=31 // pred_check
          %p931 = pneg %p426
        $region78: #{decoder_forward.1} parent=31 // pred_check_branch
          %933 = sbr.rel (%p931) target = $region80
        $region79: #{decoder_forward.1} parent=31 // pred_region
          %s934 = sand.u32 %s56, 1
          %s935 = scalar_lea.sflag [#allocation16], %s934
          %s936 = sand.u32 %s416, 1
          %s937 = scalar_lea.vmem [#allocation15], %s936
          %s939 = ssub.s32 16, 16
          %940 = vsyncadd %s935, %s939
          %s941 = smul.addr %s64, 16
          %s942 = scalar_lea.hbm %s13, %s941
          %s944 = sshll.u32 %s937, 4
          %s945 = int_to_ptr.vmem [resolvable:$true] %s944
          %947 = dma.hbm_to_vmem [thread:$0]  %s942, 16, %s945, %s935
        $region80: #{decoder_forward.1} parent=31 // pred_fallthru
          _
        // Predicated region
        $region81: #{decoder_forward.1} parent=31 // pred_check
          %p948 = pneg %p452
        $region82: #{decoder_forward.1} parent=31 // pred_check_branch
          %950 = sbr.rel (%p948) target = $region84
        $region83: #{decoder_forward.1} parent=31 // pred_region
          %s951 = sand.u32 %s56, 1
          %s952 = scalar_lea.sflag [#allocation16], %s951
          %s953 = sand.u32 %s442, 1
          %s954 = scalar_lea.vmem [#allocation17], %s953
          %s956 = ssub.s32 16, 16
          %957 = vsyncadd %s952, %s956
          %s958 = smul.addr %s64, 16
          %s959 = scalar_lea.hbm %s14, %s958
          %s961 = sshll.u32 %s954, 4
          %s962 = int_to_ptr.vmem [resolvable:$true] %s961
          %964 = dma.hbm_to_vmem [thread:$0]  %s959, 16, %s962, %s952
        $region84: #{decoder_forward.1} parent=31 // pred_fallthru
          _
        // Predicated region
        $region85: #{decoder_forward.1} parent=31 // pred_check
          %p965 = pneg %p478
        $region86: #{decoder_forward.1} parent=31 // pred_check_branch
          %967 = sbr.rel (%p965) target = $region88
        $region87: #{decoder_forward.1} parent=31 // pred_region
          %s968 = sand.u32 %s56, 1
          %s969 = scalar_lea.sflag [#allocation19], %s968
          %s970 = sand.u32 %s468, 1
          %s971 = scalar_lea.vmem [#allocation18], %s970
          %s973 = ssub.s32 16, 16
          %974 = vsyncadd %s969, %s973
          %s975 = smul.addr %s64, 16
          %s976 = scalar_lea.hbm %s15, %s975
          %s978 = sshll.u32 %s971, 4
          %s979 = int_to_ptr.vmem [resolvable:$true] %s978
          %981 = dma.hbm_to_vmem [thread:$0]  %s976, 16, %s979, %s969
        $region88: #{decoder_forward.1} parent=31 // pred_fallthru
          _
        // Predicated region
        $region89: #{decoder_forward.1} parent=31 // pred_check
          %p982 = pneg %p504
        $region90: #{decoder_forward.1} parent=31 // pred_check_branch
          %984 = sbr.rel (%p982) target = $region92
        $region91: #{decoder_forward.1} parent=31 // pred_region
          %s985 = sand.u32 %s56, 1
          %s986 = scalar_lea.sflag [#allocation19], %s985
          %s987 = sand.u32 %s494, 1
          %s988 = smul.addr %s987, 128
          %s989 = scalar_lea.vmem [#allocation20], %s988
          %s991 = ssub.s32 2048, 2048
          %992 = vsyncadd %s986, %s991
          %s993 = smul.addr %s64, 32
          %s994 = smul.addr %s993, 64
          %s995 = scalar_lea.hbm %s16, %s994
          %s996 = sshll.u32 %s989, 4
          %s997 = int_to_ptr.vmem [resolvable:$true] %s996
          %1002 = dma.hbm_to_vmem [thread:$0]  %s995, 2048, %s997, %s986, 128, 128, 8
        $region92: #{decoder_forward.1} parent=31 // pred_fallthru
          _
        // Predicated region
        $region93: #{decoder_forward.1} parent=31 // pred_check
          %p1003 = pneg %p530
        $region94: #{decoder_forward.1} parent=31 // pred_check_branch
          %1005 = sbr.rel (%p1003) target = $region96
        $region95: #{decoder_forward.1} parent=31 // pred_region
          %p1006 = scmp.lt.s32.totalorder %s64, 1
          %s1007 = scalar_select %p1006, %s64, 1
          %s1008 = smul.addr %s1007, 2
          %s1009 = scalar_lea.vmem %s17, %s1008
        $region96: #{decoder_forward.1} parent=31 // pred_fallthru
          _
        // Predicated region
        $region97: #{decoder_forward.1} parent=31 // pred_check
          %p1010 = pneg %p556
        $region98: #{decoder_forward.1} parent=31 // pred_check_branch
          %1012 = sbr.rel (%p1010) target = $region100
        $region99: #{decoder_forward.1} parent=31 // pred_region
          %s1013 = sand.u32 %s56, 1
          %s1014 = scalar_lea.sflag [#allocation22], %s1013
          %s1015 = sand.u32 %s546, 1
          %s1016 = smul.addr %s1015, 128
          %s1017 = scalar_lea.vmem [#allocation21], %s1016
          %s1019 = ssub.s32 2048, 2048
          %1020 = vsyncadd %s1014, %s1019
          %s1021 = smul.addr %s64, 32
          %s1022 = smul.addr %s1021, 64
          %s1023 = scalar_lea.hbm %s18, %s1022
          %s1024 = sshll.u32 %s1017, 4
          %s1025 = int_to_ptr.vmem [resolvable:$true] %s1024
          %1030 = dma.hbm_to_vmem [thread:$0]  %s1023, 2048, %s1025, %s1014, 64, 64, 4
        $region100: #{decoder_forward.1} parent=31 // pred_fallthru
          _
        // Predicated region
        $region101: #{decoder_forward.1} parent=31 // pred_check
          %p1031 = pneg %p582
        $region102: #{decoder_forward.1} parent=31 // pred_check_branch
          %1033 = sbr.rel (%p1031) target = $region104
        $region103: #{decoder_forward.1} parent=31 // pred_region
          %s1034 = sand.u32 %s56, 1
          %s1035 = scalar_lea.sflag [#allocation22], %s1034
          %s1036 = sand.u32 %s572, 1
          %s1037 = scalar_lea.vmem [#allocation23], %s1036
          %s1039 = ssub.s32 16, 16
          %1040 = vsyncadd %s1035, %s1039
          %s1041 = smul.addr %s64, 16
          %s1042 = scalar_lea.hbm %s19, %s1041
          %s1044 = sshll.u32 %s1037, 4
          %s1045 = int_to_ptr.vmem [resolvable:$true] %s1044
          %1047 = dma.hbm_to_vmem [thread:$0]  %s1042, 16, %s1045, %s1035
        $region104: #{decoder_forward.1} parent=31 // pred_fallthru
          _
        // Predicated region
        $region105: #{decoder_forward.1} parent=31 // pred_check
          %p1048 = pneg %p608
        $region106: #{decoder_forward.1} parent=31 // pred_check_branch
          %1050 = sbr.rel (%p1048) target = $region108
        $region107: #{decoder_forward.1} parent=31 // pred_region
          %s1051 = sand.u32 %s56, 1
          %s1052 = scalar_lea.sflag [#allocation25], %s1051
          %s1053 = sand.u32 %s598, 1
          %s1054 = scalar_lea.vmem [#allocation24], %s1053
          %s1056 = ssub.s32 16, 16
          %1057 = vsyncadd %s1052, %s1056
          %s1058 = smul.addr %s64, 16
          %s1059 = scalar_lea.hbm %s20, %s1058
          %s1061 = sshll.u32 %s1054, 4
          %s1062 = int_to_ptr.vmem [resolvable:$true] %s1061
          %1064 = dma.hbm_to_vmem [thread:$0]  %s1059, 16, %s1062, %s1052
        $region108: #{decoder_forward.1} parent=31 // pred_fallthru
          _
        // Predicated region
        $region109: #{decoder_forward.1} parent=31 // pred_check
          %p1065 = pneg %p634
        $region110: #{decoder_forward.1} parent=31 // pred_check_branch
          %1067 = sbr.rel (%p1065) target = $region112
        $region111: #{decoder_forward.1} parent=31 // pred_region
          %s1068 = sand.u32 %s56, 1
          %s1069 = scalar_lea.sflag [#allocation25], %s1068
          %s1070 = sand.u32 %s624, 1
          %s1071 = scalar_lea.vmem [#allocation26], %s1070
          %s1073 = ssub.s32 16, 16
          %1074 = vsyncadd %s1069, %s1073
          %s1075 = smul.addr %s64, 16
          %s1076 = scalar_lea.hbm %s21, %s1075
          %s1078 = sshll.u32 %s1071, 4
          %s1079 = int_to_ptr.vmem [resolvable:$true] %s1078
          %1081 = dma.hbm_to_vmem [thread:$0]  %s1076, 16, %s1079, %s1069
        $region112: #{decoder_forward.1} parent=31 // pred_fallthru
          _
      $region32: #{decoder_forward.1} parent=5 // pred_fallthru
        _
      %p1082 = scmp.le.s32.totalorder 1, %s56
      %p1083 = scmp.lt.s32.totalorder %s56, 3
      %p1084 = pnand %p1082, %p1083
      %p1085 = pneg %p1084
      // Predicated region
      $region113: #{decoder_forward.1} parent=5 // pred_check
        _
      $region114: #{decoder_forward.1} parent=5 // pred_check_branch
        %1087 = sbr.rel (%p1084) target = $region116
      $region115: #{decoder_forward.1} parent=5 // pred_region
        %s1088 = ssub.s32 %s56, 1
        %s1089 = sand.u32 %s133, 1
        %s1090 = scalar_lea.sflag [#allocation4], %s1089
        %s1091 = sand.u32 %s133, 1
        %s1092 = smul.addr %s1091, 192
        %s1093 = scalar_lea.vmem [#allocation3], %s1092
        // Predicated region
        $region117: #{decoder_forward.1} parent=115 // pred_check
          %p1094 = pneg %p146
        $region118: #{decoder_forward.1} parent=115 // pred_check_branch
          %1096 = sbr.rel (%p1094) target = $region120
        $region119: #{decoder_forward.1} parent=115 // pred_region
          %1097 = dma.done %s1090, 3072
        $region120: #{decoder_forward.1} parent=115 // pred_fallthru
          _
        %s1098 = sand.u32 %s61, 1
        %s1099 = scalar_lea.sflag [#allocation7], %s1098
        %s1100 = sand.u32 %s185, 1
        %s1101 = smul.addr %s1100, 64
        %s1102 = scalar_lea.vmem [#allocation6], %s1101
        // Predicated region
        $region121: #{decoder_forward.1} parent=115 // pred_check
          %p1103 = pneg %p198
        $region122: #{decoder_forward.1} parent=115 // pred_check_branch
          %1105 = sbr.rel (%p1103) target = $region124
        $region123: #{decoder_forward.1} parent=115 // pred_region
          %1106 = dma.done %s1099, 1024
        $region124: #{decoder_forward.1} parent=115 // pred_fallthru
          _
        %s1107 = sand.u32 %s61, 1
        %s1108 = scalar_lea.sflag [#allocation7], %s1107
        %s1109 = sand.u32 %s237, 1
        %s1110 = scalar_lea.vmem [#allocation8], %s1109
        // Predicated region
        $region125: #{decoder_forward.1} parent=115 // pred_check
          %p1111 = pneg %p250
        $region126: #{decoder_forward.1} parent=115 // pred_check_branch
          %1113 = sbr.rel (%p1111) target = $region128
        $region127: #{decoder_forward.1} parent=115 // pred_region
          %1114 = dma.done %s1108, 16
        $region128: #{decoder_forward.1} parent=115 // pred_fallthru
          _
        %s1115 = sand.u32 %s61, 1
        %s1116 = scalar_lea.sflag [#allocation10], %s1115
        %s1117 = sand.u32 %s263, 1
        %s1118 = scalar_lea.vmem [#allocation9], %s1117
        // Predicated region
        $region129: #{decoder_forward.1} parent=115 // pred_check
          %p1119 = pneg %p276
        $region130: #{decoder_forward.1} parent=115 // pred_check_branch
          %1121 = sbr.rel (%p1119) target = $region132
        $region131: #{decoder_forward.1} parent=115 // pred_region
          %1122 = dma.done %s1116, 16
        $region132: #{decoder_forward.1} parent=115 // pred_fallthru
          _
        %s1123 = sand.u32 %s61, 1
        %s1124 = scalar_lea.sflag [#allocation10], %s1123
        %s1125 = sand.u32 %s289, 1
        %s1126 = smul.addr %s1125, 64
        %s1127 = scalar_lea.vmem [#allocation11], %s1126
        // Predicated region
        $region133: #{decoder_forward.1} parent=115 // pred_check
          %p1128 = pneg %p302
        $region134: #{decoder_forward.1} parent=115 // pred_check_branch
          %1130 = sbr.rel (%p1128) target = $region136
        $region135: #{decoder_forward.1} parent=115 // pred_region
          %1131 = dma.done %s1124, 1024
        $region136: #{decoder_forward.1} parent=115 // pred_fallthru
          _
        %s1132 = sand.u32 %s61, 1
        %s1133 = scalar_lea.sflag [#allocation13], %s1132
        %s1134 = sand.u32 %s315, 1
        %s1135 = scalar_lea.vmem [#allocation12], %s1134
        // Predicated region
        $region137: #{decoder_forward.1} parent=115 // pred_check
          %p1136 = pneg %p328
        $region138: #{decoder_forward.1} parent=115 // pred_check_branch
          %1138 = sbr.rel (%p1136) target = $region140
        $region139: #{decoder_forward.1} parent=115 // pred_region
          %1139 = dma.done %s1133, 16
        $region140: #{decoder_forward.1} parent=115 // pred_fallthru
          _
        %s1140 = sand.u32 %s61, 1
        %s1141 = scalar_lea.sflag [#allocation13], %s1140
        %s1142 = sand.u32 %s393, 1
        %s1143 = smul.addr %s1142, 64
        %s1144 = scalar_lea.vmem [#allocation14], %s1143
        // Predicated region
        $region141: #{decoder_forward.1} parent=115 // pred_check
          %p1145 = pneg %p406
        $region142: #{decoder_forward.1} parent=115 // pred_check_branch
          %1147 = sbr.rel (%p1145) target = $region144
        $region143: #{decoder_forward.1} parent=115 // pred_region
          %1148 = dma.done %s1141, 1024
        $region144: #{decoder_forward.1} parent=115 // pred_fallthru
          _
        %s1149 = sand.u32 %s61, 1
        %s1150 = scalar_lea.sflag [#allocation16], %s1149
        %s1151 = sand.u32 %s419, 1
        %s1152 = scalar_lea.vmem [#allocation15], %s1151
        // Predicated region
        $region145: #{decoder_forward.1} parent=115 // pred_check
          %p1153 = pneg %p432
        $region146: #{decoder_forward.1} parent=115 // pred_check_branch
          %1155 = sbr.rel (%p1153) target = $region148
        $region147: #{decoder_forward.1} parent=115 // pred_region
          %1156 = dma.done %s1150, 16
        $region148: #{decoder_forward.1} parent=115 // pred_fallthru
          _
        %s1157 = sand.u32 %s61, 1
        %s1158 = scalar_lea.sflag [#allocation16], %s1157
        %s1159 = sand.u32 %s445, 1
        %s1160 = scalar_lea.vmem [#allocation17], %s1159
        // Predicated region
        $region149: #{decoder_forward.1} parent=115 // pred_check
          %p1161 = pneg %p458
        $region150: #{decoder_forward.1} parent=115 // pred_check_branch
          %1163 = sbr.rel (%p1161) target = $region152
        $region151: #{decoder_forward.1} parent=115 // pred_region
          %1164 = dma.done %s1158, 16
        $region152: #{decoder_forward.1} parent=115 // pred_fallthru
          _
        %s1165 = sand.u32 %s61, 1
        %s1166 = scalar_lea.sflag [#allocation19], %s1165
        %s1167 = sand.u32 %s471, 1
        %s1168 = scalar_lea.vmem [#allocation18], %s1167
        // Predicated region
        $region153: #{decoder_forward.1} parent=115 // pred_check
          %p1169 = pneg %p484
        $region154: #{decoder_forward.1} parent=115 // pred_check_branch
          %1171 = sbr.rel (%p1169) target = $region156
        $region155: #{decoder_forward.1} parent=115 // pred_region
          %1172 = dma.done %s1166, 16
        $region156: #{decoder_forward.1} parent=115 // pred_fallthru
          _
        %s1173 = sand.u32 %s61, 1
        %s1174 = scalar_lea.sflag [#allocation19], %s1173
        %s1175 = sand.u32 %s497, 1
        %s1176 = smul.addr %s1175, 128
        %s1177 = scalar_lea.vmem [#allocation20], %s1176
        // Predicated region
        $region157: #{decoder_forward.1} parent=115 // pred_check
          %p1178 = pneg %p510
        $region158: #{decoder_forward.1} parent=115 // pred_check_branch
          %1180 = sbr.rel (%p1178) target = $region160
        $region159: #{decoder_forward.1} parent=115 // pred_region
          %1181 = dma.done %s1174, 2048
        $region160: #{decoder_forward.1} parent=115 // pred_fallthru
          _
        %s1182 = sand.u32 %s61, 1
        %s1183 = scalar_lea.sflag [#allocation22], %s1182
        %s1184 = sand.u32 %s549, 1
        %s1185 = smul.addr %s1184, 128
        %s1186 = scalar_lea.vmem [#allocation21], %s1185
        // Predicated region
        $region161: #{decoder_forward.1} parent=115 // pred_check
          %p1187 = pneg %p562
        $region162: #{decoder_forward.1} parent=115 // pred_check_branch
          %1189 = sbr.rel (%p1187) target = $region164
        $region163: #{decoder_forward.1} parent=115 // pred_region
          %1190 = dma.done %s1183, 2048
        $region164: #{decoder_forward.1} parent=115 // pred_fallthru
          _
        %s1191 = sand.u32 %s61, 1
        %s1192 = scalar_lea.sflag [#allocation22], %s1191
        %s1193 = sand.u32 %s575, 1
        %s1194 = scalar_lea.vmem [#allocation23], %s1193
        // Predicated region
        $region165: #{decoder_forward.1} parent=115 // pred_check
          %p1195 = pneg %p588
        $region166: #{decoder_forward.1} parent=115 // pred_check_branch
          %1197 = sbr.rel (%p1195) target = $region168
        $region167: #{decoder_forward.1} parent=115 // pred_region
          %1198 = dma.done %s1192, 16
        $region168: #{decoder_forward.1} parent=115 // pred_fallthru
          _
        %s1199 = sand.u32 %s61, 1
        %s1200 = scalar_lea.sflag [#allocation25], %s1199
        %s1201 = sand.u32 %s601, 1
        %s1202 = scalar_lea.vmem [#allocation24], %s1201
        // Predicated region
        $region169: #{decoder_forward.1} parent=115 // pred_check
          %p1203 = pneg %p614
        $region170: #{decoder_forward.1} parent=115 // pred_check_branch
          %1205 = sbr.rel (%p1203) target = $region172
        $region171: #{decoder_forward.1} parent=115 // pred_region
          %1206 = dma.done %s1200, 16
        $region172: #{decoder_forward.1} parent=115 // pred_fallthru
          _
        %s1207 = sand.u32 %s61, 1
        %s1208 = scalar_lea.sflag [#allocation25], %s1207
        %s1209 = sand.u32 %s627, 1
        %s1210 = scalar_lea.vmem [#allocation26], %s1209
        // Predicated region
        $region173: #{decoder_forward.1} parent=115 // pred_check
          %p1211 = pneg %p640
        $region174: #{decoder_forward.1} parent=115 // pred_check_branch
          %1213 = sbr.rel (%p1211) target = $region176
        $region175: #{decoder_forward.1} parent=115 // pred_region
          %1214 = dma.done %s1208, 16
        $region176: #{decoder_forward.1} parent=115 // pred_fallthru
          _
        // Predicated region
        $region177: #{decoder_forward.1} parent=115 // pred_check
          %p1215 = pneg %p661
        $region178: #{decoder_forward.1} parent=115 // pred_check_branch
          %1217 = sbr.rel (%p1215) target = $region180
        $region179: #{decoder_forward.1} parent=115 // pred_region
          %1218 = dma.done [#allocation28], 16
        $region180: #{decoder_forward.1} parent=115 // pred_fallthru
          _
        // Predicated region
        $region181: #{decoder_forward.1} parent=115 // pred_check
          %p1219 = pneg %p682
        $region182: #{decoder_forward.1} parent=115 // pred_check_branch
          %1221 = sbr.rel (%p1219) target = $region184
        $region183: #{decoder_forward.1} parent=115 // pred_region
          %1222 = dma.done [#allocation28], 16
        $region184: #{decoder_forward.1} parent=115 // pred_fallthru
          _
        %s1223 = smul.u32 2, %s65
        %p1224 = scmp.lt.s32.totalorder %s1223, 1
        %s1225 = scalar_select %p1224, %s1223, 1
        %s1226 = smul.addr %s1225, 8
        %s1227 = scalar_lea.vmem %s0, %s1226
        %p1228 = pneg %p94
        %p1229 = pneg %p91
        %s1230 = smul.u32 2, %s65
        %p1231 = scmp.lt.s32.totalorder %s1230, 1
        %s1232 = scalar_select %p1231, %s1230, 1
        %s1233 = smul.addr %s1232, 2
        %s1234 = smul.addr %s1233, 8
        %s1235 = scalar_lea.vmem %s1, %s1234
        %p1236 = pneg %p120
        %p1237 = pneg %p117
        %s1238 = sand.u32 %s133, 1
        %s1239 = scalar_lea.sflag [#allocation4], %s1238
        %s1240 = sand.u32 %s133, 1
        %s1241 = smul.addr %s1240, 192
        %s1242 = scalar_lea.vmem [#allocation3], %s1241
        %p1243 = pneg %p146
        %p1244 = pneg %p143
        %p1245 = scmp.lt.s32.totalorder %s66, 1
        %s1246 = scalar_select %p1245, %s66, 1
        %s1247 = smul.addr %s1246, 3
        %s1248 = scalar_lea.vmem %s3, %s1247
        %p1249 = pneg %p172
        %p1250 = pneg %p169
        %s1251 = sand.u32 %s61, 1
        %s1252 = scalar_lea.sflag [#allocation7], %s1251
        %s1253 = sand.u32 %s185, 1
        %s1254 = smul.addr %s1253, 64
        %s1255 = scalar_lea.vmem [#allocation6], %s1254
        %p1256 = pneg %p198
        %p1257 = pneg %p195
        %p1258 = scmp.lt.s32.totalorder %s66, 1
        %s1259 = scalar_select %p1258, %s66, 1
        %s1260 = scalar_lea.vmem %s5, %s1259
        %p1261 = pneg %p224
        %p1262 = pneg %p221
        %s1263 = sand.u32 %s61, 1
        %s1264 = scalar_lea.sflag [#allocation7], %s1263
        %s1265 = sand.u32 %s237, 1
        %s1266 = scalar_lea.vmem [#allocation8], %s1265
        %p1267 = pneg %p250
        %p1268 = pneg %p247
        %s1269 = sand.u32 %s61, 1
        %s1270 = scalar_lea.sflag [#allocation10], %s1269
        %s1271 = sand.u32 %s263, 1
        %s1272 = scalar_lea.vmem [#allocation9], %s1271
        %p1273 = pneg %p276
        %p1274 = pneg %p273
        %s1275 = sand.u32 %s61, 1
        %s1276 = scalar_lea.sflag [#allocation10], %s1275
        %s1277 = sand.u32 %s289, 1
        %s1278 = smul.addr %s1277, 64
        %s1279 = scalar_lea.vmem [#allocation11], %s1278
        %p1280 = pneg %p302
        %p1281 = pneg %p299
        %s1282 = sand.u32 %s61, 1
        %s1283 = scalar_lea.sflag [#allocation13], %s1282
        %s1284 = sand.u32 %s315, 1
        %s1285 = scalar_lea.vmem [#allocation12], %s1284
        %p1286 = pneg %p328
        %p1287 = pneg %p325
        %p1288 = scmp.lt.s32.totalorder %s66, 1
        %s1289 = scalar_select %p1288, %s66, 1
        %s1290 = smul.addr %s1289, 32
        %s1291 = smul.addr %s1290, 4
        %s1292 = scalar_lea.vmem %s10, %s1291
        %p1293 = pneg %p354
        %p1294 = pneg %p351
        %p1295 = scmp.lt.s32.totalorder %s66, 1
        %s1296 = scalar_select %p1295, %s66, 1
        %s1297 = smul.addr %s1296, 2
        %s1298 = scalar_lea.vmem %s11, %s1297
        %p1299 = pneg %p380
        %p1300 = pneg %p377
        %s1301 = sand.u32 %s61, 1
        %s1302 = scalar_lea.sflag [#allocation13], %s1301
        %s1303 = sand.u32 %s393, 1
        %s1304 = smul.addr %s1303, 64
        %s1305 = scalar_lea.vmem [#allocation14], %s1304
        %p1306 = pneg %p406
        %p1307 = pneg %p403
        %s1308 = sand.u32 %s61, 1
        %s1309 = scalar_lea.sflag [#allocation16], %s1308
        %s1310 = sand.u32 %s419, 1
        %s1311 = scalar_lea.vmem [#allocation15], %s1310
        %p1312 = pneg %p432
        %p1313 = pneg %p429
        %s1314 = sand.u32 %s61, 1
        %s1315 = scalar_lea.sflag [#allocation16], %s1314
        %s1316 = sand.u32 %s445, 1
        %s1317 = scalar_lea.vmem [#allocation17], %s1316
        %p1318 = pneg %p458
        %p1319 = pneg %p455
        %s1320 = sand.u32 %s61, 1
        %s1321 = scalar_lea.sflag [#allocation19], %s1320
        %s1322 = sand.u32 %s471, 1
        %s1323 = scalar_lea.vmem [#allocation18], %s1322
        %p1324 = pneg %p484
        %p1325 = pneg %p481
        %s1326 = sand.u32 %s61, 1
        %s1327 = scalar_lea.sflag [#allocation19], %s1326
        %s1328 = sand.u32 %s497, 1
        %s1329 = smul.addr %s1328, 128
        %s1330 = scalar_lea.vmem [#allocation20], %s1329
        %p1331 = pneg %p510
        %p1332 = pneg %p507
        %p1333 = scmp.lt.s32.totalorder %s66, 1
        %s1334 = scalar_select %p1333, %s66, 1
        %s1335 = smul.addr %s1334, 2
        %s1336 = scalar_lea.vmem %s17, %s1335
        %p1337 = pneg %p536
        %p1338 = pneg %p533
        %s1339 = sand.u32 %s61, 1
        %s1340 = scalar_lea.sflag [#allocation22], %s1339
        %s1341 = sand.u32 %s549, 1
        %s1342 = smul.addr %s1341, 128
        %s1343 = scalar_lea.vmem [#allocation21], %s1342
        %p1344 = pneg %p562
        %p1345 = pneg %p559
        %s1346 = sand.u32 %s61, 1
        %s1347 = scalar_lea.sflag [#allocation22], %s1346
        %s1348 = sand.u32 %s575, 1
        %s1349 = scalar_lea.vmem [#allocation23], %s1348
        %p1350 = pneg %p588
        %p1351 = pneg %p585
        %s1352 = sand.u32 %s61, 1
        %s1353 = scalar_lea.sflag [#allocation25], %s1352
        %s1354 = sand.u32 %s601, 1
        %s1355 = scalar_lea.vmem [#allocation24], %s1354
        %p1356 = pneg %p614
        %p1357 = pneg %p611
        %s1358 = sand.u32 %s61, 1
        %s1359 = scalar_lea.sflag [#allocation25], %s1358
        %s1360 = sand.u32 %s627, 1
        %s1361 = scalar_lea.vmem [#allocation26], %s1360
        %p1362 = pneg %p640
        %p1363 = pneg %p637
        %p1364 = pneg %p661
        %p1365 = pneg %p658
        %p1366 = pneg %p682
        %p1367 = pneg %p679
        %p1368 = pneg %p708
        %p1369 = pneg %p705
        %s1370 = smul.u32 2, %s65
        %p1371 = scmp.lt.s32.totalorder %s1370, 1
        %s1372 = scalar_select %p1371, %s1370, 1
        %s1373 = smul.addr %s1372, 8
        %s1374 = scalar_lea.vmem %s0, %s1373
        %s1375 = smul.u32 2, %s65
        %s1376 = smul.u32 2, %s65
        %p1377 = scmp.lt.s32.totalorder %s1376, 1
        %s1378 = scalar_select %p1377, %s1376, 1
        %s1379 = smul.addr %s1378, 2
        %s1380 = smul.addr %s1379, 8
        %s1381 = scalar_lea.vmem %s1, %s1380
        %s1382 = smul.u32 2, %s65
        %p1383 = scmp.lt.s32.totalorder %s66, 1
        %s1384 = scalar_select %p1383, %s66, 1
        %s1385 = smul.addr %s1384, 3
        %s1386 = scalar_lea.vmem %s3, %s1385
        %p1387 = scmp.lt.s32.totalorder %s66, 1
        %s1388 = scalar_select %p1387, %s66, 1
        %s1389 = scalar_lea.vmem %s5, %s1388
        %p1390 = scmp.lt.s32.totalorder %s66, 1
        %s1391 = scalar_select %p1390, %s66, 1
        %s1392 = smul.addr %s1391, 32
        %s1393 = smul.addr %s1392, 4
        %s1394 = scalar_lea.vmem %s10, %s1393
        %p1395 = scmp.lt.s32.totalorder %s66, 1
        %s1396 = scalar_select %p1395, %s66, 1
        %s1397 = smul.addr %s1396, 2
        %s1398 = scalar_lea.vmem %s11, %s1397
        %p1399 = scmp.lt.s32.totalorder %s66, 1
        %s1400 = scalar_select %p1399, %s66, 1
        %s1401 = smul.addr %s1400, 2
        %s1402 = scalar_lea.vmem %s17, %s1401
        %s1403 = smul.u32 2, %s65
        %p1405 = scmp.eq.s32.totalorder %s66, 0
        // Predicated region
        $region185: #{decoder_forward.1} parent=115 // pred_check
          %p1406 = pneg %p1405
        $region186: #{decoder_forward.1} parent=115 // pred_check_branch
          %1408 = sbr.rel (%p1406) target = $region188
        $region187: #{decoder_forward.1} parent=115 // pred_region
          %v1409 = vld [vmem:[%s1374] sm:$0xff]
          %v1410 = vld [vmem:[%s1374 + $0x8] sm:$0xff]
          %1411 = vst [vmem:[#allocation2] sm:$0xff] %v1409
          %1412 = vst [vmem:[#allocation2 + $0x8] sm:$0xff] %v1410
        $region188: #{decoder_forward.1} parent=115 // pred_fallthru
          _
        %v1413 = vld [vmem:[#allocation2] sm:$0xff]
        %v1414 = vld [vmem:[#allocation2 + $0x8] sm:$0xff]
        %v1415 = vld [vmem:[%s1381] sm:$0xff]
        %v1416 = vld [vmem:[%s1381 + $0x8] sm:$0xff]
        %v1417 = vld [vmem:[%s1381 + $0x10] sm:$0xff]
        %v1418 = vld [vmem:[%s1381 + $0x18] sm:$0xff]
        %v1419 = vpack.c.bf16 %v1414, %v1413
        %v1420 = vld [vmem:[%s1093] sm:$0xff]
        %v1421 = vld [vmem:[%s1093 + $0x8] sm:$0xf]
        %v1422 = vld [vmem:[%s1093 + $0xc] sm:$0xff]
        %v1423 = vld [vmem:[%s1093 + $0x14] sm:$0xf]
        %v1424 = vld [vmem:[%s1093 + $0x18] sm:$0xff]
        %v1425 = vld [vmem:[%s1093 + $0x20] sm:$0xf]
        %v1426 = vld [vmem:[%s1093 + $0x24] sm:$0xff]
        %v1427 = vld [vmem:[%s1093 + $0x2c] sm:$0xf]
        %v1428 = vld [vmem:[%s1093 + $0x30] sm:$0xff]
        %v1429 = vld [vmem:[%s1093 + $0x38] sm:$0xf]
        %v1430 = vld [vmem:[%s1093 + $0x3c] sm:$0xff]
        %v1431 = vld [vmem:[%s1093 + $0x44] sm:$0xf]
        %v1432 = vld [vmem:[%s1093 + $0x48] sm:$0xff]
        %v1433 = vld [vmem:[%s1093 + $0x50] sm:$0xf]
        %v1434 = vld [vmem:[%s1093 + $0x54] sm:$0xff]
        %v1435 = vld [vmem:[%s1093 + $0x5c] sm:$0xf]
        %v1436 = vld [vmem:[%s1093 + $0x60] sm:$0xff]
        %v1437 = vld [vmem:[%s1093 + $0x68] sm:$0xf]
        %v1438 = vld [vmem:[%s1093 + $0x6c] sm:$0xff]
        %v1439 = vld [vmem:[%s1093 + $0x74] sm:$0xf]
        %v1440 = vld [vmem:[%s1093 + $0x78] sm:$0xff]
        %v1441 = vld [vmem:[%s1093 + $0x80] sm:$0xf]
        %v1442 = vld [vmem:[%s1093 + $0x84] sm:$0xff]
        %v1443 = vld [vmem:[%s1093 + $0x8c] sm:$0xf]
        %v1444 = vld [vmem:[%s1093 + $0x90] sm:$0xff]
        %v1445 = vld [vmem:[%s1093 + $0x98] sm:$0xf]
        %v1446 = vld [vmem:[%s1093 + $0x9c] sm:$0xff]
        %v1447 = vld [vmem:[%s1093 + $0xa4] sm:$0xf]
        %v1448 = vld [vmem:[%s1093 + $0xa8] sm:$0xff]
        %v1449 = vld [vmem:[%s1093 + $0xb0] sm:$0xf]
        %v1450 = vld [vmem:[%s1093 + $0xb4] sm:$0xff]
        %v1451 = vld [vmem:[%s1093 + $0xbc] sm:$0xf]
        %v1452 = vld [vmem:[%s1386] sm:$0x7]
        %v1454 = vlaneseq
        %v1455 = vshrl.u32 %v1454, 7
        %v1456 = vsub.s32 0, %v1455
        %v1457 = vrot.slane %v1452, %v1456
        %v1458 = vlaneseq
        %v1459 = vshrl.u32 %v1458, 7
        %v1460 = vsub.s32 1, %v1459
        %v1461 = vrot.slane %v1452, %v1460
        %v1462 = vlaneseq
        %v1463 = vshrl.u32 %v1462, 7
        %v1464 = vsub.s32 2, %v1463
        %v1465 = vrot.slane %v1452, %v1464
        %v1501 = vunpack.c.l.b16 %v1420
        %v1502 = vunpack.c.h.b16 %v1420
        %v1503 = vunpack.c.l.b16 %v1421
        %v1504 = vunpack.c.l.b16 %v1422
        %v1505 = vunpack.c.h.b16 %v1422
        %v1506 = vunpack.c.l.b16 %v1423
        %v1507 = vunpack.c.l.b16 %v1424
        %v1508 = vunpack.c.h.b16 %v1424
        %v1509 = vunpack.c.l.b16 %v1425
        %v1510 = vunpack.c.l.b16 %v1426
        %v1511 = vunpack.c.h.b16 %v1426
        %v1512 = vunpack.c.l.b16 %v1427
        %v1513 = vunpack.c.l.b16 %v1428
        %v1514 = vunpack.c.h.b16 %v1428
        %v1515 = vunpack.c.l.b16 %v1429
        %v1516 = vunpack.c.l.b16 %v1430
        %v1517 = vunpack.c.h.b16 %v1430
        %v1518 = vunpack.c.l.b16 %v1431
        %v1519 = vunpack.c.l.b16 %v1432
        %v1520 = vunpack.c.h.b16 %v1432
        %v1521 = vunpack.c.l.b16 %v1433
        %v1522 = vunpack.c.l.b16 %v1434
        %v1523 = vunpack.c.h.b16 %v1434
        %v1524 = vunpack.c.l.b16 %v1435
        %v1525 = vunpack.c.l.b16 %v1436
        %v1526 = vunpack.c.h.b16 %v1436
        %v1527 = vunpack.c.l.b16 %v1437
        %v1528 = vunpack.c.l.b16 %v1438
        %v1529 = vunpack.c.h.b16 %v1438
        %v1530 = vunpack.c.l.b16 %v1439
        %v1531 = vunpack.c.l.b16 %v1440
        %v1532 = vunpack.c.h.b16 %v1440
        %v1533 = vunpack.c.l.b16 %v1441
        %v1534 = vunpack.c.l.b16 %v1442
        %v1535 = vunpack.c.h.b16 %v1442
        %v1536 = vunpack.c.l.b16 %v1443
        %v1537 = vunpack.c.l.b16 %v1444
        %v1538 = vunpack.c.h.b16 %v1444
        %v1539 = vunpack.c.l.b16 %v1445
        %v1540 = vunpack.c.l.b16 %v1446
        %v1541 = vunpack.c.h.b16 %v1446
        %v1542 = vunpack.c.l.b16 %v1447
        %v1543 = vunpack.c.l.b16 %v1448
        %v1544 = vunpack.c.h.b16 %v1448
        %v1545 = vunpack.c.l.b16 %v1449
        %v1546 = vunpack.c.l.b16 %v1450
        %v1547 = vunpack.c.h.b16 %v1450
        %v1548 = vunpack.c.l.b16 %v1451
        %v1549 = vpack.c.b16 %v1504, %v1501
        %v1550 = vpack.c.b16 %v1505, %v1502
        %v1551 = vpack.c.b16 %v1506, %v1503
        %v1552 = vpack.c.b16 %v1510, %v1507
        %v1553 = vpack.c.b16 %v1511, %v1508
        %v1554 = vpack.c.b16 %v1512, %v1509
        %v1555 = vpack.c.b16 %v1516, %v1513
        %v1556 = vpack.c.b16 %v1517, %v1514
        %v1557 = vpack.c.b16 %v1518, %v1515
        %v1558 = vpack.c.b16 %v1522, %v1519
        %v1559 = vpack.c.b16 %v1523, %v1520
        %v1560 = vpack.c.b16 %v1524, %v1521
        %v1561 = vpack.c.b16 %v1528, %v1525
        %v1562 = vpack.c.b16 %v1529, %v1526
        %v1563 = vpack.c.b16 %v1530, %v1527
        %v1564 = vpack.c.b16 %v1534, %v1531
        %v1565 = vpack.c.b16 %v1535, %v1532
        %v1566 = vpack.c.b16 %v1536, %v1533
        %v1567 = vpack.c.b16 %v1540, %v1537
        %v1568 = vpack.c.b16 %v1541, %v1538
        %v1569 = vpack.c.b16 %v1542, %v1539
        %v1570 = vpack.c.b16 %v1546, %v1543
        %v1571 = vpack.c.b16 %v1547, %v1544
        %v1572 = vpack.c.b16 %v1548, %v1545
        %1597 = vmatprep.subr.bf16.mxu0 %v1571
        %1598 = vmatpush1.bf16.msra.mxu0 %v1570
        %1599 = vmatprep.subr.bf16.mxu0 %v1568
        %1600 = vmatpush1.bf16.msra.mxu0 %v1567
        %1601 = vmatprep.subr.bf16.mxu0 %v1565
        %1602 = vmatpush1.bf16.msra.mxu0 %v1564
        %1603 = vmatprep.subr.bf16.mxu0 %v1562
        %1604 = vmatpush1.bf16.msra.mxu0 %v1561
        %1605 = vmatprep.subr.bf16.mxu0 %v1559
        %1606 = vmatpush1.bf16.msra.mxu0 %v1558
        %1607 = vmatprep.subr.bf16.mxu0 %v1556
        %1608 = vmatpush1.bf16.msra.mxu0 %v1555
        %1609 = vmatprep.subr.bf16.mxu0 %v1553
        %1610 = vmatpush1.bf16.msra.mxu0 %v1552
        %1611 = vmatprep.subr.bf16.mxu0 %v1550
        %1612 = vmatpush1.bf16.msra.mxu0 %v1549
        %1613 = vmatprep.subr.bf16.mxu0 0
        %1614 = vmatpush2.bf16.msra.mxu0 0
        %1615 = vmatprep.subr.bf16.mxu0 0
        %1616 = vmatpush2.bf16.msra.mxu0 0
        %1617 = vmatprep.subr.bf16.mxu0 0
        %1618 = vmatpush2.bf16.msra.mxu0 0
        %1619 = vmatprep.subr.bf16.mxu0 0
        %1620 = vmatpush2.bf16.msra.mxu0 0
        %1621 = vmatprep.subr.bf16.mxu0 0
        %1622 = vmatpush2.bf16.msra.mxu0 0
        %1623 = vmatprep.subr.bf16.mxu0 0
        %1624 = vmatpush2.bf16.msra.mxu0 0
        %1625 = vmatprep.subr.bf16.mxu0 0
        %1626 = vmatpush2.bf16.msra.mxu0 0
        %1627 = vmatprep.subr.bf16.mxu0 0
        %1628 = vmatpush2.bf16.msra.mxu0 0
        %1629 = vmatprep.mubr.bf16.mxu0 0
        %1630 = vmatmul.mubr.bf16.gmra.mxu0 %v1419
        %v1631 = vpop.f32.mrf.mxu0
        %v1632 = vadd.f32 %v1457, %v1631
        %v1633 = vpop.f32.mrf.mxu0
        %v1634 = vadd.f32 %v1461, %v1633
        %v1635 = vpop.f32.mrf.mxu0
        %v1636 = vadd.f32 %v1457, %v1635
        %v1637 = vpop.f32.mrf.mxu0
        %v1638 = vadd.f32 %v1461, %v1637
        %1639 = vdwg.mxu0
        %1640 = vmatprep.subr.bf16.mxu0 0
        %1641 = vmatpush1.bf16.msra.mxu0 %v1572
        %1642 = vmatprep.subr.bf16.mxu0 0
        %1643 = vmatpush1.bf16.msra.mxu0 %v1569
        %1644 = vmatprep.subr.bf16.mxu0 0
        %1645 = vmatpush1.bf16.msra.mxu0 %v1566
        %1646 = vmatprep.subr.bf16.mxu0 0
        %1647 = vmatpush1.bf16.msra.mxu0 %v1563
        %1648 = vmatprep.subr.bf16.mxu0 0
        %1649 = vmatpush1.bf16.msra.mxu0 %v1560
        %1650 = vmatprep.subr.bf16.mxu0 0
        %1651 = vmatpush1.bf16.msra.mxu0 %v1557
        %1652 = vmatprep.subr.bf16.mxu0 0
        %1653 = vmatpush1.bf16.msra.mxu0 %v1554
        %1654 = vmatprep.subr.bf16.mxu0 0
        %1655 = vmatpush1.bf16.msra.mxu0 %v1551
        %1656 = vmatprep.subr.bf16.mxu0 0
        %1657 = vmatpush2.bf16.msra.mxu0 0
        %1658 = vmatprep.subr.bf16.mxu0 0
        %1659 = vmatpush2.bf16.msra.mxu0 0
        %1660 = vmatprep.subr.bf16.mxu0 0
        %1661 = vmatpush2.bf16.msra.mxu0 0
        %1662 = vmatprep.subr.bf16.mxu0 0
        %1663 = vmatpush2.bf16.msra.mxu0 0
        %1664 = vmatprep.subr.bf16.mxu0 0
        %1665 = vmatpush2.bf16.msra.mxu0 0
        %1666 = vmatprep.subr.bf16.mxu0 0
        %1667 = vmatpush2.bf16.msra.mxu0 0
        %1668 = vmatprep.subr.bf16.mxu0 0
        %1669 = vmatpush2.bf16.msra.mxu0 0
        %1670 = vmatprep.subr.bf16.mxu0 0
        %1671 = vmatpush2.bf16.msra.mxu0 0
        %1672 = vmatprep.mubr.bf16.mxu0 0
        %1673 = vmatmul.mubr.bf16.gmra.mxu0 %v1419
        %v1674 = vpop.f32.mrf.mxu0
        %v1675 = vadd.f32 %v1465, %v1674
        %v1676 = vpop.f32.mrf.mxu0
        %v1677 = vpop.f32.mrf.mxu0
        %v1678 = vadd.f32 %v1465, %v1677
        %v1679 = vpop.f32.mrf.mxu0
        %1680 = vdwg.mxu0
        %v1681 = vpack.c.bf16 %v1632, %v1632
        %v1682 = vpack.c.bf16 %v1636, %v1636
        %v1683 = vpack.c.bf16 %v1634, %v1634
        %v1684 = vpack.c.bf16 %v1638, %v1638
        %vm1685 = vcmask 261120
        %v1687 = vsel %vm1685, %v1681, 0
        %v1690 = vsel %vm1685, %v1683, 0
        %1692 = vmatprep.subr.bf16.mxu0 0
        %1693 = vmatpush1.bf16.xpose.msra.mxu0 0
        %1694 = vmatprep.subr.bf16.mxu0 0
        %1695 = vmatpush1.bf16.xpose.msra.mxu0 0
        %1696 = vmatprep.subr.bf16.mxu0 0
        %1697 = vmatpush1.bf16.xpose.msra.mxu0 0
        %1698 = vmatprep.subr.bf16.mxu0 0
        %1699 = vmatpush1.bf16.xpose.msra.mxu0 0
        %1700 = vmatprep.subr.bf16.mxu0 0
        %1701 = vmatpush1.bf16.xpose.msra.mxu0 0
        %1702 = vmatprep.subr.bf16.mxu0 0
        %1703 = vmatpush1.bf16.xpose.msra.mxu0 0
        %1704 = vmatprep.subr.bf16.mxu0 0
        %1705 = vmatpush1.bf16.xpose.msra.mxu0 0
        %1706 = vmatprep.subr.bf16.mxu0 0
        %1707 = vmatpush1.bf16.xpose.msra.mxu0 %v1690
        %1708 = vmatprep.subr.bf16.mxu0 0
        %1709 = vmatpush2.bf16.xpose.msra.mxu0 0
        %1710 = vmatprep.subr.bf16.mxu0 0
        %1711 = vmatpush2.bf16.xpose.msra.mxu0 0
        %1712 = vmatprep.subr.bf16.mxu0 0
        %1713 = vmatpush2.bf16.xpose.msra.mxu0 0
        %1714 = vmatprep.subr.bf16.mxu0 0
        %1715 = vmatpush2.bf16.xpose.msra.mxu0 0
        %1716 = vmatprep.subr.bf16.mxu0 0
        %1717 = vmatpush2.bf16.xpose.msra.mxu0 0
        %1718 = vmatprep.subr.bf16.mxu0 0
        %1719 = vmatpush2.bf16.xpose.msra.mxu0 0
        %1720 = vmatprep.subr.bf16.mxu0 0
        %1721 = vmatpush2.bf16.xpose.msra.mxu0 0
        %1722 = vmatprep.subr.bf16.mxu0 0
        %1723 = vmatpush2.bf16.xpose.msra.mxu0 0
        %1724 = vmatprep.mubr.bf16.mxu0 0
        %1725 = vmatmul.mubr.bf16.gmra.mxu0 %v1687
        %v1726 = vpop.f32.mrf.mxu0
        %v1727 = vadd.f32 0.0, %v1726
        %v1728 = vpop.f32.mrf.mxu0
        %v1729 = vpop.f32.mrf.mxu0
        %v1730 = vpop.f32.mrf.mxu0
        %1731 = vdwg.mxu0
        %v1733 = vsel %vm1685, %v1682, 0
        %v1736 = vsel %vm1685, %v1684, 0
        %1738 = vmatprep.subr.bf16.mxu0 0
        %1739 = vmatpush1.bf16.xpose.msra.mxu0 0
        %1740 = vmatprep.subr.bf16.mxu0 0
        %1741 = vmatpush1.bf16.xpose.msra.mxu0 0
        %1742 = vmatprep.subr.bf16.mxu0 0
        %1743 = vmatpush1.bf16.xpose.msra.mxu0 0
        %1744 = vmatprep.subr.bf16.mxu0 0
        %1745 = vmatpush1.bf16.xpose.msra.mxu0 0
        %1746 = vmatprep.subr.bf16.mxu0 0
        %1747 = vmatpush1.bf16.xpose.msra.mxu0 0
        %1748 = vmatprep.subr.bf16.mxu0 0
        %1749 = vmatpush1.bf16.xpose.msra.mxu0 0
        %1750 = vmatprep.subr.bf16.mxu0 0
        %1751 = vmatpush1.bf16.xpose.msra.mxu0 0
        %1752 = vmatprep.subr.bf16.mxu0 0
        %1753 = vmatpush1.bf16.xpose.msra.mxu0 %v1736
        %1754 = vmatprep.subr.bf16.mxu0 0
        %1755 = vmatpush2.bf16.xpose.msra.mxu0 0
        %1756 = vmatprep.subr.bf16.mxu0 0
        %1757 = vmatpush2.bf16.xpose.msra.mxu0 0
        %1758 = vmatprep.subr.bf16.mxu0 0
        %1759 = vmatpush2.bf16.xpose.msra.mxu0 0
        %1760 = vmatprep.subr.bf16.mxu0 0
        %1761 = vmatpush2.bf16.xpose.msra.mxu0 0
        %1762 = vmatprep.subr.bf16.mxu0 0
        %1763 = vmatpush2.bf16.xpose.msra.mxu0 0
        %1764 = vmatprep.subr.bf16.mxu0 0
        %1765 = vmatpush2.bf16.xpose.msra.mxu0 0
        %1766 = vmatprep.subr.bf16.mxu0 0
        %1767 = vmatpush2.bf16.xpose.msra.mxu0 0
        %1768 = vmatprep.subr.bf16.mxu0 0
        %1769 = vmatpush2.bf16.xpose.msra.mxu0 0
        %1770 = vmatprep.mubr.bf16.mxu0 0
        %1771 = vmatmul.mubr.bf16.gmra.mxu0 %v1733
        %v1772 = vpop.f32.mrf.mxu0
        %v1773 = vadd.f32 0.0, %v1772
        %v1774 = vpop.f32.mrf.mxu0
        %v1775 = vpop.f32.mrf.mxu0
        %v1776 = vpop.f32.mrf.mxu0
        %1777 = vdwg.mxu0
        %vm1778 = vcmask 64512
        %v1779 = vsel %vm1778, %v1727, -inf
        %1780 = vmax.xlane.f32.xlu0 %v1779
        %v1781 = vpop.xlane.xlu0 %1780
        %v1782 = vsel %vm1778, %v1773, -inf
        %1783 = vmax.xlane.f32.xlu0 %v1782
        %v1784 = vpop.xlane.xlu0 %1783
        %v1785 = vsub.f32 %v1727, %v1781
        %v1786 = vsub.f32 %v1773, %v1784
        %v1787 = vmul.f32 %v1785, 1.442695
        %v1788 = vpow.pop %v1787
        %v1789 = vmul.f32 %v1786, 1.442695
        %v1790 = vpow.pop %v1789
        %v1791 = vsel %vm1778, %v1788, 0.0
        %1792 = vadd.xlane.f32.xlu0 %v1791
        %v1793 = vpop.xlane.xlu0 %1792
        %v1794 = vsel %vm1778, %v1790, 0.0
        %1795 = vadd.xlane.f32.xlu0 %v1794
        %v1796 = vpop.xlane.xlu0 %1795
        %v1797 = vrcp.pop %v1793
        %v1798 = vrcp.pop %v1796
        %v1799 = vmul.f32 %v1788, %v1797
        %v1800 = vmul.f32 %v1790, %v1798
        %v1801 = vpack.c.bf16 %v1799, %v1799
        %v1802 = vpack.c.bf16 %v1800, %v1800
        %v1803 = vpack.c.bf16 %v1675, %v1675
        %v1804 = vpack.c.bf16 %v1678, %v1678
        %v1806 = vsel %vm1778, %v1801, 0
        %vm1808 = vcmask 1043456
        %v1810 = vsel %vm1808, %v1803, 0
        %1812 = vmatprep.subr.bf16.mxu0 0
        %1813 = vmatpush1.bf16.msra.mxu0 0
        %1814 = vmatprep.subr.bf16.mxu0 0
        %1815 = vmatpush1.bf16.msra.mxu0 0
        %1816 = vmatprep.subr.bf16.mxu0 0
        %1817 = vmatpush1.bf16.msra.mxu0 0
        %1818 = vmatprep.subr.bf16.mxu0 0
        %1819 = vmatpush1.bf16.msra.mxu0 0
        %1820 = vmatprep.subr.bf16.mxu0 0
        %1821 = vmatpush1.bf16.msra.mxu0 0
        %1822 = vmatprep.subr.bf16.mxu0 0
        %1823 = vmatpush1.bf16.msra.mxu0 0
        %1824 = vmatprep.subr.bf16.mxu0 0
        %1825 = vmatpush1.bf16.msra.mxu0 0
        %1826 = vmatprep.subr.bf16.mxu0 0
        %1827 = vmatpush1.bf16.msra.mxu0 %v1810
        %1828 = vmatprep.subr.bf16.mxu0 0
        %1829 = vmatpush2.bf16.msra.mxu0 0
        %1830 = vmatprep.subr.bf16.mxu0 0
        %1831 = vmatpush2.bf16.msra.mxu0 0
        %1832 = vmatprep.subr.bf16.mxu0 0
        %1833 = vmatpush2.bf16.msra.mxu0 0
        %1834 = vmatprep.subr.bf16.mxu0 0
        %1835 = vmatpush2.bf16.msra.mxu0 0
        %1836 = vmatprep.subr.bf16.mxu0 0
        %1837 = vmatpush2.bf16.msra.mxu0 0
        %1838 = vmatprep.subr.bf16.mxu0 0
        %1839 = vmatpush2.bf16.msra.mxu0 0
        %1840 = vmatprep.subr.bf16.mxu0 0
        %1841 = vmatpush2.bf16.msra.mxu0 0
        %1842 = vmatprep.subr.bf16.mxu0 0
        %1843 = vmatpush2.bf16.msra.mxu0 0
        %1844 = vmatprep.mubr.bf16.mxu0 0
        %1845 = vmatmul.mubr.bf16.gmra.mxu0 %v1806
        %v1846 = vpop.f32.mrf.mxu0
        %v1847 = vadd.f32 0.0, %v1846
        %v1848 = vpop.f32.mrf.mxu0
        %v1849 = vpop.f32.mrf.mxu0
        %v1850 = vpop.f32.mrf.mxu0
        %1851 = vdwg.mxu0
        %v1853 = vsel %vm1778, %v1802, 0
        %v1856 = vsel %vm1808, %v1804, 0
        %1858 = vmatprep.subr.bf16.mxu0 0
        %1859 = vmatpush1.bf16.msra.mxu0 0
        %1860 = vmatprep.subr.bf16.mxu0 0
        %1861 = vmatpush1.bf16.msra.mxu0 0
        %1862 = vmatprep.subr.bf16.mxu0 0
        %1863 = vmatpush1.bf16.msra.mxu0 0
        %1864 = vmatprep.subr.bf16.mxu0 0
        %1865 = vmatpush1.bf16.msra.mxu0 0
        %1866 = vmatprep.subr.bf16.mxu0 0
        %1867 = vmatpush1.bf16.msra.mxu0 0
        %1868 = vmatprep.subr.bf16.mxu0 0
        %1869 = vmatpush1.bf16.msra.mxu0 0
        %1870 = vmatprep.subr.bf16.mxu0 0
        %1871 = vmatpush1.bf16.msra.mxu0 0
        %1872 = vmatprep.subr.bf16.mxu0 0
        %1873 = vmatpush1.bf16.msra.mxu0 %v1856
        %1874 = vmatprep.subr.bf16.mxu0 0
        %1875 = vmatpush2.bf16.msra.mxu0 0
        %1876 = vmatprep.subr.bf16.mxu0 0
        %1877 = vmatpush2.bf16.msra.mxu0 0
        %1878 = vmatprep.subr.bf16.mxu0 0
        %1879 = vmatpush2.bf16.msra.mxu0 0
        %1880 = vmatprep.subr.bf16.mxu0 0
        %1881 = vmatpush2.bf16.msra.mxu0 0
        %1882 = vmatprep.subr.bf16.mxu0 0
        %1883 = vmatpush2.bf16.msra.mxu0 0
        %1884 = vmatprep.subr.bf16.mxu0 0
        %1885 = vmatpush2.bf16.msra.mxu0 0
        %1886 = vmatprep.subr.bf16.mxu0 0
        %1887 = vmatpush2.bf16.msra.mxu0 0
        %1888 = vmatprep.subr.bf16.mxu0 0
        %1889 = vmatpush2.bf16.msra.mxu0 0
        %1890 = vmatprep.mubr.bf16.mxu0 0
        %1891 = vmatmul.mubr.bf16.gmra.mxu0 %v1853
        %v1892 = vpop.f32.mrf.mxu0
        %v1893 = vadd.f32 0.0, %v1892
        %v1894 = vpop.f32.mrf.mxu0
        %v1895 = vpop.f32.mrf.mxu0
        %v1896 = vpop.f32.mrf.mxu0
        %1897 = vdwg.mxu0
        %1899 = vrot.lane.b32.xlu0 %v1681, 96
        %v1900 = vpop.permute.xlu0 %1899
        %1902 = vrot.lane.b32.xlu0 %v1683, 96
        %v1903 = vpop.permute.xlu0 %1902
        %v1905 = vsel %vm1685, %v1900, 0
        %v1908 = vsel %vm1685, %v1903, 0
        %1910 = vmatprep.subr.bf16.mxu0 0
        %1911 = vmatpush1.bf16.xpose.msra.mxu0 0
        %1912 = vmatprep.subr.bf16.mxu0 0
        %1913 = vmatpush1.bf16.xpose.msra.mxu0 0
        %1914 = vmatprep.subr.bf16.mxu0 0
        %1915 = vmatpush1.bf16.xpose.msra.mxu0 0
        %1916 = vmatprep.subr.bf16.mxu0 0
        %1917 = vmatpush1.bf16.xpose.msra.mxu0 0
        %1918 = vmatprep.subr.bf16.mxu0 0
        %1919 = vmatpush1.bf16.xpose.msra.mxu0 0
        %1920 = vmatprep.subr.bf16.mxu0 0
        %1921 = vmatpush1.bf16.xpose.msra.mxu0 0
        %1922 = vmatprep.subr.bf16.mxu0 0
        %1923 = vmatpush1.bf16.xpose.msra.mxu0 0
        %1924 = vmatprep.subr.bf16.mxu0 0
        %1925 = vmatpush1.bf16.xpose.msra.mxu0 %v1908
        %1926 = vmatprep.subr.bf16.mxu0 0
        %1927 = vmatpush2.bf16.xpose.msra.mxu0 0
        %1928 = vmatprep.subr.bf16.mxu0 0
        %1929 = vmatpush2.bf16.xpose.msra.mxu0 0
        %1930 = vmatprep.subr.bf16.mxu0 0
        %1931 = vmatpush2.bf16.xpose.msra.mxu0 0
        %1932 = vmatprep.subr.bf16.mxu0 0
        %1933 = vmatpush2.bf16.xpose.msra.mxu0 0
        %1934 = vmatprep.subr.bf16.mxu0 0
        %1935 = vmatpush2.bf16.xpose.msra.mxu0 0
        %1936 = vmatprep.subr.bf16.mxu0 0
        %1937 = vmatpush2.bf16.xpose.msra.mxu0 0
        %1938 = vmatprep.subr.bf16.mxu0 0
        %1939 = vmatpush2.bf16.xpose.msra.mxu0 0
        %1940 = vmatprep.subr.bf16.mxu0 0
        %1941 = vmatpush2.bf16.xpose.msra.mxu0 0
        %1942 = vmatprep.mubr.bf16.mxu0 0
        %1943 = vmatmul.mubr.bf16.gmra.mxu0 %v1905
        %v1944 = vpop.f32.mrf.mxu0
        %v1945 = vadd.f32 0.0, %v1944
        %v1946 = vpop.f32.mrf.mxu0
        %v1947 = vpop.f32.mrf.mxu0
        %v1948 = vpop.f32.mrf.mxu0
        %1949 = vdwg.mxu0
        %1951 = vrot.lane.b32.xlu0 %v1682, 96
        %v1952 = vpop.permute.xlu0 %1951
        %1954 = vrot.lane.b32.xlu0 %v1684, 96
        %v1955 = vpop.permute.xlu0 %1954
        %v1957 = vsel %vm1685, %v1952, 0
        %v1960 = vsel %vm1685, %v1955, 0
        %1962 = vmatprep.subr.bf16.mxu0 0
        %1963 = vmatpush1.bf16.xpose.msra.mxu0 0
        %1964 = vmatprep.subr.bf16.mxu0 0
        %1965 = vmatpush1.bf16.xpose.msra.mxu0 0
        %1966 = vmatprep.subr.bf16.mxu0 0
        %1967 = vmatpush1.bf16.xpose.msra.mxu0 0
        %1968 = vmatprep.subr.bf16.mxu0 0
        %1969 = vmatpush1.bf16.xpose.msra.mxu0 0
        %1970 = vmatprep.subr.bf16.mxu0 0
        %1971 = vmatpush1.bf16.xpose.msra.mxu0 0
        %1972 = vmatprep.subr.bf16.mxu0 0
        %1973 = vmatpush1.bf16.xpose.msra.mxu0 0
        %1974 = vmatprep.subr.bf16.mxu0 0
        %1975 = vmatpush1.bf16.xpose.msra.mxu0 0
        %1976 = vmatprep.subr.bf16.mxu0 0
        %1977 = vmatpush1.bf16.xpose.msra.mxu0 %v1960
        %1978 = vmatprep.subr.bf16.mxu0 0
        %1979 = vmatpush2.bf16.xpose.msra.mxu0 0
        %1980 = vmatprep.subr.bf16.mxu0 0
        %1981 = vmatpush2.bf16.xpose.msra.mxu0 0
        %1982 = vmatprep.subr.bf16.mxu0 0
        %1983 = vmatpush2.bf16.xpose.msra.mxu0 0
        %1984 = vmatprep.subr.bf16.mxu0 0
        %1985 = vmatpush2.bf16.xpose.msra.mxu0 0
        %1986 = vmatprep.subr.bf16.mxu0 0
        %1987 = vmatpush2.bf16.xpose.msra.mxu0 0
        %1988 = vmatprep.subr.bf16.mxu0 0
        %1989 = vmatpush2.bf16.xpose.msra.mxu0 0
        %1990 = vmatprep.subr.bf16.mxu0 0
        %1991 = vmatpush2.bf16.xpose.msra.mxu0 0
        %1992 = vmatprep.subr.bf16.mxu0 0
        %1993 = vmatpush2.bf16.xpose.msra.mxu0 0
        %1994 = vmatprep.mubr.bf16.mxu0 0
        %1995 = vmatmul.mubr.bf16.gmra.mxu0 %v1957
        %v1996 = vpop.f32.mrf.mxu0
        %v1997 = vadd.f32 0.0, %v1996
        %v1998 = vpop.f32.mrf.mxu0
        %v1999 = vpop.f32.mrf.mxu0
        %v2000 = vpop.f32.mrf.mxu0
        %2001 = vdwg.mxu0
        %v2002 = vsel %vm1778, %v1945, -inf
        %2003 = vmax.xlane.f32.xlu0 %v2002
        %v2004 = vpop.xlane.xlu0 %2003
        %v2005 = vsel %vm1778, %v1997, -inf
        %2006 = vmax.xlane.f32.xlu0 %v2005
        %v2007 = vpop.xlane.xlu0 %2006
        %v2008 = vsub.f32 %v1945, %v2004
        %v2009 = vsub.f32 %v1997, %v2007
        %v2010 = vmul.f32 %v2008, 1.442695
        %v2011 = vpow.pop %v2010
        %v2012 = vmul.f32 %v2009, 1.442695
        %v2013 = vpow.pop %v2012
        %v2014 = vsel %vm1778, %v2011, 0.0
        %2015 = vadd.xlane.f32.xlu0 %v2014
        %v2016 = vpop.xlane.xlu0 %2015
        %v2017 = vsel %vm1778, %v2013, 0.0
        %2018 = vadd.xlane.f32.xlu0 %v2017
        %v2019 = vpop.xlane.xlu0 %2018
        %v2020 = vrcp.pop %v2016
        %v2021 = vrcp.pop %v2019
        %v2022 = vmul.f32 %v2011, %v2020
        %v2023 = vmul.f32 %v2013, %v2021
        %v2024 = vpack.c.bf16 %v2022, %v2022
        %v2025 = vpack.c.bf16 %v2023, %v2023
        %2027 = vrot.lane.b32.xlu0 %v1803, 96
        %v2028 = vpop.permute.xlu0 %2027
        %v2030 = vsel %vm1778, %v2024, 0
        %v2033 = vsel %vm1808, %v2028, 0
        %2035 = vmatprep.subr.bf16.mxu0 0
        %2036 = vmatpush1.bf16.msra.mxu0 0
        %2037 = vmatprep.subr.bf16.mxu0 0
        %2038 = vmatpush1.bf16.msra.mxu0 0
        %2039 = vmatprep.subr.bf16.mxu0 0
        %2040 = vmatpush1.bf16.msra.mxu0 0
        %2041 = vmatprep.subr.bf16.mxu0 0
        %2042 = vmatpush1.bf16.msra.mxu0 0
        %2043 = vmatprep.subr.bf16.mxu0 0
        %2044 = vmatpush1.bf16.msra.mxu0 0
        %2045 = vmatprep.subr.bf16.mxu0 0
        %2046 = vmatpush1.bf16.msra.mxu0 0
        %2047 = vmatprep.subr.bf16.mxu0 0
        %2048 = vmatpush1.bf16.msra.mxu0 0
        %2049 = vmatprep.subr.bf16.mxu0 0
        %2050 = vmatpush1.bf16.msra.mxu0 %v2033
        %2051 = vmatprep.subr.bf16.mxu0 0
        %2052 = vmatpush2.bf16.msra.mxu0 0
        %2053 = vmatprep.subr.bf16.mxu0 0
        %2054 = vmatpush2.bf16.msra.mxu0 0
        %2055 = vmatprep.subr.bf16.mxu0 0
        %2056 = vmatpush2.bf16.msra.mxu0 0
        %2057 = vmatprep.subr.bf16.mxu0 0
        %2058 = vmatpush2.bf16.msra.mxu0 0
        %2059 = vmatprep.subr.bf16.mxu0 0
        %2060 = vmatpush2.bf16.msra.mxu0 0
        %2061 = vmatprep.subr.bf16.mxu0 0
        %2062 = vmatpush2.bf16.msra.mxu0 0
        %2063 = vmatprep.subr.bf16.mxu0 0
        %2064 = vmatpush2.bf16.msra.mxu0 0
        %2065 = vmatprep.subr.bf16.mxu0 0
        %2066 = vmatpush2.bf16.msra.mxu0 0
        %2067 = vmatprep.mubr.bf16.mxu0 0
        %2068 = vmatmul.mubr.bf16.gmra.mxu0 %v2030
        %v2069 = vpop.f32.mrf.mxu0
        %v2070 = vadd.f32 0.0, %v2069
        %v2071 = vpop.f32.mrf.mxu0
        %v2072 = vpop.f32.mrf.mxu0
        %v2073 = vpop.f32.mrf.mxu0
        %2074 = vdwg.mxu0
        %2076 = vrot.lane.b32.xlu0 %v1804, 96
        %v2077 = vpop.permute.xlu0 %2076
        %v2079 = vsel %vm1778, %v2025, 0
        %v2082 = vsel %vm1808, %v2077, 0
        %2084 = vmatprep.subr.bf16.mxu0 0
        %2085 = vmatpush1.bf16.msra.mxu0 0
        %2086 = vmatprep.subr.bf16.mxu0 0
        %2087 = vmatpush1.bf16.msra.mxu0 0
        %2088 = vmatprep.subr.bf16.mxu0 0
        %2089 = vmatpush1.bf16.msra.mxu0 0
        %2090 = vmatprep.subr.bf16.mxu0 0
        %2091 = vmatpush1.bf16.msra.mxu0 0
        %2092 = vmatprep.subr.bf16.mxu0 0
        %2093 = vmatpush1.bf16.msra.mxu0 0
        %2094 = vmatprep.subr.bf16.mxu0 0
        %2095 = vmatpush1.bf16.msra.mxu0 0
        %2096 = vmatprep.subr.bf16.mxu0 0
        %2097 = vmatpush1.bf16.msra.mxu0 0
        %2098 = vmatprep.subr.bf16.mxu0 0
        %2099 = vmatpush1.bf16.msra.mxu0 %v2082
        %2100 = vmatprep.subr.bf16.mxu0 0
        %2101 = vmatpush2.bf16.msra.mxu0 0
        %2102 = vmatprep.subr.bf16.mxu0 0
        %2103 = vmatpush2.bf16.msra.mxu0 0
        %2104 = vmatprep.subr.bf16.mxu0 0
        %2105 = vmatpush2.bf16.msra.mxu0 0
        %2106 = vmatprep.subr.bf16.mxu0 0
        %2107 = vmatpush2.bf16.msra.mxu0 0
        %2108 = vmatprep.subr.bf16.mxu0 0
        %2109 = vmatpush2.bf16.msra.mxu0 0
        %2110 = vmatprep.subr.bf16.mxu0 0
        %2111 = vmatpush2.bf16.msra.mxu0 0
        %2112 = vmatprep.subr.bf16.mxu0 0
        %2113 = vmatpush2.bf16.msra.mxu0 0
        %2114 = vmatprep.subr.bf16.mxu0 0
        %2115 = vmatpush2.bf16.msra.mxu0 0
        %2116 = vmatprep.mubr.bf16.mxu0 0
        %2117 = vmatmul.mubr.bf16.gmra.mxu0 %v2079
        %v2118 = vpop.f32.mrf.mxu0
        %v2119 = vadd.f32 0.0, %v2118
        %v2120 = vpop.f32.mrf.mxu0
        %v2121 = vpop.f32.mrf.mxu0
        %v2122 = vpop.f32.mrf.mxu0
        %2123 = vdwg.mxu0
        %2124 = vrot.lane.b32.xlu0 %v1681, 64
        %v2125 = vpop.permute.xlu0 %2124
        %2126 = vrot.lane.b32.xlu0 %v1683, 64
        %v2127 = vpop.permute.xlu0 %2126
        %v2129 = vsel %vm1685, %v2125, 0
        %v2132 = vsel %vm1685, %v2127, 0
        %2134 = vmatprep.subr.bf16.mxu0 0
        %2135 = vmatpush1.bf16.xpose.msra.mxu0 0
        %2136 = vmatprep.subr.bf16.mxu0 0
        %2137 = vmatpush1.bf16.xpose.msra.mxu0 0
        %2138 = vmatprep.subr.bf16.mxu0 0
        %2139 = vmatpush1.bf16.xpose.msra.mxu0 0
        %2140 = vmatprep.subr.bf16.mxu0 0
        %2141 = vmatpush1.bf16.xpose.msra.mxu0 0
        %2142 = vmatprep.subr.bf16.mxu0 0
        %2143 = vmatpush1.bf16.xpose.msra.mxu0 0
        %2144 = vmatprep.subr.bf16.mxu0 0
        %2145 = vmatpush1.bf16.xpose.msra.mxu0 0
        %2146 = vmatprep.subr.bf16.mxu0 0
        %2147 = vmatpush1.bf16.xpose.msra.mxu0 0
        %2148 = vmatprep.subr.bf16.mxu0 0
        %2149 = vmatpush1.bf16.xpose.msra.mxu0 %v2132
        %2150 = vmatprep.subr.bf16.mxu0 0
        %2151 = vmatpush2.bf16.xpose.msra.mxu0 0
        %2152 = vmatprep.subr.bf16.mxu0 0
        %2153 = vmatpush2.bf16.xpose.msra.mxu0 0
        %2154 = vmatprep.subr.bf16.mxu0 0
        %2155 = vmatpush2.bf16.xpose.msra.mxu0 0
        %2156 = vmatprep.subr.bf16.mxu0 0
        %2157 = vmatpush2.bf16.xpose.msra.mxu0 0
        %2158 = vmatprep.subr.bf16.mxu0 0
        %2159 = vmatpush2.bf16.xpose.msra.mxu0 0
        %2160 = vmatprep.subr.bf16.mxu0 0
        %2161 = vmatpush2.bf16.xpose.msra.mxu0 0
        %2162 = vmatprep.subr.bf16.mxu0 0
        %2163 = vmatpush2.bf16.xpose.msra.mxu0 0
        %2164 = vmatprep.subr.bf16.mxu0 0
        %2165 = vmatpush2.bf16.xpose.msra.mxu0 0
        %2166 = vmatprep.mubr.bf16.mxu0 0
        %2167 = vmatmul.mubr.bf16.gmra.mxu0 %v2129
        %v2168 = vpop.f32.mrf.mxu0
        %v2169 = vadd.f32 0.0, %v2168
        %v2170 = vpop.f32.mrf.mxu0
        %v2171 = vpop.f32.mrf.mxu0
        %v2172 = vpop.f32.mrf.mxu0
        %2173 = vdwg.mxu0
        %2174 = vrot.lane.b32.xlu0 %v1682, 64
        %v2175 = vpop.permute.xlu0 %2174
        %2176 = vrot.lane.b32.xlu0 %v1684, 64
        %v2177 = vpop.permute.xlu0 %2176
        %v2179 = vsel %vm1685, %v2175, 0
        %v2182 = vsel %vm1685, %v2177, 0
        %2184 = vmatprep.subr.bf16.mxu0 0
        %2185 = vmatpush1.bf16.xpose.msra.mxu0 0
        %2186 = vmatprep.subr.bf16.mxu0 0
        %2187 = vmatpush1.bf16.xpose.msra.mxu0 0
        %2188 = vmatprep.subr.bf16.mxu0 0
        %2189 = vmatpush1.bf16.xpose.msra.mxu0 0
        %2190 = vmatprep.subr.bf16.mxu0 0
        %2191 = vmatpush1.bf16.xpose.msra.mxu0 0
        %2192 = vmatprep.subr.bf16.mxu0 0
        %2193 = vmatpush1.bf16.xpose.msra.mxu0 0
        %2194 = vmatprep.subr.bf16.mxu0 0
        %2195 = vmatpush1.bf16.xpose.msra.mxu0 0
        %2196 = vmatprep.subr.bf16.mxu0 0
        %2197 = vmatpush1.bf16.xpose.msra.mxu0 0
        %2198 = vmatprep.subr.bf16.mxu0 0
        %2199 = vmatpush1.bf16.xpose.msra.mxu0 %v2182
        %2200 = vmatprep.subr.bf16.mxu0 0
        %2201 = vmatpush2.bf16.xpose.msra.mxu0 0
        %2202 = vmatprep.subr.bf16.mxu0 0
        %2203 = vmatpush2.bf16.xpose.msra.mxu0 0
        %2204 = vmatprep.subr.bf16.mxu0 0
        %2205 = vmatpush2.bf16.xpose.msra.mxu0 0
        %2206 = vmatprep.subr.bf16.mxu0 0
        %2207 = vmatpush2.bf16.xpose.msra.mxu0 0
        %2208 = vmatprep.subr.bf16.mxu0 0
        %2209 = vmatpush2.bf16.xpose.msra.mxu0 0
        %2210 = vmatprep.subr.bf16.mxu0 0
        %2211 = vmatpush2.bf16.xpose.msra.mxu0 0
        %2212 = vmatprep.subr.bf16.mxu0 0
        %2213 = vmatpush2.bf16.xpose.msra.mxu0 0
        %2214 = vmatprep.subr.bf16.mxu0 0
        %2215 = vmatpush2.bf16.xpose.msra.mxu0 0
        %2216 = vmatprep.mubr.bf16.mxu0 0
        %2217 = vmatmul.mubr.bf16.gmra.mxu0 %v2179
        %v2218 = vpop.f32.mrf.mxu0
        %v2219 = vadd.f32 0.0, %v2218
        %v2220 = vpop.f32.mrf.mxu0
        %v2221 = vpop.f32.mrf.mxu0
        %v2222 = vpop.f32.mrf.mxu0
        %2223 = vdwg.mxu0
        %v2224 = vsel %vm1778, %v2169, -inf
        %2225 = vmax.xlane.f32.xlu0 %v2224
        %v2226 = vpop.xlane.xlu0 %2225
        %v2227 = vsel %vm1778, %v2219, -inf
        %2228 = vmax.xlane.f32.xlu0 %v2227
        %v2229 = vpop.xlane.xlu0 %2228
        %v2230 = vsub.f32 %v2169, %v2226
        %v2231 = vsub.f32 %v2219, %v2229
        %v2232 = vmul.f32 %v2230, 1.442695
        %v2233 = vpow.pop %v2232
        %v2234 = vmul.f32 %v2231, 1.442695
        %v2235 = vpow.pop %v2234
        %v2236 = vsel %vm1778, %v2233, 0.0
        %2237 = vadd.xlane.f32.xlu0 %v2236
        %v2238 = vpop.xlane.xlu0 %2237
        %v2239 = vsel %vm1778, %v2235, 0.0
        %2240 = vadd.xlane.f32.xlu0 %v2239
        %v2241 = vpop.xlane.xlu0 %2240
        %v2242 = vrcp.pop %v2238
        %v2243 = vrcp.pop %v2241
        %v2244 = vmul.f32 %v2233, %v2242
        %v2245 = vmul.f32 %v2235, %v2243
        %v2246 = vpack.c.bf16 %v2244, %v2244
        %v2247 = vpack.c.bf16 %v2245, %v2245
        %2248 = vrot.lane.b32.xlu0 %v1803, 64
        %v2249 = vpop.permute.xlu0 %2248
        %v2251 = vsel %vm1778, %v2246, 0
        %v2254 = vsel %vm1808, %v2249, 0
        %2256 = vmatprep.subr.bf16.mxu0 0
        %2257 = vmatpush1.bf16.msra.mxu0 0
        %2258 = vmatprep.subr.bf16.mxu0 0
        %2259 = vmatpush1.bf16.msra.mxu0 0
        %2260 = vmatprep.subr.bf16.mxu0 0
        %2261 = vmatpush1.bf16.msra.mxu0 0
        %2262 = vmatprep.subr.bf16.mxu0 0
        %2263 = vmatpush1.bf16.msra.mxu0 0
        %2264 = vmatprep.subr.bf16.mxu0 0
        %2265 = vmatpush1.bf16.msra.mxu0 0
        %2266 = vmatprep.subr.bf16.mxu0 0
        %2267 = vmatpush1.bf16.msra.mxu0 0
        %2268 = vmatprep.subr.bf16.mxu0 0
        %2269 = vmatpush1.bf16.msra.mxu0 0
        %2270 = vmatprep.subr.bf16.mxu0 0
        %2271 = vmatpush1.bf16.msra.mxu0 %v2254
        %2272 = vmatprep.subr.bf16.mxu0 0
        %2273 = vmatpush2.bf16.msra.mxu0 0
        %2274 = vmatprep.subr.bf16.mxu0 0
        %2275 = vmatpush2.bf16.msra.mxu0 0
        %2276 = vmatprep.subr.bf16.mxu0 0
        %2277 = vmatpush2.bf16.msra.mxu0 0
        %2278 = vmatprep.subr.bf16.mxu0 0
        %2279 = vmatpush2.bf16.msra.mxu0 0
        %2280 = vmatprep.subr.bf16.mxu0 0
        %2281 = vmatpush2.bf16.msra.mxu0 0
        %2282 = vmatprep.subr.bf16.mxu0 0
        %2283 = vmatpush2.bf16.msra.mxu0 0
        %2284 = vmatprep.subr.bf16.mxu0 0
        %2285 = vmatpush2.bf16.msra.mxu0 0
        %2286 = vmatprep.subr.bf16.mxu0 0
        %2287 = vmatpush2.bf16.msra.mxu0 0
        %2288 = vmatprep.mubr.bf16.mxu0 0
        %2289 = vmatmul.mubr.bf16.gmra.mxu0 %v2251
        %v2290 = vpop.f32.mrf.mxu0
        %v2291 = vadd.f32 0.0, %v2290
        %v2292 = vpop.f32.mrf.mxu0
        %v2293 = vpop.f32.mrf.mxu0
        %v2294 = vpop.f32.mrf.mxu0
        %2295 = vdwg.mxu0
        %2296 = vrot.lane.b32.xlu0 %v1804, 64
        %v2297 = vpop.permute.xlu0 %2296
        %v2299 = vsel %vm1778, %v2247, 0
        %v2302 = vsel %vm1808, %v2297, 0
        %2304 = vmatprep.subr.bf16.mxu0 0
        %2305 = vmatpush1.bf16.msra.mxu0 0
        %2306 = vmatprep.subr.bf16.mxu0 0
        %2307 = vmatpush1.bf16.msra.mxu0 0
        %2308 = vmatprep.subr.bf16.mxu0 0
        %2309 = vmatpush1.bf16.msra.mxu0 0
        %2310 = vmatprep.subr.bf16.mxu0 0
        %2311 = vmatpush1.bf16.msra.mxu0 0
        %2312 = vmatprep.subr.bf16.mxu0 0
        %2313 = vmatpush1.bf16.msra.mxu0 0
        %2314 = vmatprep.subr.bf16.mxu0 0
        %2315 = vmatpush1.bf16.msra.mxu0 0
        %2316 = vmatprep.subr.bf16.mxu0 0
        %2317 = vmatpush1.bf16.msra.mxu0 0
        %2318 = vmatprep.subr.bf16.mxu0 0
        %2319 = vmatpush1.bf16.msra.mxu0 %v2302
        %2320 = vmatprep.subr.bf16.mxu0 0
        %2321 = vmatpush2.bf16.msra.mxu0 0
        %2322 = vmatprep.subr.bf16.mxu0 0
        %2323 = vmatpush2.bf16.msra.mxu0 0
        %2324 = vmatprep.subr.bf16.mxu0 0
        %2325 = vmatpush2.bf16.msra.mxu0 0
        %2326 = vmatprep.subr.bf16.mxu0 0
        %2327 = vmatpush2.bf16.msra.mxu0 0
        %2328 = vmatprep.subr.bf16.mxu0 0
        %2329 = vmatpush2.bf16.msra.mxu0 0
        %2330 = vmatprep.subr.bf16.mxu0 0
        %2331 = vmatpush2.bf16.msra.mxu0 0
        %2332 = vmatprep.subr.bf16.mxu0 0
        %2333 = vmatpush2.bf16.msra.mxu0 0
        %2334 = vmatprep.subr.bf16.mxu0 0
        %2335 = vmatpush2.bf16.msra.mxu0 0
        %2336 = vmatprep.mubr.bf16.mxu0 0
        %2337 = vmatmul.mubr.bf16.gmra.mxu0 %v2299
        %v2338 = vpop.f32.mrf.mxu0
        %v2339 = vadd.f32 0.0, %v2338
        %v2340 = vpop.f32.mrf.mxu0
        %v2341 = vpop.f32.mrf.mxu0
        %v2342 = vpop.f32.mrf.mxu0
        %2343 = vdwg.mxu0
        %2344 = vrot.lane.b32.xlu0 %v1681, 32
        %v2345 = vpop.permute.xlu0 %2344
        %2346 = vrot.lane.b32.xlu0 %v1683, 32
        %v2347 = vpop.permute.xlu0 %2346
        %v2349 = vsel %vm1685, %v2345, 0
        %v2352 = vsel %vm1685, %v2347, 0
        %2354 = vmatprep.subr.bf16.mxu0 0
        %2355 = vmatpush1.bf16.xpose.msra.mxu0 0
        %2356 = vmatprep.subr.bf16.mxu0 0
        %2357 = vmatpush1.bf16.xpose.msra.mxu0 0
        %2358 = vmatprep.subr.bf16.mxu0 0
        %2359 = vmatpush1.bf16.xpose.msra.mxu0 0
        %2360 = vmatprep.subr.bf16.mxu0 0
        %2361 = vmatpush1.bf16.xpose.msra.mxu0 0
        %2362 = vmatprep.subr.bf16.mxu0 0
        %2363 = vmatpush1.bf16.xpose.msra.mxu0 0
        %2364 = vmatprep.subr.bf16.mxu0 0
        %2365 = vmatpush1.bf16.xpose.msra.mxu0 0
        %2366 = vmatprep.subr.bf16.mxu0 0
        %2367 = vmatpush1.bf16.xpose.msra.mxu0 0
        %2368 = vmatprep.subr.bf16.mxu0 0
        %2369 = vmatpush1.bf16.xpose.msra.mxu0 %v2352
        %2370 = vmatprep.subr.bf16.mxu0 0
        %2371 = vmatpush2.bf16.xpose.msra.mxu0 0
        %2372 = vmatprep.subr.bf16.mxu0 0
        %2373 = vmatpush2.bf16.xpose.msra.mxu0 0
        %2374 = vmatprep.subr.bf16.mxu0 0
        %2375 = vmatpush2.bf16.xpose.msra.mxu0 0
        %2376 = vmatprep.subr.bf16.mxu0 0
        %2377 = vmatpush2.bf16.xpose.msra.mxu0 0
        %2378 = vmatprep.subr.bf16.mxu0 0
        %2379 = vmatpush2.bf16.xpose.msra.mxu0 0
        %2380 = vmatprep.subr.bf16.mxu0 0
        %2381 = vmatpush2.bf16.xpose.msra.mxu0 0
        %2382 = vmatprep.subr.bf16.mxu0 0
        %2383 = vmatpush2.bf16.xpose.msra.mxu0 0
        %2384 = vmatprep.subr.bf16.mxu0 0
        %2385 = vmatpush2.bf16.xpose.msra.mxu0 0
        %2386 = vmatprep.mubr.bf16.mxu0 0
        %2387 = vmatmul.mubr.bf16.gmra.mxu0 %v2349
        %v2388 = vpop.f32.mrf.mxu0
        %v2389 = vadd.f32 0.0, %v2388
        %v2390 = vpop.f32.mrf.mxu0
        %v2391 = vpop.f32.mrf.mxu0
        %v2392 = vpop.f32.mrf.mxu0
        %2393 = vdwg.mxu0
        %2394 = vrot.lane.b32.xlu0 %v1682, 32
        %v2395 = vpop.permute.xlu0 %2394
        %2396 = vrot.lane.b32.xlu0 %v1684, 32
        %v2397 = vpop.permute.xlu0 %2396
        %v2399 = vsel %vm1685, %v2395, 0
        %v2402 = vsel %vm1685, %v2397, 0
        %2404 = vmatprep.subr.bf16.mxu0 0
        %2405 = vmatpush1.bf16.xpose.msra.mxu0 0
        %2406 = vmatprep.subr.bf16.mxu0 0
        %2407 = vmatpush1.bf16.xpose.msra.mxu0 0
        %2408 = vmatprep.subr.bf16.mxu0 0
        %2409 = vmatpush1.bf16.xpose.msra.mxu0 0
        %2410 = vmatprep.subr.bf16.mxu0 0
        %2411 = vmatpush1.bf16.xpose.msra.mxu0 0
        %2412 = vmatprep.subr.bf16.mxu0 0
        %2413 = vmatpush1.bf16.xpose.msra.mxu0 0
        %2414 = vmatprep.subr.bf16.mxu0 0
        %2415 = vmatpush1.bf16.xpose.msra.mxu0 0
        %2416 = vmatprep.subr.bf16.mxu0 0
        %2417 = vmatpush1.bf16.xpose.msra.mxu0 0
        %2418 = vmatprep.subr.bf16.mxu0 0
        %2419 = vmatpush1.bf16.xpose.msra.mxu0 %v2402
        %2420 = vmatprep.subr.bf16.mxu0 0
        %2421 = vmatpush2.bf16.xpose.msra.mxu0 0
        %2422 = vmatprep.subr.bf16.mxu0 0
        %2423 = vmatpush2.bf16.xpose.msra.mxu0 0
        %2424 = vmatprep.subr.bf16.mxu0 0
        %2425 = vmatpush2.bf16.xpose.msra.mxu0 0
        %2426 = vmatprep.subr.bf16.mxu0 0
        %2427 = vmatpush2.bf16.xpose.msra.mxu0 0
        %2428 = vmatprep.subr.bf16.mxu0 0
        %2429 = vmatpush2.bf16.xpose.msra.mxu0 0
        %2430 = vmatprep.subr.bf16.mxu0 0
        %2431 = vmatpush2.bf16.xpose.msra.mxu0 0
        %2432 = vmatprep.subr.bf16.mxu0 0
        %2433 = vmatpush2.bf16.xpose.msra.mxu0 0
        %2434 = vmatprep.subr.bf16.mxu0 0
        %2435 = vmatpush2.bf16.xpose.msra.mxu0 0
        %2436 = vmatprep.mubr.bf16.mxu0 0
        %2437 = vmatmul.mubr.bf16.gmra.mxu0 %v2399
        %v2438 = vpop.f32.mrf.mxu0
        %v2439 = vadd.f32 0.0, %v2438
        %v2440 = vpop.f32.mrf.mxu0
        %v2441 = vpop.f32.mrf.mxu0
        %v2442 = vpop.f32.mrf.mxu0
        %2443 = vdwg.mxu0
        %v2444 = vsel %vm1778, %v2389, -inf
        %2445 = vmax.xlane.f32.xlu0 %v2444
        %v2446 = vpop.xlane.xlu0 %2445
        %v2447 = vsel %vm1778, %v2439, -inf
        %2448 = vmax.xlane.f32.xlu0 %v2447
        %v2449 = vpop.xlane.xlu0 %2448
        %v2450 = vsub.f32 %v2389, %v2446
        %v2451 = vsub.f32 %v2439, %v2449
        %v2452 = vmul.f32 %v2450, 1.442695
        %v2453 = vpow.pop %v2452
        %v2454 = vmul.f32 %v2451, 1.442695
        %v2455 = vpow.pop %v2454
        %v2456 = vsel %vm1778, %v2453, 0.0
        %2457 = vadd.xlane.f32.xlu0 %v2456
        %v2458 = vpop.xlane.xlu0 %2457
        %v2459 = vsel %vm1778, %v2455, 0.0
        %2460 = vadd.xlane.f32.xlu0 %v2459
        %v2461 = vpop.xlane.xlu0 %2460
        %v2462 = vrcp.pop %v2458
        %v2463 = vrcp.pop %v2461
        %v2464 = vmul.f32 %v2453, %v2462
        %v2465 = vmul.f32 %v2455, %v2463
        %v2466 = vpack.c.bf16 %v2464, %v2464
        %v2467 = vpack.c.bf16 %v2465, %v2465
        %2468 = vrot.lane.b32.xlu0 %v1803, 32
        %v2469 = vpop.permute.xlu0 %2468
        %v2471 = vsel %vm1778, %v2466, 0
        %v2474 = vsel %vm1808, %v2469, 0
        %2476 = vmatprep.subr.bf16.mxu0 0
        %2477 = vmatpush1.bf16.msra.mxu0 0
        %2478 = vmatprep.subr.bf16.mxu0 0
        %2479 = vmatpush1.bf16.msra.mxu0 0
        %2480 = vmatprep.subr.bf16.mxu0 0
        %2481 = vmatpush1.bf16.msra.mxu0 0
        %2482 = vmatprep.subr.bf16.mxu0 0
        %2483 = vmatpush1.bf16.msra.mxu0 0
        %2484 = vmatprep.subr.bf16.mxu0 0
        %2485 = vmatpush1.bf16.msra.mxu0 0
        %2486 = vmatprep.subr.bf16.mxu0 0
        %2487 = vmatpush1.bf16.msra.mxu0 0
        %2488 = vmatprep.subr.bf16.mxu0 0
        %2489 = vmatpush1.bf16.msra.mxu0 0
        %2490 = vmatprep.subr.bf16.mxu0 0
        %2491 = vmatpush1.bf16.msra.mxu0 %v2474
        %2492 = vmatprep.subr.bf16.mxu0 0
        %2493 = vmatpush2.bf16.msra.mxu0 0
        %2494 = vmatprep.subr.bf16.mxu0 0
        %2495 = vmatpush2.bf16.msra.mxu0 0
        %2496 = vmatprep.subr.bf16.mxu0 0
        %2497 = vmatpush2.bf16.msra.mxu0 0
        %2498 = vmatprep.subr.bf16.mxu0 0
        %2499 = vmatpush2.bf16.msra.mxu0 0
        %2500 = vmatprep.subr.bf16.mxu0 0
        %2501 = vmatpush2.bf16.msra.mxu0 0
        %2502 = vmatprep.subr.bf16.mxu0 0
        %2503 = vmatpush2.bf16.msra.mxu0 0
        %2504 = vmatprep.subr.bf16.mxu0 0
        %2505 = vmatpush2.bf16.msra.mxu0 0
        %2506 = vmatprep.subr.bf16.mxu0 0
        %2507 = vmatpush2.bf16.msra.mxu0 0
        %2508 = vmatprep.mubr.bf16.mxu0 0
        %2509 = vmatmul.mubr.bf16.gmra.mxu0 %v2471
        %v2510 = vpop.f32.mrf.mxu0
        %v2511 = vadd.f32 0.0, %v2510
        %v2512 = vpop.f32.mrf.mxu0
        %v2513 = vpop.f32.mrf.mxu0
        %v2514 = vpop.f32.mrf.mxu0
        %2515 = vdwg.mxu0
        %2516 = vrot.lane.b32.xlu0 %v1804, 32
        %v2517 = vpop.permute.xlu0 %2516
        %v2519 = vsel %vm1778, %v2467, 0
        %v2522 = vsel %vm1808, %v2517, 0
        %2524 = vmatprep.subr.bf16.mxu0 0
        %2525 = vmatpush1.bf16.msra.mxu0 0
        %2526 = vmatprep.subr.bf16.mxu0 0
        %2527 = vmatpush1.bf16.msra.mxu0 0
        %2528 = vmatprep.subr.bf16.mxu0 0
        %2529 = vmatpush1.bf16.msra.mxu0 0
        %2530 = vmatprep.subr.bf16.mxu0 0
        %2531 = vmatpush1.bf16.msra.mxu0 0
        %2532 = vmatprep.subr.bf16.mxu0 0
        %2533 = vmatpush1.bf16.msra.mxu0 0
        %2534 = vmatprep.subr.bf16.mxu0 0
        %2535 = vmatpush1.bf16.msra.mxu0 0
        %2536 = vmatprep.subr.bf16.mxu0 0
        %2537 = vmatpush1.bf16.msra.mxu0 0
        %2538 = vmatprep.subr.bf16.mxu0 0
        %2539 = vmatpush1.bf16.msra.mxu0 %v2522
        %2540 = vmatprep.subr.bf16.mxu0 0
        %2541 = vmatpush2.bf16.msra.mxu0 0
        %2542 = vmatprep.subr.bf16.mxu0 0
        %2543 = vmatpush2.bf16.msra.mxu0 0
        %2544 = vmatprep.subr.bf16.mxu0 0
        %2545 = vmatpush2.bf16.msra.mxu0 0
        %2546 = vmatprep.subr.bf16.mxu0 0
        %2547 = vmatpush2.bf16.msra.mxu0 0
        %2548 = vmatprep.subr.bf16.mxu0 0
        %2549 = vmatpush2.bf16.msra.mxu0 0
        %2550 = vmatprep.subr.bf16.mxu0 0
        %2551 = vmatpush2.bf16.msra.mxu0 0
        %2552 = vmatprep.subr.bf16.mxu0 0
        %2553 = vmatpush2.bf16.msra.mxu0 0
        %2554 = vmatprep.subr.bf16.mxu0 0
        %2555 = vmatpush2.bf16.msra.mxu0 0
        %2556 = vmatprep.mubr.bf16.mxu0 0
        %2557 = vmatmul.mubr.bf16.gmra.mxu0 %v2519
        %v2558 = vpop.f32.mrf.mxu0
        %v2559 = vadd.f32 0.0, %v2558
        %v2560 = vpop.f32.mrf.mxu0
        %v2561 = vpop.f32.mrf.mxu0
        %v2562 = vpop.f32.mrf.mxu0
        %2563 = vdwg.mxu0
        %2566 = vrot.lane.b32.xlu0 %v2070, 32
        %v2567 = vpop.permute.xlu0 %2566
        %2568 = vrot.lane.b32.xlu0 %v2119, 32
        %v2569 = vpop.permute.xlu0 %2568
        %2574 = vrot.lane.b32.xlu0 %v2291, 64
        %v2575 = vpop.permute.xlu0 %2574
        %2576 = vrot.lane.b32.xlu0 %v2339, 64
        %v2577 = vpop.permute.xlu0 %2576
        %2582 = vrot.lane.b32.xlu0 %v2511, 96
        %v2583 = vpop.permute.xlu0 %2582
        %2584 = vrot.lane.b32.xlu0 %v2559, 96
        %v2585 = vpop.permute.xlu0 %2584
        %v2588 = vsel %vm1685, %v1847, %v2567
        %v2589 = vsel %vm1685, %v1893, %v2569
        %vm2590 = vcmask 523264
        %v2591 = vsel %vm2590, %v2588, %v2575
        %v2592 = vsel %vm2590, %v2589, %v2577
        %vm2593 = vcmask 785408
        %v2594 = vsel %vm2593, %v2591, %v2583
        %v2595 = vsel %vm2593, %v2592, %v2585
        %v2596 = vpack.c.bf16 %v2595, %v2594
        %v2597 = vld [vmem:[%s1102] sm:$0xf]
        %v2598 = vld [vmem:[%s1102 + $0x4] sm:$0xf]
        %v2599 = vld [vmem:[%s1102 + $0x8] sm:$0xf]
        %v2600 = vld [vmem:[%s1102 + $0xc] sm:$0xf]
        %v2601 = vld [vmem:[%s1102 + $0x10] sm:$0xf]
        %v2602 = vld [vmem:[%s1102 + $0x14] sm:$0xf]
        %v2603 = vld [vmem:[%s1102 + $0x18] sm:$0xf]
        %v2604 = vld [vmem:[%s1102 + $0x1c] sm:$0xf]
        %v2605 = vld [vmem:[%s1102 + $0x20] sm:$0xf]
        %v2606 = vld [vmem:[%s1102 + $0x24] sm:$0xf]
        %v2607 = vld [vmem:[%s1102 + $0x28] sm:$0xf]
        %v2608 = vld [vmem:[%s1102 + $0x2c] sm:$0xf]
        %v2609 = vld [vmem:[%s1102 + $0x30] sm:$0xf]
        %v2610 = vld [vmem:[%s1102 + $0x34] sm:$0xf]
        %v2611 = vld [vmem:[%s1102 + $0x38] sm:$0xf]
        %v2612 = vld [vmem:[%s1102 + $0x3c] sm:$0xf]
        %v2613 = vld [vmem:[%s1389] sm:$0x1]
        %v2615 = vlaneseq
        %v2616 = vshrl.u32 %v2615, 7
        %v2617 = vsub.s32 0, %v2616
        %v2618 = vrot.slane %v2613, %v2617
        %v2636 = vunpack.c.l.b16 %v2597
        %v2637 = vunpack.c.l.b16 %v2598
        %v2638 = vunpack.c.l.b16 %v2599
        %v2639 = vunpack.c.l.b16 %v2600
        %v2640 = vunpack.c.l.b16 %v2601
        %v2641 = vunpack.c.l.b16 %v2602
        %v2642 = vunpack.c.l.b16 %v2603
        %v2643 = vunpack.c.l.b16 %v2604
        %v2644 = vunpack.c.l.b16 %v2605
        %v2645 = vunpack.c.l.b16 %v2606
        %v2646 = vunpack.c.l.b16 %v2607
        %v2647 = vunpack.c.l.b16 %v2608
        %v2648 = vunpack.c.l.b16 %v2609
        %v2649 = vunpack.c.l.b16 %v2610
        %v2650 = vunpack.c.l.b16 %v2611
        %v2651 = vunpack.c.l.b16 %v2612
        %v2652 = vpack.c.b16 %v2637, %v2636
        %v2653 = vpack.c.b16 %v2639, %v2638
        %v2654 = vpack.c.b16 %v2641, %v2640
        %v2655 = vpack.c.b16 %v2643, %v2642
        %v2656 = vpack.c.b16 %v2645, %v2644
        %v2657 = vpack.c.b16 %v2647, %v2646
        %v2658 = vpack.c.b16 %v2649, %v2648
        %v2659 = vpack.c.b16 %v2651, %v2650
        %2668 = vmatprep.subr.bf16.mxu0 0
        %2669 = vmatpush1.bf16.msra.mxu0 %v2659
        %2670 = vmatprep.subr.bf16.mxu0 0
        %2671 = vmatpush1.bf16.msra.mxu0 %v2658
        %2672 = vmatprep.subr.bf16.mxu0 0
        %2673 = vmatpush1.bf16.msra.mxu0 %v2657
        %2674 = vmatprep.subr.bf16.mxu0 0
        %2675 = vmatpush1.bf16.msra.mxu0 %v2656
        %2676 = vmatprep.subr.bf16.mxu0 0
        %2677 = vmatpush1.bf16.msra.mxu0 %v2655
        %2678 = vmatprep.subr.bf16.mxu0 0
        %2679 = vmatpush1.bf16.msra.mxu0 %v2654
        %2680 = vmatprep.subr.bf16.mxu0 0
        %2681 = vmatpush1.bf16.msra.mxu0 %v2653
        %2682 = vmatprep.subr.bf16.mxu0 0
        %2683 = vmatpush1.bf16.msra.mxu0 %v2652
        %2684 = vmatprep.subr.bf16.mxu0 0
        %2685 = vmatpush2.bf16.msra.mxu0 0
        %2686 = vmatprep.subr.bf16.mxu0 0
        %2687 = vmatpush2.bf16.msra.mxu0 0
        %2688 = vmatprep.subr.bf16.mxu0 0
        %2689 = vmatpush2.bf16.msra.mxu0 0
        %2690 = vmatprep.subr.bf16.mxu0 0
        %2691 = vmatpush2.bf16.msra.mxu0 0
        %2692 = vmatprep.subr.bf16.mxu0 0
        %2693 = vmatpush2.bf16.msra.mxu0 0
        %2694 = vmatprep.subr.bf16.mxu0 0
        %2695 = vmatpush2.bf16.msra.mxu0 0
        %2696 = vmatprep.subr.bf16.mxu0 0
        %2697 = vmatpush2.bf16.msra.mxu0 0
        %2698 = vmatprep.subr.bf16.mxu0 0
        %2699 = vmatpush2.bf16.msra.mxu0 0
        %2700 = vmatprep.mubr.bf16.mxu0 0
        %2701 = vmatmul.mubr.bf16.gmra.mxu0 %v2596
        %v2702 = vpop.f32.mrf.mxu0
        %v2703 = vadd.f32 %v2618, %v2702
        %v2704 = vpop.f32.mrf.mxu0
        %v2705 = vpop.f32.mrf.mxu0
        %v2706 = vadd.f32 %v2618, %v2705
        %v2707 = vpop.f32.mrf.mxu0
        %2708 = vdwg.mxu0
        %v2709 = vadd.f32 %v1413, %v2703
        %v2710 = vadd.f32 %v1414, %v2706
        %2711 = vadd.xlane.f32.xlu0 %v2709
        %v2712 = vpop.xlane.xlu0 %2711
        %2713 = vadd.xlane.f32.xlu0 %v2710
        %v2714 = vpop.xlane.xlu0 %2713
        %v2715 = vrcp.pop 128.0
        %v2716 = vmul.f32 %v2712, %v2715
        %v2717 = vmul.f32 %v2714, %v2715
        %v2718 = vsub.f32 %v2709, %v2716
        %v2719 = vsub.f32 %v2710, %v2717
        %v2720 = vmul.f32 %v2718, %v2718
        %v2721 = vmul.f32 %v2719, %v2719
        %2722 = vadd.xlane.f32.xlu0 %v2720
        %v2723 = vpop.xlane.xlu0 %2722
        %2724 = vadd.xlane.f32.xlu0 %v2721
        %v2725 = vpop.xlane.xlu0 %2724
        %v2726 = vmul.f32 %v2723, %v2715
        %v2727 = vmul.f32 %v2725, %v2715
        %v2728 = vadd.f32 %v2726, 1e-05
        %v2729 = vadd.f32 %v2727, 1e-05
        %v2730 = vrsqrt.pop %v2728
        %v2731 = vrsqrt.pop %v2729
        %v2732 = vmul.f32 %v2718, %v2730
        %v2733 = vmul.f32 %v2719, %v2731
        %v2734 = vld [vmem:[%s1110] sm:$0x1]
        %v2736 = vlaneseq
        %v2737 = vshrl.u32 %v2736, 7
        %v2738 = vsub.s32 0, %v2737
        %v2739 = vrot.slane %v2734, %v2738
        %v2741 = vmul.f32 %v2732, %v2739
        %v2742 = vmul.f32 %v2733, %v2739
        %v2743 = vld [vmem:[%s1118] sm:$0x1]
        %v2745 = vlaneseq
        %v2746 = vshrl.u32 %v2745, 7
        %v2747 = vsub.s32 0, %v2746
        %v2748 = vrot.slane %v2743, %v2747
        %v2750 = vadd.f32 %v2741, %v2748
        %v2751 = vadd.f32 %v2742, %v2748
        %v2752 = vpack.c.bf16 %v2751, %v2750
        %v2753 = vld [vmem:[%s1127] sm:$0xf]
        %v2754 = vld [vmem:[%s1127 + $0x4] sm:$0xf]
        %v2755 = vld [vmem:[%s1127 + $0x8] sm:$0xf]
        %v2756 = vld [vmem:[%s1127 + $0xc] sm:$0xf]
        %v2757 = vld [vmem:[%s1127 + $0x10] sm:$0xf]
        %v2758 = vld [vmem:[%s1127 + $0x14] sm:$0xf]
        %v2759 = vld [vmem:[%s1127 + $0x18] sm:$0xf]
        %v2760 = vld [vmem:[%s1127 + $0x1c] sm:$0xf]
        %v2761 = vld [vmem:[%s1127 + $0x20] sm:$0xf]
        %v2762 = vld [vmem:[%s1127 + $0x24] sm:$0xf]
        %v2763 = vld [vmem:[%s1127 + $0x28] sm:$0xf]
        %v2764 = vld [vmem:[%s1127 + $0x2c] sm:$0xf]
        %v2765 = vld [vmem:[%s1127 + $0x30] sm:$0xf]
        %v2766 = vld [vmem:[%s1127 + $0x34] sm:$0xf]
        %v2767 = vld [vmem:[%s1127 + $0x38] sm:$0xf]
        %v2768 = vld [vmem:[%s1127 + $0x3c] sm:$0xf]
        %v2769 = vld [vmem:[%s1135] sm:$0x1]
        %v2771 = vlaneseq
        %v2772 = vshrl.u32 %v2771, 7
        %v2773 = vsub.s32 0, %v2772
        %v2774 = vrot.slane %v2769, %v2773
        %v2792 = vunpack.c.l.b16 %v2753
        %v2793 = vunpack.c.l.b16 %v2754
        %v2794 = vunpack.c.l.b16 %v2755
        %v2795 = vunpack.c.l.b16 %v2756
        %v2796 = vunpack.c.l.b16 %v2757
        %v2797 = vunpack.c.l.b16 %v2758
        %v2798 = vunpack.c.l.b16 %v2759
        %v2799 = vunpack.c.l.b16 %v2760
        %v2800 = vunpack.c.l.b16 %v2761
        %v2801 = vunpack.c.l.b16 %v2762
        %v2802 = vunpack.c.l.b16 %v2763
        %v2803 = vunpack.c.l.b16 %v2764
        %v2804 = vunpack.c.l.b16 %v2765
        %v2805 = vunpack.c.l.b16 %v2766
        %v2806 = vunpack.c.l.b16 %v2767
        %v2807 = vunpack.c.l.b16 %v2768
        %v2808 = vpack.c.b16 %v2793, %v2792
        %v2809 = vpack.c.b16 %v2795, %v2794
        %v2810 = vpack.c.b16 %v2797, %v2796
        %v2811 = vpack.c.b16 %v2799, %v2798
        %v2812 = vpack.c.b16 %v2801, %v2800
        %v2813 = vpack.c.b16 %v2803, %v2802
        %v2814 = vpack.c.b16 %v2805, %v2804
        %v2815 = vpack.c.b16 %v2807, %v2806
        %2824 = vmatprep.subr.bf16.mxu0 0
        %2825 = vmatpush1.bf16.msra.mxu0 %v2815
        %2826 = vmatprep.subr.bf16.mxu0 0
        %2827 = vmatpush1.bf16.msra.mxu0 %v2814
        %2828 = vmatprep.subr.bf16.mxu0 0
        %2829 = vmatpush1.bf16.msra.mxu0 %v2813
        %2830 = vmatprep.subr.bf16.mxu0 0
        %2831 = vmatpush1.bf16.msra.mxu0 %v2812
        %2832 = vmatprep.subr.bf16.mxu0 0
        %2833 = vmatpush1.bf16.msra.mxu0 %v2811
        %2834 = vmatprep.subr.bf16.mxu0 0
        %2835 = vmatpush1.bf16.msra.mxu0 %v2810
        %2836 = vmatprep.subr.bf16.mxu0 0
        %2837 = vmatpush1.bf16.msra.mxu0 %v2809
        %2838 = vmatprep.subr.bf16.mxu0 0
        %2839 = vmatpush1.bf16.msra.mxu0 %v2808
        %2840 = vmatprep.subr.bf16.mxu0 0
        %2841 = vmatpush2.bf16.msra.mxu0 0
        %2842 = vmatprep.subr.bf16.mxu0 0
        %2843 = vmatpush2.bf16.msra.mxu0 0
        %2844 = vmatprep.subr.bf16.mxu0 0
        %2845 = vmatpush2.bf16.msra.mxu0 0
        %2846 = vmatprep.subr.bf16.mxu0 0
        %2847 = vmatpush2.bf16.msra.mxu0 0
        %2848 = vmatprep.subr.bf16.mxu0 0
        %2849 = vmatpush2.bf16.msra.mxu0 0
        %2850 = vmatprep.subr.bf16.mxu0 0
        %2851 = vmatpush2.bf16.msra.mxu0 0
        %2852 = vmatprep.subr.bf16.mxu0 0
        %2853 = vmatpush2.bf16.msra.mxu0 0
        %2854 = vmatprep.subr.bf16.mxu0 0
        %2855 = vmatpush2.bf16.msra.mxu0 0
        %2856 = vmatprep.mubr.bf16.mxu0 0
        %2857 = vmatmul.mubr.bf16.gmra.mxu0 %v2752
        %v2858 = vpop.f32.mrf.mxu0
        %v2859 = vadd.f32 %v2774, %v2858
        %v2860 = vpop.f32.mrf.mxu0
        %v2861 = vpop.f32.mrf.mxu0
        %v2862 = vadd.f32 %v2774, %v2861
        %v2863 = vpop.f32.mrf.mxu0
        %2864 = vdwg.mxu0
        %v2865 = vpack.c.bf16 %v1416, %v1415
        %v2866 = vpack.c.bf16 %v1418, %v1417
        %v2867 = vld [vmem:[%s1394] sm:$0xff]
        %v2868 = vld [vmem:[%s1394 + $0x8] sm:$0xff]
        %v2869 = vld [vmem:[%s1394 + $0x10] sm:$0xff]
        %v2870 = vld [vmem:[%s1394 + $0x18] sm:$0xff]
        %v2871 = vld [vmem:[%s1394 + $0x20] sm:$0xff]
        %v2872 = vld [vmem:[%s1394 + $0x28] sm:$0xff]
        %v2873 = vld [vmem:[%s1394 + $0x30] sm:$0xff]
        %v2874 = vld [vmem:[%s1394 + $0x38] sm:$0xff]
        %v2875 = vld [vmem:[%s1394 + $0x40] sm:$0xff]
        %v2876 = vld [vmem:[%s1394 + $0x48] sm:$0xff]
        %v2877 = vld [vmem:[%s1394 + $0x50] sm:$0xff]
        %v2878 = vld [vmem:[%s1394 + $0x58] sm:$0xff]
        %v2879 = vld [vmem:[%s1394 + $0x60] sm:$0xff]
        %v2880 = vld [vmem:[%s1394 + $0x68] sm:$0xff]
        %v2881 = vld [vmem:[%s1394 + $0x70] sm:$0xff]
        %v2882 = vld [vmem:[%s1394 + $0x78] sm:$0xff]
        %v2883 = vld [vmem:[%s1398] sm:$0x3]
        %v2885 = vlaneseq
        %v2886 = vshrl.u32 %v2885, 7
        %v2887 = vsub.s32 0, %v2886
        %v2888 = vrot.slane %v2883, %v2887
        %v2889 = vlaneseq
        %v2890 = vshrl.u32 %v2889, 7
        %v2891 = vsub.s32 1, %v2890
        %v2892 = vrot.slane %v2883, %v2891
        %v2911 = vunpack.c.l.b16 %v2867
        %v2912 = vunpack.c.h.b16 %v2867
        %v2913 = vunpack.c.l.b16 %v2868
        %v2914 = vunpack.c.h.b16 %v2868
        %v2915 = vunpack.c.l.b16 %v2869
        %v2916 = vunpack.c.h.b16 %v2869
        %v2917 = vunpack.c.l.b16 %v2870
        %v2918 = vunpack.c.h.b16 %v2870
        %v2919 = vunpack.c.l.b16 %v2871
        %v2920 = vunpack.c.h.b16 %v2871
        %v2921 = vunpack.c.l.b16 %v2872
        %v2922 = vunpack.c.h.b16 %v2872
        %v2923 = vunpack.c.l.b16 %v2873
        %v2924 = vunpack.c.h.b16 %v2873
        %v2925 = vunpack.c.l.b16 %v2874
        %v2926 = vunpack.c.h.b16 %v2874
        %v2927 = vunpack.c.l.b16 %v2875
        %v2928 = vunpack.c.h.b16 %v2875
        %v2929 = vunpack.c.l.b16 %v2876
        %v2930 = vunpack.c.h.b16 %v2876
        %v2931 = vunpack.c.l.b16 %v2877
        %v2932 = vunpack.c.h.b16 %v2877
        %v2933 = vunpack.c.l.b16 %v2878
        %v2934 = vunpack.c.h.b16 %v2878
        %v2935 = vunpack.c.l.b16 %v2879
        %v2936 = vunpack.c.h.b16 %v2879
        %v2937 = vunpack.c.l.b16 %v2880
        %v2938 = vunpack.c.h.b16 %v2880
        %v2939 = vunpack.c.l.b16 %v2881
        %v2940 = vunpack.c.h.b16 %v2881
        %v2941 = vunpack.c.l.b16 %v2882
        %v2942 = vunpack.c.h.b16 %v2882
        %v2943 = vpack.c.b16 %v2913, %v2911
        %v2944 = vpack.c.b16 %v2914, %v2912
        %v2945 = vpack.c.b16 %v2917, %v2915
        %v2946 = vpack.c.b16 %v2918, %v2916
        %v2947 = vpack.c.b16 %v2921, %v2919
        %v2948 = vpack.c.b16 %v2922, %v2920
        %v2949 = vpack.c.b16 %v2925, %v2923
        %v2950 = vpack.c.b16 %v2926, %v2924
        %v2951 = vpack.c.b16 %v2929, %v2927
        %v2952 = vpack.c.b16 %v2930, %v2928
        %v2953 = vpack.c.b16 %v2933, %v2931
        %v2954 = vpack.c.b16 %v2934, %v2932
        %v2955 = vpack.c.b16 %v2937, %v2935
        %v2956 = vpack.c.b16 %v2938, %v2936
        %v2957 = vpack.c.b16 %v2941, %v2939
        %v2958 = vpack.c.b16 %v2942, %v2940
        %2975 = vmatprep.subr.bf16.mxu0 %v2958
        %2976 = vmatpush1.bf16.msra.mxu0 %v2957
        %2977 = vmatprep.subr.bf16.mxu0 %v2956
        %2978 = vmatpush1.bf16.msra.mxu0 %v2955
        %2979 = vmatprep.subr.bf16.mxu0 %v2954
        %2980 = vmatpush1.bf16.msra.mxu0 %v2953
        %2981 = vmatprep.subr.bf16.mxu0 %v2952
        %2982 = vmatpush1.bf16.msra.mxu0 %v2951
        %2983 = vmatprep.subr.bf16.mxu0 %v2950
        %2984 = vmatpush1.bf16.msra.mxu0 %v2949
        %2985 = vmatprep.subr.bf16.mxu0 %v2948
        %2986 = vmatpush1.bf16.msra.mxu0 %v2947
        %2987 = vmatprep.subr.bf16.mxu0 %v2946
        %2988 = vmatpush1.bf16.msra.mxu0 %v2945
        %2989 = vmatprep.subr.bf16.mxu0 %v2944
        %2990 = vmatpush1.bf16.msra.mxu0 %v2943
        %2991 = vmatprep.subr.bf16.mxu0 0
        %2992 = vmatpush2.bf16.msra.mxu0 0
        %2993 = vmatprep.subr.bf16.mxu0 0
        %2994 = vmatpush2.bf16.msra.mxu0 0
        %2995 = vmatprep.subr.bf16.mxu0 0
        %2996 = vmatpush2.bf16.msra.mxu0 0
        %2997 = vmatprep.subr.bf16.mxu0 0
        %2998 = vmatpush2.bf16.msra.mxu0 0
        %2999 = vmatprep.subr.bf16.mxu0 0
        %3000 = vmatpush2.bf16.msra.mxu0 0
        %3001 = vmatprep.subr.bf16.mxu0 0
        %3002 = vmatpush2.bf16.msra.mxu0 0
        %3003 = vmatprep.subr.bf16.mxu0 0
        %3004 = vmatpush2.bf16.msra.mxu0 0
        %3005 = vmatprep.subr.bf16.mxu0 0
        %3006 = vmatpush2.bf16.msra.mxu0 0
        %3007 = vmatprep.mubr.bf16.mxu0 0
        %3008 = vmatmul.mubr.bf16.gmra.mxu0 %v2865
        %v3009 = vpop.f32.mrf.mxu0
        %v3010 = vadd.f32 %v2888, %v3009
        %v3011 = vpop.f32.mrf.mxu0
        %v3012 = vadd.f32 %v2892, %v3011
        %v3013 = vpop.f32.mrf.mxu0
        %v3014 = vadd.f32 %v2888, %v3013
        %v3015 = vpop.f32.mrf.mxu0
        %v3016 = vadd.f32 %v2892, %v3015
        %3017 = vmatprep.mubr.bf16.mxu0 0
        %3018 = vmatmul.mubr.bf16.gmra.mxu0 %v2866
        %v3019 = vpop.f32.mrf.mxu0
        %v3020 = vadd.f32 %v2888, %v3019
        %v3021 = vpop.f32.mrf.mxu0
        %v3022 = vadd.f32 %v2892, %v3021
        %v3023 = vpop.f32.mrf.mxu0
        %v3024 = vadd.f32 %v2888, %v3023
        %v3025 = vpop.f32.mrf.mxu0
        %v3026 = vadd.f32 %v2892, %v3025
        %3027 = vdwg.mxu0
        %v3028 = vpack.c.bf16 %v2859, %v2859
        %v3029 = vpack.c.bf16 %v2862, %v2862
        %v3030 = vpack.c.bf16 %v3014, %v3010
        %v3031 = vpack.c.bf16 %v3024, %v3020
        %v3033 = vsel %vm1685, %v3028, 0
        %v3036 = vsel %vm1685, %v3030, 0
        %3038 = vmatprep.subr.bf16.mxu0 0
        %3039 = vmatpush1.bf16.xpose.msra.mxu0 0
        %3040 = vmatprep.subr.bf16.mxu0 0
        %3041 = vmatpush1.bf16.xpose.msra.mxu0 0
        %3042 = vmatprep.subr.bf16.mxu0 0
        %3043 = vmatpush1.bf16.xpose.msra.mxu0 0
        %3044 = vmatprep.subr.bf16.mxu0 0
        %3045 = vmatpush1.bf16.xpose.msra.mxu0 0
        %3046 = vmatprep.subr.bf16.mxu0 0
        %3047 = vmatpush1.bf16.xpose.msra.mxu0 0
        %3048 = vmatprep.subr.bf16.mxu0 0
        %3049 = vmatpush1.bf16.xpose.msra.mxu0 0
        %3050 = vmatprep.subr.bf16.mxu0 0
        %3051 = vmatpush1.bf16.xpose.msra.mxu0 0
        %3052 = vmatprep.subr.bf16.mxu0 0
        %3053 = vmatpush1.bf16.xpose.msra.mxu0 %v3036
        %3054 = vmatprep.subr.bf16.mxu0 0
        %3055 = vmatpush2.bf16.xpose.msra.mxu0 0
        %3056 = vmatprep.subr.bf16.mxu0 0
        %3057 = vmatpush2.bf16.xpose.msra.mxu0 0
        %3058 = vmatprep.subr.bf16.mxu0 0
        %3059 = vmatpush2.bf16.xpose.msra.mxu0 0
        %3060 = vmatprep.subr.bf16.mxu0 0
        %3061 = vmatpush2.bf16.xpose.msra.mxu0 0
        %3062 = vmatprep.subr.bf16.mxu0 0
        %3063 = vmatpush2.bf16.xpose.msra.mxu0 0
        %3064 = vmatprep.subr.bf16.mxu0 0
        %3065 = vmatpush2.bf16.xpose.msra.mxu0 0
        %3066 = vmatprep.subr.bf16.mxu0 0
        %3067 = vmatpush2.bf16.xpose.msra.mxu0 0
        %3068 = vmatprep.subr.bf16.mxu0 0
        %3069 = vmatpush2.bf16.xpose.msra.mxu0 0
        %3070 = vmatprep.mubr.bf16.mxu0 0
        %3071 = vmatmul.mubr.bf16.gmra.mxu0 %v3033
        %v3072 = vpop.f32.mrf.mxu0
        %v3073 = vadd.f32 0.0, %v3072
        %v3074 = vpop.f32.mrf.mxu0
        %v3075 = vpop.f32.mrf.mxu0
        %v3076 = vpop.f32.mrf.mxu0
        %3077 = vdwg.mxu0
        %v3079 = vsel %vm1685, %v3029, 0
        %v3082 = vsel %vm1685, %v3031, 0
        %3084 = vmatprep.subr.bf16.mxu0 0
        %3085 = vmatpush1.bf16.xpose.msra.mxu0 0
        %3086 = vmatprep.subr.bf16.mxu0 0
        %3087 = vmatpush1.bf16.xpose.msra.mxu0 0
        %3088 = vmatprep.subr.bf16.mxu0 0
        %3089 = vmatpush1.bf16.xpose.msra.mxu0 0
        %3090 = vmatprep.subr.bf16.mxu0 0
        %3091 = vmatpush1.bf16.xpose.msra.mxu0 0
        %3092 = vmatprep.subr.bf16.mxu0 0
        %3093 = vmatpush1.bf16.xpose.msra.mxu0 0
        %3094 = vmatprep.subr.bf16.mxu0 0
        %3095 = vmatpush1.bf16.xpose.msra.mxu0 0
        %3096 = vmatprep.subr.bf16.mxu0 0
        %3097 = vmatpush1.bf16.xpose.msra.mxu0 0
        %3098 = vmatprep.subr.bf16.mxu0 0
        %3099 = vmatpush1.bf16.xpose.msra.mxu0 %v3082
        %3100 = vmatprep.subr.bf16.mxu0 0
        %3101 = vmatpush2.bf16.xpose.msra.mxu0 0
        %3102 = vmatprep.subr.bf16.mxu0 0
        %3103 = vmatpush2.bf16.xpose.msra.mxu0 0
        %3104 = vmatprep.subr.bf16.mxu0 0
        %3105 = vmatpush2.bf16.xpose.msra.mxu0 0
        %3106 = vmatprep.subr.bf16.mxu0 0
        %3107 = vmatpush2.bf16.xpose.msra.mxu0 0
        %3108 = vmatprep.subr.bf16.mxu0 0
        %3109 = vmatpush2.bf16.xpose.msra.mxu0 0
        %3110 = vmatprep.subr.bf16.mxu0 0
        %3111 = vmatpush2.bf16.xpose.msra.mxu0 0
        %3112 = vmatprep.subr.bf16.mxu0 0
        %3113 = vmatpush2.bf16.xpose.msra.mxu0 0
        %3114 = vmatprep.subr.bf16.mxu0 0
        %3115 = vmatpush2.bf16.xpose.msra.mxu0 0
        %3116 = vmatprep.mubr.bf16.mxu0 0
        %3117 = vmatmul.mubr.bf16.gmra.mxu0 %v3079
        %v3118 = vpop.f32.mrf.mxu0
        %v3119 = vadd.f32 0.0, %v3118
        %v3120 = vpop.f32.mrf.mxu0
        %v3121 = vpop.f32.mrf.mxu0
        %v3122 = vpop.f32.mrf.mxu0
        %3123 = vdwg.mxu0
        %vm3124 = vcmask 130048
        %v3125 = vsel %vm3124, %v3073, -inf
        %3126 = vmax.xlane.f32.xlu0 %v3125
        %v3127 = vpop.xlane.xlu0 %3126
        %v3128 = vsel %vm3124, %v3119, -inf
        %3129 = vmax.xlane.f32.xlu0 %v3128
        %v3130 = vpop.xlane.xlu0 %3129
        %v3131 = vsub.f32 %v3073, %v3127
        %v3132 = vsub.f32 %v3119, %v3130
        %v3133 = vmul.f32 %v3131, 1.442695
        %v3134 = vpow.pop %v3133
        %v3135 = vmul.f32 %v3132, 1.442695
        %v3136 = vpow.pop %v3135
        %v3137 = vsel %vm3124, %v3134, 0.0
        %3138 = vadd.xlane.f32.xlu0 %v3137
        %v3139 = vpop.xlane.xlu0 %3138
        %v3140 = vsel %vm3124, %v3136, 0.0
        %3141 = vadd.xlane.f32.xlu0 %v3140
        %v3142 = vpop.xlane.xlu0 %3141
        %v3143 = vrcp.pop %v3139
        %v3144 = vrcp.pop %v3142
        %v3145 = vmul.f32 %v3134, %v3143
        %v3146 = vmul.f32 %v3136, %v3144
        %v3147 = vpack.c.bf16 %v3145, %v3145
        %v3148 = vpack.c.bf16 %v3146, %v3146
        %v3149 = vpack.c.bf16 %v3016, %v3012
        %v3150 = vpack.c.bf16 %v3026, %v3022
        %v3152 = vsel %vm3124, %v3147, 0
        %3154 = vmatprep.subr.bf16.mxu0 0
        %3155 = vmatpush1.bf16.msra.mxu0 0
        %3156 = vmatprep.subr.bf16.mxu0 0
        %3157 = vmatpush1.bf16.msra.mxu0 0
        %3158 = vmatprep.subr.bf16.mxu0 0
        %3159 = vmatpush1.bf16.msra.mxu0 0
        %3160 = vmatprep.subr.bf16.mxu0 0
        %3161 = vmatpush1.bf16.msra.mxu0 0
        %3162 = vmatprep.subr.bf16.mxu0 0
        %3163 = vmatpush1.bf16.msra.mxu0 0
        %3164 = vmatprep.subr.bf16.mxu0 0
        %3165 = vmatpush1.bf16.msra.mxu0 0
        %3166 = vmatprep.subr.bf16.mxu0 0
        %3167 = vmatpush1.bf16.msra.mxu0 0
        %3168 = vmatprep.subr.bf16.mxu0 0
        %3169 = vmatpush1.bf16.msra.mxu0 %v3149
        %3170 = vmatprep.subr.bf16.mxu0 0
        %3171 = vmatpush2.bf16.msra.mxu0 0
        %3172 = vmatprep.subr.bf16.mxu0 0
        %3173 = vmatpush2.bf16.msra.mxu0 0
        %3174 = vmatprep.subr.bf16.mxu0 0
        %3175 = vmatpush2.bf16.msra.mxu0 0
        %3176 = vmatprep.subr.bf16.mxu0 0
        %3177 = vmatpush2.bf16.msra.mxu0 0
        %3178 = vmatprep.subr.bf16.mxu0 0
        %3179 = vmatpush2.bf16.msra.mxu0 0
        %3180 = vmatprep.subr.bf16.mxu0 0
        %3181 = vmatpush2.bf16.msra.mxu0 0
        %3182 = vmatprep.subr.bf16.mxu0 0
        %3183 = vmatpush2.bf16.msra.mxu0 0
        %3184 = vmatprep.subr.bf16.mxu0 0
        %3185 = vmatpush2.bf16.msra.mxu0 0
        %3186 = vmatprep.mubr.bf16.mxu0 0
        %3187 = vmatmul.mubr.bf16.gmra.mxu0 %v3152
        %v3188 = vpop.f32.mrf.mxu0
        %v3189 = vadd.f32 0.0, %v3188
        %v3190 = vpop.f32.mrf.mxu0
        %v3191 = vpop.f32.mrf.mxu0
        %v3192 = vpop.f32.mrf.mxu0
        %3193 = vdwg.mxu0
        %v3195 = vsel %vm3124, %v3148, 0
        %3197 = vmatprep.subr.bf16.mxu0 0
        %3198 = vmatpush1.bf16.msra.mxu0 0
        %3199 = vmatprep.subr.bf16.mxu0 0
        %3200 = vmatpush1.bf16.msra.mxu0 0
        %3201 = vmatprep.subr.bf16.mxu0 0
        %3202 = vmatpush1.bf16.msra.mxu0 0
        %3203 = vmatprep.subr.bf16.mxu0 0
        %3204 = vmatpush1.bf16.msra.mxu0 0
        %3205 = vmatprep.subr.bf16.mxu0 0
        %3206 = vmatpush1.bf16.msra.mxu0 0
        %3207 = vmatprep.subr.bf16.mxu0 0
        %3208 = vmatpush1.bf16.msra.mxu0 0
        %3209 = vmatprep.subr.bf16.mxu0 0
        %3210 = vmatpush1.bf16.msra.mxu0 0
        %3211 = vmatprep.subr.bf16.mxu0 0
        %3212 = vmatpush1.bf16.msra.mxu0 %v3150
        %3213 = vmatprep.subr.bf16.mxu0 0
        %3214 = vmatpush2.bf16.msra.mxu0 0
        %3215 = vmatprep.subr.bf16.mxu0 0
        %3216 = vmatpush2.bf16.msra.mxu0 0
        %3217 = vmatprep.subr.bf16.mxu0 0
        %3218 = vmatpush2.bf16.msra.mxu0 0
        %3219 = vmatprep.subr.bf16.mxu0 0
        %3220 = vmatpush2.bf16.msra.mxu0 0
        %3221 = vmatprep.subr.bf16.mxu0 0
        %3222 = vmatpush2.bf16.msra.mxu0 0
        %3223 = vmatprep.subr.bf16.mxu0 0
        %3224 = vmatpush2.bf16.msra.mxu0 0
        %3225 = vmatprep.subr.bf16.mxu0 0
        %3226 = vmatpush2.bf16.msra.mxu0 0
        %3227 = vmatprep.subr.bf16.mxu0 0
        %3228 = vmatpush2.bf16.msra.mxu0 0
        %3229 = vmatprep.mubr.bf16.mxu0 0
        %3230 = vmatmul.mubr.bf16.gmra.mxu0 %v3195
        %v3231 = vpop.f32.mrf.mxu0
        %v3232 = vadd.f32 0.0, %v3231
        %v3233 = vpop.f32.mrf.mxu0
        %v3234 = vpop.f32.mrf.mxu0
        %v3235 = vpop.f32.mrf.mxu0
        %3236 = vdwg.mxu0
        %3238 = vrot.lane.b32.xlu0 %v3028, 96
        %v3239 = vpop.permute.xlu0 %3238
        %3241 = vrot.lane.b32.xlu0 %v3030, 96
        %v3242 = vpop.permute.xlu0 %3241
        %v3244 = vsel %vm1685, %v3239, 0
        %v3247 = vsel %vm1685, %v3242, 0
        %3249 = vmatprep.subr.bf16.mxu0 0
        %3250 = vmatpush1.bf16.xpose.msra.mxu0 0
        %3251 = vmatprep.subr.bf16.mxu0 0
        %3252 = vmatpush1.bf16.xpose.msra.mxu0 0
        %3253 = vmatprep.subr.bf16.mxu0 0
        %3254 = vmatpush1.bf16.xpose.msra.mxu0 0
        %3255 = vmatprep.subr.bf16.mxu0 0
        %3256 = vmatpush1.bf16.xpose.msra.mxu0 0
        %3257 = vmatprep.subr.bf16.mxu0 0
        %3258 = vmatpush1.bf16.xpose.msra.mxu0 0
        %3259 = vmatprep.subr.bf16.mxu0 0
        %3260 = vmatpush1.bf16.xpose.msra.mxu0 0
        %3261 = vmatprep.subr.bf16.mxu0 0
        %3262 = vmatpush1.bf16.xpose.msra.mxu0 0
        %3263 = vmatprep.subr.bf16.mxu0 0
        %3264 = vmatpush1.bf16.xpose.msra.mxu0 %v3247
        %3265 = vmatprep.subr.bf16.mxu0 0
        %3266 = vmatpush2.bf16.xpose.msra.mxu0 0
        %3267 = vmatprep.subr.bf16.mxu0 0
        %3268 = vmatpush2.bf16.xpose.msra.mxu0 0
        %3269 = vmatprep.subr.bf16.mxu0 0
        %3270 = vmatpush2.bf16.xpose.msra.mxu0 0
        %3271 = vmatprep.subr.bf16.mxu0 0
        %3272 = vmatpush2.bf16.xpose.msra.mxu0 0
        %3273 = vmatprep.subr.bf16.mxu0 0
        %3274 = vmatpush2.bf16.xpose.msra.mxu0 0
        %3275 = vmatprep.subr.bf16.mxu0 0
        %3276 = vmatpush2.bf16.xpose.msra.mxu0 0
        %3277 = vmatprep.subr.bf16.mxu0 0
        %3278 = vmatpush2.bf16.xpose.msra.mxu0 0
        %3279 = vmatprep.subr.bf16.mxu0 0
        %3280 = vmatpush2.bf16.xpose.msra.mxu0 0
        %3281 = vmatprep.mubr.bf16.mxu0 0
        %3282 = vmatmul.mubr.bf16.gmra.mxu0 %v3244
        %v3283 = vpop.f32.mrf.mxu0
        %v3284 = vadd.f32 0.0, %v3283
        %v3285 = vpop.f32.mrf.mxu0
        %v3286 = vpop.f32.mrf.mxu0
        %v3287 = vpop.f32.mrf.mxu0
        %3288 = vdwg.mxu0
        %3290 = vrot.lane.b32.xlu0 %v3029, 96
        %v3291 = vpop.permute.xlu0 %3290
        %3293 = vrot.lane.b32.xlu0 %v3031, 96
        %v3294 = vpop.permute.xlu0 %3293
        %v3296 = vsel %vm1685, %v3291, 0
        %v3299 = vsel %vm1685, %v3294, 0
        %3301 = vmatprep.subr.bf16.mxu0 0
        %3302 = vmatpush1.bf16.xpose.msra.mxu0 0
        %3303 = vmatprep.subr.bf16.mxu0 0
        %3304 = vmatpush1.bf16.xpose.msra.mxu0 0
        %3305 = vmatprep.subr.bf16.mxu0 0
        %3306 = vmatpush1.bf16.xpose.msra.mxu0 0
        %3307 = vmatprep.subr.bf16.mxu0 0
        %3308 = vmatpush1.bf16.xpose.msra.mxu0 0
        %3309 = vmatprep.subr.bf16.mxu0 0
        %3310 = vmatpush1.bf16.xpose.msra.mxu0 0
        %3311 = vmatprep.subr.bf16.mxu0 0
        %3312 = vmatpush1.bf16.xpose.msra.mxu0 0
        %3313 = vmatprep.subr.bf16.mxu0 0
        %3314 = vmatpush1.bf16.xpose.msra.mxu0 0
        %3315 = vmatprep.subr.bf16.mxu0 0
        %3316 = vmatpush1.bf16.xpose.msra.mxu0 %v3299
        %3317 = vmatprep.subr.bf16.mxu0 0
        %3318 = vmatpush2.bf16.xpose.msra.mxu0 0
        %3319 = vmatprep.subr.bf16.mxu0 0
        %3320 = vmatpush2.bf16.xpose.msra.mxu0 0
        %3321 = vmatprep.subr.bf16.mxu0 0
        %3322 = vmatpush2.bf16.xpose.msra.mxu0 0
        %3323 = vmatprep.subr.bf16.mxu0 0
        %3324 = vmatpush2.bf16.xpose.msra.mxu0 0
        %3325 = vmatprep.subr.bf16.mxu0 0
        %3326 = vmatpush2.bf16.xpose.msra.mxu0 0
        %3327 = vmatprep.subr.bf16.mxu0 0
        %3328 = vmatpush2.bf16.xpose.msra.mxu0 0
        %3329 = vmatprep.subr.bf16.mxu0 0
        %3330 = vmatpush2.bf16.xpose.msra.mxu0 0
        %3331 = vmatprep.subr.bf16.mxu0 0
        %3332 = vmatpush2.bf16.xpose.msra.mxu0 0
        %3333 = vmatprep.mubr.bf16.mxu0 0
        %3334 = vmatmul.mubr.bf16.gmra.mxu0 %v3296
        %v3335 = vpop.f32.mrf.mxu0
        %v3336 = vadd.f32 0.0, %v3335
        %v3337 = vpop.f32.mrf.mxu0
        %v3338 = vpop.f32.mrf.mxu0
        %v3339 = vpop.f32.mrf.mxu0
        %3340 = vdwg.mxu0
        %v3341 = vsel %vm3124, %v3284, -inf
        %3342 = vmax.xlane.f32.xlu0 %v3341
        %v3343 = vpop.xlane.xlu0 %3342
        %v3344 = vsel %vm3124, %v3336, -inf
        %3345 = vmax.xlane.f32.xlu0 %v3344
        %v3346 = vpop.xlane.xlu0 %3345
        %v3347 = vsub.f32 %v3284, %v3343
        %v3348 = vsub.f32 %v3336, %v3346
        %v3349 = vmul.f32 %v3347, 1.442695
        %v3350 = vpow.pop %v3349
        %v3351 = vmul.f32 %v3348, 1.442695
        %v3352 = vpow.pop %v3351
        %v3353 = vsel %vm3124, %v3350, 0.0
        %3354 = vadd.xlane.f32.xlu0 %v3353
        %v3355 = vpop.xlane.xlu0 %3354
        %v3356 = vsel %vm3124, %v3352, 0.0
        %3357 = vadd.xlane.f32.xlu0 %v3356
        %v3358 = vpop.xlane.xlu0 %3357
        %v3359 = vrcp.pop %v3355
        %v3360 = vrcp.pop %v3358
        %v3361 = vmul.f32 %v3350, %v3359
        %v3362 = vmul.f32 %v3352, %v3360
        %v3363 = vpack.c.bf16 %v3361, %v3361
        %v3364 = vpack.c.bf16 %v3362, %v3362
        %3366 = vrot.lane.b32.xlu0 %v3149, 96
        %v3367 = vpop.permute.xlu0 %3366
        %v3370 = vsel %vm3124, %v3363, 0
        %3372 = vmatprep.subr.bf16.mxu0 0
        %3373 = vmatpush1.bf16.msra.mxu0 0
        %3374 = vmatprep.subr.bf16.mxu0 0
        %3375 = vmatpush1.bf16.msra.mxu0 0
        %3376 = vmatprep.subr.bf16.mxu0 0
        %3377 = vmatpush1.bf16.msra.mxu0 0
        %3378 = vmatprep.subr.bf16.mxu0 0
        %3379 = vmatpush1.bf16.msra.mxu0 0
        %3380 = vmatprep.subr.bf16.mxu0 0
        %3381 = vmatpush1.bf16.msra.mxu0 0
        %3382 = vmatprep.subr.bf16.mxu0 0
        %3383 = vmatpush1.bf16.msra.mxu0 0
        %3384 = vmatprep.subr.bf16.mxu0 0
        %3385 = vmatpush1.bf16.msra.mxu0 0
        %3386 = vmatprep.subr.bf16.mxu0 0
        %3387 = vmatpush1.bf16.msra.mxu0 %v3367
        %3388 = vmatprep.subr.bf16.mxu0 0
        %3389 = vmatpush2.bf16.msra.mxu0 0
        %3390 = vmatprep.subr.bf16.mxu0 0
        %3391 = vmatpush2.bf16.msra.mxu0 0
        %3392 = vmatprep.subr.bf16.mxu0 0
        %3393 = vmatpush2.bf16.msra.mxu0 0
        %3394 = vmatprep.subr.bf16.mxu0 0
        %3395 = vmatpush2.bf16.msra.mxu0 0
        %3396 = vmatprep.subr.bf16.mxu0 0
        %3397 = vmatpush2.bf16.msra.mxu0 0
        %3398 = vmatprep.subr.bf16.mxu0 0
        %3399 = vmatpush2.bf16.msra.mxu0 0
        %3400 = vmatprep.subr.bf16.mxu0 0
        %3401 = vmatpush2.bf16.msra.mxu0 0
        %3402 = vmatprep.subr.bf16.mxu0 0
        %3403 = vmatpush2.bf16.msra.mxu0 0
        %3404 = vmatprep.mubr.bf16.mxu0 0
        %3405 = vmatmul.mubr.bf16.gmra.mxu0 %v3370
        %v3406 = vpop.f32.mrf.mxu0
        %v3407 = vadd.f32 0.0, %v3406
        %v3408 = vpop.f32.mrf.mxu0
        %v3409 = vpop.f32.mrf.mxu0
        %v3410 = vpop.f32.mrf.mxu0
        %3411 = vdwg.mxu0
        %3413 = vrot.lane.b32.xlu0 %v3150, 96
        %v3414 = vpop.permute.xlu0 %3413
        %v3417 = vsel %vm3124, %v3364, 0
        %3419 = vmatprep.subr.bf16.mxu0 0
        %3420 = vmatpush1.bf16.msra.mxu0 0
        %3421 = vmatprep.subr.bf16.mxu0 0
        %3422 = vmatpush1.bf16.msra.mxu0 0
        %3423 = vmatprep.subr.bf16.mxu0 0
        %3424 = vmatpush1.bf16.msra.mxu0 0
        %3425 = vmatprep.subr.bf16.mxu0 0
        %3426 = vmatpush1.bf16.msra.mxu0 0
        %3427 = vmatprep.subr.bf16.mxu0 0
        %3428 = vmatpush1.bf16.msra.mxu0 0
        %3429 = vmatprep.subr.bf16.mxu0 0
        %3430 = vmatpush1.bf16.msra.mxu0 0
        %3431 = vmatprep.subr.bf16.mxu0 0
        %3432 = vmatpush1.bf16.msra.mxu0 0
        %3433 = vmatprep.subr.bf16.mxu0 0
        %3434 = vmatpush1.bf16.msra.mxu0 %v3414
        %3435 = vmatprep.subr.bf16.mxu0 0
        %3436 = vmatpush2.bf16.msra.mxu0 0
        %3437 = vmatprep.subr.bf16.mxu0 0
        %3438 = vmatpush2.bf16.msra.mxu0 0
        %3439 = vmatprep.subr.bf16.mxu0 0
        %3440 = vmatpush2.bf16.msra.mxu0 0
        %3441 = vmatprep.subr.bf16.mxu0 0
        %3442 = vmatpush2.bf16.msra.mxu0 0
        %3443 = vmatprep.subr.bf16.mxu0 0
        %3444 = vmatpush2.bf16.msra.mxu0 0
        %3445 = vmatprep.subr.bf16.mxu0 0
        %3446 = vmatpush2.bf16.msra.mxu0 0
        %3447 = vmatprep.subr.bf16.mxu0 0
        %3448 = vmatpush2.bf16.msra.mxu0 0
        %3449 = vmatprep.subr.bf16.mxu0 0
        %3450 = vmatpush2.bf16.msra.mxu0 0
        %3451 = vmatprep.mubr.bf16.mxu0 0
        %3452 = vmatmul.mubr.bf16.gmra.mxu0 %v3417
        %v3453 = vpop.f32.mrf.mxu0
        %v3454 = vadd.f32 0.0, %v3453
        %v3455 = vpop.f32.mrf.mxu0
        %v3456 = vpop.f32.mrf.mxu0
        %v3457 = vpop.f32.mrf.mxu0
        %3458 = vdwg.mxu0
        %3459 = vrot.lane.b32.xlu0 %v3028, 64
        %v3460 = vpop.permute.xlu0 %3459
        %3461 = vrot.lane.b32.xlu0 %v3030, 64
        %v3462 = vpop.permute.xlu0 %3461
        %v3464 = vsel %vm1685, %v3460, 0
        %v3467 = vsel %vm1685, %v3462, 0
        %3469 = vmatprep.subr.bf16.mxu0 0
        %3470 = vmatpush1.bf16.xpose.msra.mxu0 0
        %3471 = vmatprep.subr.bf16.mxu0 0
        %3472 = vmatpush1.bf16.xpose.msra.mxu0 0
        %3473 = vmatprep.subr.bf16.mxu0 0
        %3474 = vmatpush1.bf16.xpose.msra.mxu0 0
        %3475 = vmatprep.subr.bf16.mxu0 0
        %3476 = vmatpush1.bf16.xpose.msra.mxu0 0
        %3477 = vmatprep.subr.bf16.mxu0 0
        %3478 = vmatpush1.bf16.xpose.msra.mxu0 0
        %3479 = vmatprep.subr.bf16.mxu0 0
        %3480 = vmatpush1.bf16.xpose.msra.mxu0 0
        %3481 = vmatprep.subr.bf16.mxu0 0
        %3482 = vmatpush1.bf16.xpose.msra.mxu0 0
        %3483 = vmatprep.subr.bf16.mxu0 0
        %3484 = vmatpush1.bf16.xpose.msra.mxu0 %v3467
        %3485 = vmatprep.subr.bf16.mxu0 0
        %3486 = vmatpush2.bf16.xpose.msra.mxu0 0
        %3487 = vmatprep.subr.bf16.mxu0 0
        %3488 = vmatpush2.bf16.xpose.msra.mxu0 0
        %3489 = vmatprep.subr.bf16.mxu0 0
        %3490 = vmatpush2.bf16.xpose.msra.mxu0 0
        %3491 = vmatprep.subr.bf16.mxu0 0
        %3492 = vmatpush2.bf16.xpose.msra.mxu0 0
        %3493 = vmatprep.subr.bf16.mxu0 0
        %3494 = vmatpush2.bf16.xpose.msra.mxu0 0
        %3495 = vmatprep.subr.bf16.mxu0 0
        %3496 = vmatpush2.bf16.xpose.msra.mxu0 0
        %3497 = vmatprep.subr.bf16.mxu0 0
        %3498 = vmatpush2.bf16.xpose.msra.mxu0 0
        %3499 = vmatprep.subr.bf16.mxu0 0
        %3500 = vmatpush2.bf16.xpose.msra.mxu0 0
        %3501 = vmatprep.mubr.bf16.mxu0 0
        %3502 = vmatmul.mubr.bf16.gmra.mxu0 %v3464
        %v3503 = vpop.f32.mrf.mxu0
        %v3504 = vadd.f32 0.0, %v3503
        %v3505 = vpop.f32.mrf.mxu0
        %v3506 = vpop.f32.mrf.mxu0
        %v3507 = vpop.f32.mrf.mxu0
        %3508 = vdwg.mxu0
        %3509 = vrot.lane.b32.xlu0 %v3029, 64
        %v3510 = vpop.permute.xlu0 %3509
        %3511 = vrot.lane.b32.xlu0 %v3031, 64
        %v3512 = vpop.permute.xlu0 %3511
        %v3514 = vsel %vm1685, %v3510, 0
        %v3517 = vsel %vm1685, %v3512, 0
        %3519 = vmatprep.subr.bf16.mxu0 0
        %3520 = vmatpush1.bf16.xpose.msra.mxu0 0
        %3521 = vmatprep.subr.bf16.mxu0 0
        %3522 = vmatpush1.bf16.xpose.msra.mxu0 0
        %3523 = vmatprep.subr.bf16.mxu0 0
        %3524 = vmatpush1.bf16.xpose.msra.mxu0 0
        %3525 = vmatprep.subr.bf16.mxu0 0
        %3526 = vmatpush1.bf16.xpose.msra.mxu0 0
        %3527 = vmatprep.subr.bf16.mxu0 0
        %3528 = vmatpush1.bf16.xpose.msra.mxu0 0
        %3529 = vmatprep.subr.bf16.mxu0 0
        %3530 = vmatpush1.bf16.xpose.msra.mxu0 0
        %3531 = vmatprep.subr.bf16.mxu0 0
        %3532 = vmatpush1.bf16.xpose.msra.mxu0 0
        %3533 = vmatprep.subr.bf16.mxu0 0
        %3534 = vmatpush1.bf16.xpose.msra.mxu0 %v3517
        %3535 = vmatprep.subr.bf16.mxu0 0
        %3536 = vmatpush2.bf16.xpose.msra.mxu0 0
        %3537 = vmatprep.subr.bf16.mxu0 0
        %3538 = vmatpush2.bf16.xpose.msra.mxu0 0
        %3539 = vmatprep.subr.bf16.mxu0 0
        %3540 = vmatpush2.bf16.xpose.msra.mxu0 0
        %3541 = vmatprep.subr.bf16.mxu0 0
        %3542 = vmatpush2.bf16.xpose.msra.mxu0 0
        %3543 = vmatprep.subr.bf16.mxu0 0
        %3544 = vmatpush2.bf16.xpose.msra.mxu0 0
        %3545 = vmatprep.subr.bf16.mxu0 0
        %3546 = vmatpush2.bf16.xpose.msra.mxu0 0
        %3547 = vmatprep.subr.bf16.mxu0 0
        %3548 = vmatpush2.bf16.xpose.msra.mxu0 0
        %3549 = vmatprep.subr.bf16.mxu0 0
        %3550 = vmatpush2.bf16.xpose.msra.mxu0 0
        %3551 = vmatprep.mubr.bf16.mxu0 0
        %3552 = vmatmul.mubr.bf16.gmra.mxu0 %v3514
        %v3553 = vpop.f32.mrf.mxu0
        %v3554 = vadd.f32 0.0, %v3553
        %v3555 = vpop.f32.mrf.mxu0
        %v3556 = vpop.f32.mrf.mxu0
        %v3557 = vpop.f32.mrf.mxu0
        %3558 = vdwg.mxu0
        %v3559 = vsel %vm3124, %v3504, -inf
        %3560 = vmax.xlane.f32.xlu0 %v3559
        %v3561 = vpop.xlane.xlu0 %3560
        %v3562 = vsel %vm3124, %v3554, -inf
        %3563 = vmax.xlane.f32.xlu0 %v3562
        %v3564 = vpop.xlane.xlu0 %3563
        %v3565 = vsub.f32 %v3504, %v3561
        %v3566 = vsub.f32 %v3554, %v3564
        %v3567 = vmul.f32 %v3565, 1.442695
        %v3568 = vpow.pop %v3567
        %v3569 = vmul.f32 %v3566, 1.442695
        %v3570 = vpow.pop %v3569
        %v3571 = vsel %vm3124, %v3568, 0.0
        %3572 = vadd.xlane.f32.xlu0 %v3571
        %v3573 = vpop.xlane.xlu0 %3572
        %v3574 = vsel %vm3124, %v3570, 0.0
        %3575 = vadd.xlane.f32.xlu0 %v3574
        %v3576 = vpop.xlane.xlu0 %3575
        %v3577 = vrcp.pop %v3573
        %v3578 = vrcp.pop %v3576
        %v3579 = vmul.f32 %v3568, %v3577
        %v3580 = vmul.f32 %v3570, %v3578
        %v3581 = vpack.c.bf16 %v3579, %v3579
        %v3582 = vpack.c.bf16 %v3580, %v3580
        %3583 = vrot.lane.b32.xlu0 %v3149, 64
        %v3584 = vpop.permute.xlu0 %3583
        %v3587 = vsel %vm3124, %v3581, 0
        %3589 = vmatprep.subr.bf16.mxu0 0
        %3590 = vmatpush1.bf16.msra.mxu0 0
        %3591 = vmatprep.subr.bf16.mxu0 0
        %3592 = vmatpush1.bf16.msra.mxu0 0
        %3593 = vmatprep.subr.bf16.mxu0 0
        %3594 = vmatpush1.bf16.msra.mxu0 0
        %3595 = vmatprep.subr.bf16.mxu0 0
        %3596 = vmatpush1.bf16.msra.mxu0 0
        %3597 = vmatprep.subr.bf16.mxu0 0
        %3598 = vmatpush1.bf16.msra.mxu0 0
        %3599 = vmatprep.subr.bf16.mxu0 0
        %3600 = vmatpush1.bf16.msra.mxu0 0
        %3601 = vmatprep.subr.bf16.mxu0 0
        %3602 = vmatpush1.bf16.msra.mxu0 0
        %3603 = vmatprep.subr.bf16.mxu0 0
        %3604 = vmatpush1.bf16.msra.mxu0 %v3584
        %3605 = vmatprep.subr.bf16.mxu0 0
        %3606 = vmatpush2.bf16.msra.mxu0 0
        %3607 = vmatprep.subr.bf16.mxu0 0
        %3608 = vmatpush2.bf16.msra.mxu0 0
        %3609 = vmatprep.subr.bf16.mxu0 0
        %3610 = vmatpush2.bf16.msra.mxu0 0
        %3611 = vmatprep.subr.bf16.mxu0 0
        %3612 = vmatpush2.bf16.msra.mxu0 0
        %3613 = vmatprep.subr.bf16.mxu0 0
        %3614 = vmatpush2.bf16.msra.mxu0 0
        %3615 = vmatprep.subr.bf16.mxu0 0
        %3616 = vmatpush2.bf16.msra.mxu0 0
        %3617 = vmatprep.subr.bf16.mxu0 0
        %3618 = vmatpush2.bf16.msra.mxu0 0
        %3619 = vmatprep.subr.bf16.mxu0 0
        %3620 = vmatpush2.bf16.msra.mxu0 0
        %3621 = vmatprep.mubr.bf16.mxu0 0
        %3622 = vmatmul.mubr.bf16.gmra.mxu0 %v3587
        %v3623 = vpop.f32.mrf.mxu0
        %v3624 = vadd.f32 0.0, %v3623
        %v3625 = vpop.f32.mrf.mxu0
        %v3626 = vpop.f32.mrf.mxu0
        %v3627 = vpop.f32.mrf.mxu0
        %3628 = vdwg.mxu0
        %3629 = vrot.lane.b32.xlu0 %v3150, 64
        %v3630 = vpop.permute.xlu0 %3629
        %v3633 = vsel %vm3124, %v3582, 0
        %3635 = vmatprep.subr.bf16.mxu0 0
        %3636 = vmatpush1.bf16.msra.mxu0 0
        %3637 = vmatprep.subr.bf16.mxu0 0
        %3638 = vmatpush1.bf16.msra.mxu0 0
        %3639 = vmatprep.subr.bf16.mxu0 0
        %3640 = vmatpush1.bf16.msra.mxu0 0
        %3641 = vmatprep.subr.bf16.mxu0 0
        %3642 = vmatpush1.bf16.msra.mxu0 0
        %3643 = vmatprep.subr.bf16.mxu0 0
        %3644 = vmatpush1.bf16.msra.mxu0 0
        %3645 = vmatprep.subr.bf16.mxu0 0
        %3646 = vmatpush1.bf16.msra.mxu0 0
        %3647 = vmatprep.subr.bf16.mxu0 0
        %3648 = vmatpush1.bf16.msra.mxu0 0
        %3649 = vmatprep.subr.bf16.mxu0 0
        %3650 = vmatpush1.bf16.msra.mxu0 %v3630
        %3651 = vmatprep.subr.bf16.mxu0 0
        %3652 = vmatpush2.bf16.msra.mxu0 0
        %3653 = vmatprep.subr.bf16.mxu0 0
        %3654 = vmatpush2.bf16.msra.mxu0 0
        %3655 = vmatprep.subr.bf16.mxu0 0
        %3656 = vmatpush2.bf16.msra.mxu0 0
        %3657 = vmatprep.subr.bf16.mxu0 0
        %3658 = vmatpush2.bf16.msra.mxu0 0
        %3659 = vmatprep.subr.bf16.mxu0 0
        %3660 = vmatpush2.bf16.msra.mxu0 0
        %3661 = vmatprep.subr.bf16.mxu0 0
        %3662 = vmatpush2.bf16.msra.mxu0 0
        %3663 = vmatprep.subr.bf16.mxu0 0
        %3664 = vmatpush2.bf16.msra.mxu0 0
        %3665 = vmatprep.subr.bf16.mxu0 0
        %3666 = vmatpush2.bf16.msra.mxu0 0
        %3667 = vmatprep.mubr.bf16.mxu0 0
        %3668 = vmatmul.mubr.bf16.gmra.mxu0 %v3633
        %v3669 = vpop.f32.mrf.mxu0
        %v3670 = vadd.f32 0.0, %v3669
        %v3671 = vpop.f32.mrf.mxu0
        %v3672 = vpop.f32.mrf.mxu0
        %v3673 = vpop.f32.mrf.mxu0
        %3674 = vdwg.mxu0
        %3675 = vrot.lane.b32.xlu0 %v3028, 32
        %v3676 = vpop.permute.xlu0 %3675
        %3677 = vrot.lane.b32.xlu0 %v3030, 32
        %v3678 = vpop.permute.xlu0 %3677
        %v3680 = vsel %vm1685, %v3676, 0
        %v3683 = vsel %vm1685, %v3678, 0
        %3685 = vmatprep.subr.bf16.mxu0 0
        %3686 = vmatpush1.bf16.xpose.msra.mxu0 0
        %3687 = vmatprep.subr.bf16.mxu0 0
        %3688 = vmatpush1.bf16.xpose.msra.mxu0 0
        %3689 = vmatprep.subr.bf16.mxu0 0
        %3690 = vmatpush1.bf16.xpose.msra.mxu0 0
        %3691 = vmatprep.subr.bf16.mxu0 0
        %3692 = vmatpush1.bf16.xpose.msra.mxu0 0
        %3693 = vmatprep.subr.bf16.mxu0 0
        %3694 = vmatpush1.bf16.xpose.msra.mxu0 0
        %3695 = vmatprep.subr.bf16.mxu0 0
        %3696 = vmatpush1.bf16.xpose.msra.mxu0 0
        %3697 = vmatprep.subr.bf16.mxu0 0
        %3698 = vmatpush1.bf16.xpose.msra.mxu0 0
        %3699 = vmatprep.subr.bf16.mxu0 0
        %3700 = vmatpush1.bf16.xpose.msra.mxu0 %v3683
        %3701 = vmatprep.subr.bf16.mxu0 0
        %3702 = vmatpush2.bf16.xpose.msra.mxu0 0
        %3703 = vmatprep.subr.bf16.mxu0 0
        %3704 = vmatpush2.bf16.xpose.msra.mxu0 0
        %3705 = vmatprep.subr.bf16.mxu0 0
        %3706 = vmatpush2.bf16.xpose.msra.mxu0 0
        %3707 = vmatprep.subr.bf16.mxu0 0
        %3708 = vmatpush2.bf16.xpose.msra.mxu0 0
        %3709 = vmatprep.subr.bf16.mxu0 0
        %3710 = vmatpush2.bf16.xpose.msra.mxu0 0
        %3711 = vmatprep.subr.bf16.mxu0 0
        %3712 = vmatpush2.bf16.xpose.msra.mxu0 0
        %3713 = vmatprep.subr.bf16.mxu0 0
        %3714 = vmatpush2.bf16.xpose.msra.mxu0 0
        %3715 = vmatprep.subr.bf16.mxu0 0
        %3716 = vmatpush2.bf16.xpose.msra.mxu0 0
        %3717 = vmatprep.mubr.bf16.mxu0 0
        %3718 = vmatmul.mubr.bf16.gmra.mxu0 %v3680
        %v3719 = vpop.f32.mrf.mxu0
        %v3720 = vadd.f32 0.0, %v3719
        %v3721 = vpop.f32.mrf.mxu0
        %v3722 = vpop.f32.mrf.mxu0
        %v3723 = vpop.f32.mrf.mxu0
        %3724 = vdwg.mxu0
        %3725 = vrot.lane.b32.xlu0 %v3029, 32
        %v3726 = vpop.permute.xlu0 %3725
        %3727 = vrot.lane.b32.xlu0 %v3031, 32
        %v3728 = vpop.permute.xlu0 %3727
        %v3730 = vsel %vm1685, %v3726, 0
        %v3733 = vsel %vm1685, %v3728, 0
        %3735 = vmatprep.subr.bf16.mxu0 0
        %3736 = vmatpush1.bf16.xpose.msra.mxu0 0
        %3737 = vmatprep.subr.bf16.mxu0 0
        %3738 = vmatpush1.bf16.xpose.msra.mxu0 0
        %3739 = vmatprep.subr.bf16.mxu0 0
        %3740 = vmatpush1.bf16.xpose.msra.mxu0 0
        %3741 = vmatprep.subr.bf16.mxu0 0
        %3742 = vmatpush1.bf16.xpose.msra.mxu0 0
        %3743 = vmatprep.subr.bf16.mxu0 0
        %3744 = vmatpush1.bf16.xpose.msra.mxu0 0
        %3745 = vmatprep.subr.bf16.mxu0 0
        %3746 = vmatpush1.bf16.xpose.msra.mxu0 0
        %3747 = vmatprep.subr.bf16.mxu0 0
        %3748 = vmatpush1.bf16.xpose.msra.mxu0 0
        %3749 = vmatprep.subr.bf16.mxu0 0
        %3750 = vmatpush1.bf16.xpose.msra.mxu0 %v3733
        %3751 = vmatprep.subr.bf16.mxu0 0
        %3752 = vmatpush2.bf16.xpose.msra.mxu0 0
        %3753 = vmatprep.subr.bf16.mxu0 0
        %3754 = vmatpush2.bf16.xpose.msra.mxu0 0
        %3755 = vmatprep.subr.bf16.mxu0 0
        %3756 = vmatpush2.bf16.xpose.msra.mxu0 0
        %3757 = vmatprep.subr.bf16.mxu0 0
        %3758 = vmatpush2.bf16.xpose.msra.mxu0 0
        %3759 = vmatprep.subr.bf16.mxu0 0
        %3760 = vmatpush2.bf16.xpose.msra.mxu0 0
        %3761 = vmatprep.subr.bf16.mxu0 0
        %3762 = vmatpush2.bf16.xpose.msra.mxu0 0
        %3763 = vmatprep.subr.bf16.mxu0 0
        %3764 = vmatpush2.bf16.xpose.msra.mxu0 0
        %3765 = vmatprep.subr.bf16.mxu0 0
        %3766 = vmatpush2.bf16.xpose.msra.mxu0 0
        %3767 = vmatprep.mubr.bf16.mxu0 0
        %3768 = vmatmul.mubr.bf16.gmra.mxu0 %v3730
        %v3769 = vpop.f32.mrf.mxu0
        %v3770 = vadd.f32 0.0, %v3769
        %v3771 = vpop.f32.mrf.mxu0
        %v3772 = vpop.f32.mrf.mxu0
        %v3773 = vpop.f32.mrf.mxu0
        %3774 = vdwg.mxu0
        %v3775 = vsel %vm3124, %v3720, -inf
        %3776 = vmax.xlane.f32.xlu0 %v3775
        %v3777 = vpop.xlane.xlu0 %3776
        %v3778 = vsel %vm3124, %v3770, -inf
        %3779 = vmax.xlane.f32.xlu0 %v3778
        %v3780 = vpop.xlane.xlu0 %3779
        %v3781 = vsub.f32 %v3720, %v3777
        %v3782 = vsub.f32 %v3770, %v3780
        %v3783 = vmul.f32 %v3781, 1.442695
        %v3784 = vpow.pop %v3783
        %v3785 = vmul.f32 %v3782, 1.442695
        %v3786 = vpow.pop %v3785
        %v3787 = vsel %vm3124, %v3784, 0.0
        %3788 = vadd.xlane.f32.xlu0 %v3787
        %v3789 = vpop.xlane.xlu0 %3788
        %v3790 = vsel %vm3124, %v3786, 0.0
        %3791 = vadd.xlane.f32.xlu0 %v3790
        %v3792 = vpop.xlane.xlu0 %3791
        %v3793 = vrcp.pop %v3789
        %v3794 = vrcp.pop %v3792
        %v3795 = vmul.f32 %v3784, %v3793
        %v3796 = vmul.f32 %v3786, %v3794
        %v3797 = vpack.c.bf16 %v3795, %v3795
        %v3798 = vpack.c.bf16 %v3796, %v3796
        %3799 = vrot.lane.b32.xlu0 %v3149, 32
        %v3800 = vpop.permute.xlu0 %3799
        %v3803 = vsel %vm3124, %v3797, 0
        %3805 = vmatprep.subr.bf16.mxu0 0
        %3806 = vmatpush1.bf16.msra.mxu0 0
        %3807 = vmatprep.subr.bf16.mxu0 0
        %3808 = vmatpush1.bf16.msra.mxu0 0
        %3809 = vmatprep.subr.bf16.mxu0 0
        %3810 = vmatpush1.bf16.msra.mxu0 0
        %3811 = vmatprep.subr.bf16.mxu0 0
        %3812 = vmatpush1.bf16.msra.mxu0 0
        %3813 = vmatprep.subr.bf16.mxu0 0
        %3814 = vmatpush1.bf16.msra.mxu0 0
        %3815 = vmatprep.subr.bf16.mxu0 0
        %3816 = vmatpush1.bf16.msra.mxu0 0
        %3817 = vmatprep.subr.bf16.mxu0 0
        %3818 = vmatpush1.bf16.msra.mxu0 0
        %3819 = vmatprep.subr.bf16.mxu0 0
        %3820 = vmatpush1.bf16.msra.mxu0 %v3800
        %3821 = vmatprep.subr.bf16.mxu0 0
        %3822 = vmatpush2.bf16.msra.mxu0 0
        %3823 = vmatprep.subr.bf16.mxu0 0
        %3824 = vmatpush2.bf16.msra.mxu0 0
        %3825 = vmatprep.subr.bf16.mxu0 0
        %3826 = vmatpush2.bf16.msra.mxu0 0
        %3827 = vmatprep.subr.bf16.mxu0 0
        %3828 = vmatpush2.bf16.msra.mxu0 0
        %3829 = vmatprep.subr.bf16.mxu0 0
        %3830 = vmatpush2.bf16.msra.mxu0 0
        %3831 = vmatprep.subr.bf16.mxu0 0
        %3832 = vmatpush2.bf16.msra.mxu0 0
        %3833 = vmatprep.subr.bf16.mxu0 0
        %3834 = vmatpush2.bf16.msra.mxu0 0
        %3835 = vmatprep.subr.bf16.mxu0 0
        %3836 = vmatpush2.bf16.msra.mxu0 0
        %3837 = vmatprep.mubr.bf16.mxu0 0
        %3838 = vmatmul.mubr.bf16.gmra.mxu0 %v3803
        %v3839 = vpop.f32.mrf.mxu0
        %v3840 = vadd.f32 0.0, %v3839
        %v3841 = vpop.f32.mrf.mxu0
        %v3842 = vpop.f32.mrf.mxu0
        %v3843 = vpop.f32.mrf.mxu0
        %3844 = vdwg.mxu0
        %3845 = vrot.lane.b32.xlu0 %v3150, 32
        %v3846 = vpop.permute.xlu0 %3845
        %v3849 = vsel %vm3124, %v3798, 0
        %3851 = vmatprep.subr.bf16.mxu0 0
        %3852 = vmatpush1.bf16.msra.mxu0 0
        %3853 = vmatprep.subr.bf16.mxu0 0
        %3854 = vmatpush1.bf16.msra.mxu0 0
        %3855 = vmatprep.subr.bf16.mxu0 0
        %3856 = vmatpush1.bf16.msra.mxu0 0
        %3857 = vmatprep.subr.bf16.mxu0 0
        %3858 = vmatpush1.bf16.msra.mxu0 0
        %3859 = vmatprep.subr.bf16.mxu0 0
        %3860 = vmatpush1.bf16.msra.mxu0 0
        %3861 = vmatprep.subr.bf16.mxu0 0
        %3862 = vmatpush1.bf16.msra.mxu0 0
        %3863 = vmatprep.subr.bf16.mxu0 0
        %3864 = vmatpush1.bf16.msra.mxu0 0
        %3865 = vmatprep.subr.bf16.mxu0 0
        %3866 = vmatpush1.bf16.msra.mxu0 %v3846
        %3867 = vmatprep.subr.bf16.mxu0 0
        %3868 = vmatpush2.bf16.msra.mxu0 0
        %3869 = vmatprep.subr.bf16.mxu0 0
        %3870 = vmatpush2.bf16.msra.mxu0 0
        %3871 = vmatprep.subr.bf16.mxu0 0
        %3872 = vmatpush2.bf16.msra.mxu0 0
        %3873 = vmatprep.subr.bf16.mxu0 0
        %3874 = vmatpush2.bf16.msra.mxu0 0
        %3875 = vmatprep.subr.bf16.mxu0 0
        %3876 = vmatpush2.bf16.msra.mxu0 0
        %3877 = vmatprep.subr.bf16.mxu0 0
        %3878 = vmatpush2.bf16.msra.mxu0 0
        %3879 = vmatprep.subr.bf16.mxu0 0
        %3880 = vmatpush2.bf16.msra.mxu0 0
        %3881 = vmatprep.subr.bf16.mxu0 0
        %3882 = vmatpush2.bf16.msra.mxu0 0
        %3883 = vmatprep.mubr.bf16.mxu0 0
        %3884 = vmatmul.mubr.bf16.gmra.mxu0 %v3849
        %v3885 = vpop.f32.mrf.mxu0
        %v3886 = vadd.f32 0.0, %v3885
        %v3887 = vpop.f32.mrf.mxu0
        %v3888 = vpop.f32.mrf.mxu0
        %v3889 = vpop.f32.mrf.mxu0
        %3890 = vdwg.mxu0
        %3893 = vrot.lane.b32.xlu0 %v3407, 32
        %v3894 = vpop.permute.xlu0 %3893
        %3895 = vrot.lane.b32.xlu0 %v3454, 32
        %v3896 = vpop.permute.xlu0 %3895
        %3901 = vrot.lane.b32.xlu0 %v3624, 64
        %v3902 = vpop.permute.xlu0 %3901
        %3903 = vrot.lane.b32.xlu0 %v3670, 64
        %v3904 = vpop.permute.xlu0 %3903
        %3909 = vrot.lane.b32.xlu0 %v3840, 96
        %v3910 = vpop.permute.xlu0 %3909
        %3911 = vrot.lane.b32.xlu0 %v3886, 96
        %v3912 = vpop.permute.xlu0 %3911
        %v3915 = vsel %vm1685, %v3189, %v3894
        %v3916 = vsel %vm1685, %v3232, %v3896
        %v3917 = vsel %vm2590, %v3915, %v3902
        %v3918 = vsel %vm2590, %v3916, %v3904
        %v3919 = vsel %vm2593, %v3917, %v3910
        %v3920 = vsel %vm2593, %v3918, %v3912
        %v3921 = vpack.c.bf16 %v3920, %v3919
        %v3922 = vld [vmem:[%s1144] sm:$0xf]
        %v3923 = vld [vmem:[%s1144 + $0x4] sm:$0xf]
        %v3924 = vld [vmem:[%s1144 + $0x8] sm:$0xf]
        %v3925 = vld [vmem:[%s1144 + $0xc] sm:$0xf]
        %v3926 = vld [vmem:[%s1144 + $0x10] sm:$0xf]
        %v3927 = vld [vmem:[%s1144 + $0x14] sm:$0xf]
        %v3928 = vld [vmem:[%s1144 + $0x18] sm:$0xf]
        %v3929 = vld [vmem:[%s1144 + $0x1c] sm:$0xf]
        %v3930 = vld [vmem:[%s1144 + $0x20] sm:$0xf]
        %v3931 = vld [vmem:[%s1144 + $0x24] sm:$0xf]
        %v3932 = vld [vmem:[%s1144 + $0x28] sm:$0xf]
        %v3933 = vld [vmem:[%s1144 + $0x2c] sm:$0xf]
        %v3934 = vld [vmem:[%s1144 + $0x30] sm:$0xf]
        %v3935 = vld [vmem:[%s1144 + $0x34] sm:$0xf]
        %v3936 = vld [vmem:[%s1144 + $0x38] sm:$0xf]
        %v3937 = vld [vmem:[%s1144 + $0x3c] sm:$0xf]
        %v3938 = vld [vmem:[%s1152] sm:$0x1]
        %v3940 = vlaneseq
        %v3941 = vshrl.u32 %v3940, 7
        %v3942 = vsub.s32 0, %v3941
        %v3943 = vrot.slane %v3938, %v3942
        %v3961 = vunpack.c.l.b16 %v3922
        %v3962 = vunpack.c.l.b16 %v3923
        %v3963 = vunpack.c.l.b16 %v3924
        %v3964 = vunpack.c.l.b16 %v3925
        %v3965 = vunpack.c.l.b16 %v3926
        %v3966 = vunpack.c.l.b16 %v3927
        %v3967 = vunpack.c.l.b16 %v3928
        %v3968 = vunpack.c.l.b16 %v3929
        %v3969 = vunpack.c.l.b16 %v3930
        %v3970 = vunpack.c.l.b16 %v3931
        %v3971 = vunpack.c.l.b16 %v3932
        %v3972 = vunpack.c.l.b16 %v3933
        %v3973 = vunpack.c.l.b16 %v3934
        %v3974 = vunpack.c.l.b16 %v3935
        %v3975 = vunpack.c.l.b16 %v3936
        %v3976 = vunpack.c.l.b16 %v3937
        %v3977 = vpack.c.b16 %v3962, %v3961
        %v3978 = vpack.c.b16 %v3964, %v3963
        %v3979 = vpack.c.b16 %v3966, %v3965
        %v3980 = vpack.c.b16 %v3968, %v3967
        %v3981 = vpack.c.b16 %v3970, %v3969
        %v3982 = vpack.c.b16 %v3972, %v3971
        %v3983 = vpack.c.b16 %v3974, %v3973
        %v3984 = vpack.c.b16 %v3976, %v3975
        %3993 = vmatprep.subr.bf16.mxu0 0
        %3994 = vmatpush1.bf16.msra.mxu0 %v3984
        %3995 = vmatprep.subr.bf16.mxu0 0
        %3996 = vmatpush1.bf16.msra.mxu0 %v3983
        %3997 = vmatprep.subr.bf16.mxu0 0
        %3998 = vmatpush1.bf16.msra.mxu0 %v3982
        %3999 = vmatprep.subr.bf16.mxu0 0
        %4000 = vmatpush1.bf16.msra.mxu0 %v3981
        %4001 = vmatprep.subr.bf16.mxu0 0
        %4002 = vmatpush1.bf16.msra.mxu0 %v3980
        %4003 = vmatprep.subr.bf16.mxu0 0
        %4004 = vmatpush1.bf16.msra.mxu0 %v3979
        %4005 = vmatprep.subr.bf16.mxu0 0
        %4006 = vmatpush1.bf16.msra.mxu0 %v3978
        %4007 = vmatprep.subr.bf16.mxu0 0
        %4008 = vmatpush1.bf16.msra.mxu0 %v3977
        %4009 = vmatprep.subr.bf16.mxu0 0
        %4010 = vmatpush2.bf16.msra.mxu0 0
        %4011 = vmatprep.subr.bf16.mxu0 0
        %4012 = vmatpush2.bf16.msra.mxu0 0
        %4013 = vmatprep.subr.bf16.mxu0 0
        %4014 = vmatpush2.bf16.msra.mxu0 0
        %4015 = vmatprep.subr.bf16.mxu0 0
        %4016 = vmatpush2.bf16.msra.mxu0 0
        %4017 = vmatprep.subr.bf16.mxu0 0
        %4018 = vmatpush2.bf16.msra.mxu0 0
        %4019 = vmatprep.subr.bf16.mxu0 0
        %4020 = vmatpush2.bf16.msra.mxu0 0
        %4021 = vmatprep.subr.bf16.mxu0 0
        %4022 = vmatpush2.bf16.msra.mxu0 0
        %4023 = vmatprep.subr.bf16.mxu0 0
        %4024 = vmatpush2.bf16.msra.mxu0 0
        %4025 = vmatprep.mubr.bf16.mxu0 0
        %4026 = vmatmul.mubr.bf16.gmra.mxu0 %v3921
        %v4027 = vpop.f32.mrf.mxu0
        %v4028 = vadd.f32 %v3943, %v4027
        %v4029 = vpop.f32.mrf.mxu0
        %v4030 = vpop.f32.mrf.mxu0
        %v4031 = vadd.f32 %v3943, %v4030
        %v4032 = vpop.f32.mrf.mxu0
        %4033 = vdwg.mxu0
        %v4034 = vadd.f32 %v2750, %v4028
        %v4035 = vadd.f32 %v2751, %v4031
        %4036 = vadd.xlane.f32.xlu0 %v4034
        %v4037 = vpop.xlane.xlu0 %4036
        %4038 = vadd.xlane.f32.xlu0 %v4035
        %v4039 = vpop.xlane.xlu0 %4038
        %v4040 = vmul.f32 %v4037, %v2715
        %v4041 = vmul.f32 %v4039, %v2715
        %v4042 = vsub.f32 %v4034, %v4040
        %v4043 = vsub.f32 %v4035, %v4041
        %v4044 = vmul.f32 %v4042, %v4042
        %v4045 = vmul.f32 %v4043, %v4043
        %4046 = vadd.xlane.f32.xlu0 %v4044
        %v4047 = vpop.xlane.xlu0 %4046
        %4048 = vadd.xlane.f32.xlu0 %v4045
        %v4049 = vpop.xlane.xlu0 %4048
        %v4050 = vmul.f32 %v4047, %v2715
        %v4051 = vmul.f32 %v4049, %v2715
        %v4052 = vadd.f32 %v4050, 1e-05
        %v4053 = vadd.f32 %v4051, 1e-05
        %v4054 = vrsqrt.pop %v4052
        %v4055 = vrsqrt.pop %v4053
        %v4056 = vmul.f32 %v4042, %v4054
        %v4057 = vmul.f32 %v4043, %v4055
        %v4058 = vld [vmem:[%s1160] sm:$0x1]
        %v4060 = vlaneseq
        %v4061 = vshrl.u32 %v4060, 7
        %v4062 = vsub.s32 0, %v4061
        %v4063 = vrot.slane %v4058, %v4062
        %v4065 = vmul.f32 %v4056, %v4063
        %v4066 = vmul.f32 %v4057, %v4063
        %v4067 = vld [vmem:[%s1168] sm:$0x1]
        %v4069 = vlaneseq
        %v4070 = vshrl.u32 %v4069, 7
        %v4071 = vsub.s32 0, %v4070
        %v4072 = vrot.slane %v4067, %v4071
        %v4074 = vadd.f32 %v4065, %v4072
        %v4075 = vadd.f32 %v4066, %v4072
        %v4076 = vpack.c.bf16 %v4075, %v4074
        %v4077 = vld [vmem:[%s1177] sm:$0xff]
        %v4078 = vld [vmem:[%s1177 + $0x8] sm:$0xff]
        %v4079 = vld [vmem:[%s1177 + $0x10] sm:$0xff]
        %v4080 = vld [vmem:[%s1177 + $0x18] sm:$0xff]
        %v4081 = vld [vmem:[%s1177 + $0x20] sm:$0xff]
        %v4082 = vld [vmem:[%s1177 + $0x28] sm:$0xff]
        %v4083 = vld [vmem:[%s1177 + $0x30] sm:$0xff]
        %v4084 = vld [vmem:[%s1177 + $0x38] sm:$0xff]
        %v4085 = vld [vmem:[%s1177 + $0x40] sm:$0xff]
        %v4086 = vld [vmem:[%s1177 + $0x48] sm:$0xff]
        %v4087 = vld [vmem:[%s1177 + $0x50] sm:$0xff]
        %v4088 = vld [vmem:[%s1177 + $0x58] sm:$0xff]
        %v4089 = vld [vmem:[%s1177 + $0x60] sm:$0xff]
        %v4090 = vld [vmem:[%s1177 + $0x68] sm:$0xff]
        %v4091 = vld [vmem:[%s1177 + $0x70] sm:$0xff]
        %v4092 = vld [vmem:[%s1177 + $0x78] sm:$0xff]
        %v4093 = vld [vmem:[%s1402] sm:$0x3]
        %v4095 = vlaneseq
        %v4096 = vshrl.u32 %v4095, 7
        %v4097 = vsub.s32 0, %v4096
        %v4098 = vrot.slane %v4093, %v4097
        %v4099 = vlaneseq
        %v4100 = vshrl.u32 %v4099, 7
        %v4101 = vsub.s32 1, %v4100
        %v4102 = vrot.slane %v4093, %v4101
        %v4121 = vunpack.c.l.b16 %v4077
        %v4122 = vunpack.c.h.b16 %v4077
        %v4123 = vunpack.c.l.b16 %v4078
        %v4124 = vunpack.c.h.b16 %v4078
        %v4125 = vunpack.c.l.b16 %v4079
        %v4126 = vunpack.c.h.b16 %v4079
        %v4127 = vunpack.c.l.b16 %v4080
        %v4128 = vunpack.c.h.b16 %v4080
        %v4129 = vunpack.c.l.b16 %v4081
        %v4130 = vunpack.c.h.b16 %v4081
        %v4131 = vunpack.c.l.b16 %v4082
        %v4132 = vunpack.c.h.b16 %v4082
        %v4133 = vunpack.c.l.b16 %v4083
        %v4134 = vunpack.c.h.b16 %v4083
        %v4135 = vunpack.c.l.b16 %v4084
        %v4136 = vunpack.c.h.b16 %v4084
        %v4137 = vunpack.c.l.b16 %v4085
        %v4138 = vunpack.c.h.b16 %v4085
        %v4139 = vunpack.c.l.b16 %v4086
        %v4140 = vunpack.c.h.b16 %v4086
        %v4141 = vunpack.c.l.b16 %v4087
        %v4142 = vunpack.c.h.b16 %v4087
        %v4143 = vunpack.c.l.b16 %v4088
        %v4144 = vunpack.c.h.b16 %v4088
        %v4145 = vunpack.c.l.b16 %v4089
        %v4146 = vunpack.c.h.b16 %v4089
        %v4147 = vunpack.c.l.b16 %v4090
        %v4148 = vunpack.c.h.b16 %v4090
        %v4149 = vunpack.c.l.b16 %v4091
        %v4150 = vunpack.c.h.b16 %v4091
        %v4151 = vunpack.c.l.b16 %v4092
        %v4152 = vunpack.c.h.b16 %v4092
        %v4153 = vpack.c.b16 %v4123, %v4121
        %v4154 = vpack.c.b16 %v4124, %v4122
        %v4155 = vpack.c.b16 %v4127, %v4125
        %v4156 = vpack.c.b16 %v4128, %v4126
        %v4157 = vpack.c.b16 %v4131, %v4129
        %v4158 = vpack.c.b16 %v4132, %v4130
        %v4159 = vpack.c.b16 %v4135, %v4133
        %v4160 = vpack.c.b16 %v4136, %v4134
        %v4161 = vpack.c.b16 %v4139, %v4137
        %v4162 = vpack.c.b16 %v4140, %v4138
        %v4163 = vpack.c.b16 %v4143, %v4141
        %v4164 = vpack.c.b16 %v4144, %v4142
        %v4165 = vpack.c.b16 %v4147, %v4145
        %v4166 = vpack.c.b16 %v4148, %v4146
        %v4167 = vpack.c.b16 %v4151, %v4149
        %v4168 = vpack.c.b16 %v4152, %v4150
        %4185 = vmatprep.subr.bf16.mxu0 %v4168
        %4186 = vmatpush1.bf16.msra.mxu0 %v4167
        %4187 = vmatprep.subr.bf16.mxu0 %v4166
        %4188 = vmatpush1.bf16.msra.mxu0 %v4165
        %4189 = vmatprep.subr.bf16.mxu0 %v4164
        %4190 = vmatpush1.bf16.msra.mxu0 %v4163
        %4191 = vmatprep.subr.bf16.mxu0 %v4162
        %4192 = vmatpush1.bf16.msra.mxu0 %v4161
        %4193 = vmatprep.subr.bf16.mxu0 %v4160
        %4194 = vmatpush1.bf16.msra.mxu0 %v4159
        %4195 = vmatprep.subr.bf16.mxu0 %v4158
        %4196 = vmatpush1.bf16.msra.mxu0 %v4157
        %4197 = vmatprep.subr.bf16.mxu0 %v4156
        %4198 = vmatpush1.bf16.msra.mxu0 %v4155
        %4199 = vmatprep.subr.bf16.mxu0 %v4154
        %4200 = vmatpush1.bf16.msra.mxu0 %v4153
        %4201 = vmatprep.subr.bf16.mxu0 0
        %4202 = vmatpush2.bf16.msra.mxu0 0
        %4203 = vmatprep.subr.bf16.mxu0 0
        %4204 = vmatpush2.bf16.msra.mxu0 0
        %4205 = vmatprep.subr.bf16.mxu0 0
        %4206 = vmatpush2.bf16.msra.mxu0 0
        %4207 = vmatprep.subr.bf16.mxu0 0
        %4208 = vmatpush2.bf16.msra.mxu0 0
        %4209 = vmatprep.subr.bf16.mxu0 0
        %4210 = vmatpush2.bf16.msra.mxu0 0
        %4211 = vmatprep.subr.bf16.mxu0 0
        %4212 = vmatpush2.bf16.msra.mxu0 0
        %4213 = vmatprep.subr.bf16.mxu0 0
        %4214 = vmatpush2.bf16.msra.mxu0 0
        %4215 = vmatprep.subr.bf16.mxu0 0
        %4216 = vmatpush2.bf16.msra.mxu0 0
        %4217 = vmatprep.mubr.bf16.mxu0 0
        %4218 = vmatmul.mubr.bf16.gmra.mxu0 %v4076
        %v4219 = vpop.f32.mrf.mxu0
        %v4220 = vadd.f32 %v4098, %v4219
        %v4221 = vpop.f32.mrf.mxu0
        %v4222 = vadd.f32 %v4102, %v4221
        %v4223 = vpop.f32.mrf.mxu0
        %v4224 = vadd.f32 %v4098, %v4223
        %v4225 = vpop.f32.mrf.mxu0
        %v4226 = vadd.f32 %v4102, %v4225
        %4227 = vdwg.mxu0
        %v4228 = vmax.f32 %v4220, 0.0
        %v4229 = vmax.f32 %v4222, 0.0
        %v4230 = vmax.f32 %v4224, 0.0
        %v4231 = vmax.f32 %v4226, 0.0
        %v4232 = vpack.c.bf16 %v4230, %v4228
        %v4233 = vpack.c.bf16 %v4231, %v4229
        %v4234 = vld [vmem:[%s1186] sm:$0xf]
        %v4235 = vld [vmem:[%s1186 + $0x4] sm:$0xf]
        %v4236 = vld [vmem:[%s1186 + $0x8] sm:$0xf]
        %v4237 = vld [vmem:[%s1186 + $0xc] sm:$0xf]
        %v4238 = vld [vmem:[%s1186 + $0x10] sm:$0xf]
        %v4239 = vld [vmem:[%s1186 + $0x14] sm:$0xf]
        %v4240 = vld [vmem:[%s1186 + $0x18] sm:$0xf]
        %v4241 = vld [vmem:[%s1186 + $0x1c] sm:$0xf]
        %v4242 = vld [vmem:[%s1186 + $0x20] sm:$0xf]
        %v4243 = vld [vmem:[%s1186 + $0x24] sm:$0xf]
        %v4244 = vld [vmem:[%s1186 + $0x28] sm:$0xf]
        %v4245 = vld [vmem:[%s1186 + $0x2c] sm:$0xf]
        %v4246 = vld [vmem:[%s1186 + $0x30] sm:$0xf]
        %v4247 = vld [vmem:[%s1186 + $0x34] sm:$0xf]
        %v4248 = vld [vmem:[%s1186 + $0x38] sm:$0xf]
        %v4249 = vld [vmem:[%s1186 + $0x3c] sm:$0xf]
        %v4250 = vld [vmem:[%s1186 + $0x40] sm:$0xf]
        %v4251 = vld [vmem:[%s1186 + $0x44] sm:$0xf]
        %v4252 = vld [vmem:[%s1186 + $0x48] sm:$0xf]
        %v4253 = vld [vmem:[%s1186 + $0x4c] sm:$0xf]
        %v4254 = vld [vmem:[%s1186 + $0x50] sm:$0xf]
        %v4255 = vld [vmem:[%s1186 + $0x54] sm:$0xf]
        %v4256 = vld [vmem:[%s1186 + $0x58] sm:$0xf]
        %v4257 = vld [vmem:[%s1186 + $0x5c] sm:$0xf]
        %v4258 = vld [vmem:[%s1186 + $0x60] sm:$0xf]
        %v4259 = vld [vmem:[%s1186 + $0x64] sm:$0xf]
        %v4260 = vld [vmem:[%s1186 + $0x68] sm:$0xf]
        %v4261 = vld [vmem:[%s1186 + $0x6c] sm:$0xf]
        %v4262 = vld [vmem:[%s1186 + $0x70] sm:$0xf]
        %v4263 = vld [vmem:[%s1186 + $0x74] sm:$0xf]
        %v4264 = vld [vmem:[%s1186 + $0x78] sm:$0xf]
        %v4265 = vld [vmem:[%s1186 + $0x7c] sm:$0xf]
        %v4266 = vld [vmem:[%s1194] sm:$0x1]
        %v4268 = vlaneseq
        %v4269 = vshrl.u32 %v4268, 7
        %v4270 = vsub.s32 0, %v4269
        %v4271 = vrot.slane %v4266, %v4270
        %v4305 = vunpack.c.l.b16 %v4234
        %v4306 = vunpack.c.l.b16 %v4235
        %v4307 = vunpack.c.l.b16 %v4236
        %v4308 = vunpack.c.l.b16 %v4237
        %v4309 = vunpack.c.l.b16 %v4238
        %v4310 = vunpack.c.l.b16 %v4239
        %v4311 = vunpack.c.l.b16 %v4240
        %v4312 = vunpack.c.l.b16 %v4241
        %v4313 = vunpack.c.l.b16 %v4242
        %v4314 = vunpack.c.l.b16 %v4243
        %v4315 = vunpack.c.l.b16 %v4244
        %v4316 = vunpack.c.l.b16 %v4245
        %v4317 = vunpack.c.l.b16 %v4246
        %v4318 = vunpack.c.l.b16 %v4247
        %v4319 = vunpack.c.l.b16 %v4248
        %v4320 = vunpack.c.l.b16 %v4249
        %v4321 = vunpack.c.l.b16 %v4250
        %v4322 = vunpack.c.l.b16 %v4251
        %v4323 = vunpack.c.l.b16 %v4252
        %v4324 = vunpack.c.l.b16 %v4253
        %v4325 = vunpack.c.l.b16 %v4254
        %v4326 = vunpack.c.l.b16 %v4255
        %v4327 = vunpack.c.l.b16 %v4256
        %v4328 = vunpack.c.l.b16 %v4257
        %v4329 = vunpack.c.l.b16 %v4258
        %v4330 = vunpack.c.l.b16 %v4259
        %v4331 = vunpack.c.l.b16 %v4260
        %v4332 = vunpack.c.l.b16 %v4261
        %v4333 = vunpack.c.l.b16 %v4262
        %v4334 = vunpack.c.l.b16 %v4263
        %v4335 = vunpack.c.l.b16 %v4264
        %v4336 = vunpack.c.l.b16 %v4265
        %v4337 = vpack.c.b16 %v4306, %v4305
        %v4338 = vpack.c.b16 %v4308, %v4307
        %v4339 = vpack.c.b16 %v4310, %v4309
        %v4340 = vpack.c.b16 %v4312, %v4311
        %v4341 = vpack.c.b16 %v4314, %v4313
        %v4342 = vpack.c.b16 %v4316, %v4315
        %v4343 = vpack.c.b16 %v4318, %v4317
        %v4344 = vpack.c.b16 %v4320, %v4319
        %v4345 = vpack.c.b16 %v4322, %v4321
        %v4346 = vpack.c.b16 %v4324, %v4323
        %v4347 = vpack.c.b16 %v4326, %v4325
        %v4348 = vpack.c.b16 %v4328, %v4327
        %v4349 = vpack.c.b16 %v4330, %v4329
        %v4350 = vpack.c.b16 %v4332, %v4331
        %v4351 = vpack.c.b16 %v4334, %v4333
        %v4352 = vpack.c.b16 %v4336, %v4335
        %4369 = vmatprep.subr.bf16.mxu0 0
        %4370 = vmatpush1.bf16.msra.mxu0 %v4344
        %4371 = vmatprep.subr.bf16.mxu0 0
        %4372 = vmatpush1.bf16.msra.mxu0 %v4343
        %4373 = vmatprep.subr.bf16.mxu0 0
        %4374 = vmatpush1.bf16.msra.mxu0 %v4342
        %4375 = vmatprep.subr.bf16.mxu0 0
        %4376 = vmatpush1.bf16.msra.mxu0 %v4341
        %4377 = vmatprep.subr.bf16.mxu0 0
        %4378 = vmatpush1.bf16.msra.mxu0 %v4340
        %4379 = vmatprep.subr.bf16.mxu0 0
        %4380 = vmatpush1.bf16.msra.mxu0 %v4339
        %4381 = vmatprep.subr.bf16.mxu0 0
        %4382 = vmatpush1.bf16.msra.mxu0 %v4338
        %4383 = vmatprep.subr.bf16.mxu0 0
        %4384 = vmatpush1.bf16.msra.mxu0 %v4337
        %4385 = vmatprep.subr.bf16.mxu0 0
        %4386 = vmatpush2.bf16.msra.mxu0 %v4352
        %4387 = vmatprep.subr.bf16.mxu0 0
        %4388 = vmatpush2.bf16.msra.mxu0 %v4351
        %4389 = vmatprep.subr.bf16.mxu0 0
        %4390 = vmatpush2.bf16.msra.mxu0 %v4350
        %4391 = vmatprep.subr.bf16.mxu0 0
        %4392 = vmatpush2.bf16.msra.mxu0 %v4349
        %4393 = vmatprep.subr.bf16.mxu0 0
        %4394 = vmatpush2.bf16.msra.mxu0 %v4348
        %4395 = vmatprep.subr.bf16.mxu0 0
        %4396 = vmatpush2.bf16.msra.mxu0 %v4347
        %4397 = vmatprep.subr.bf16.mxu0 0
        %4398 = vmatpush2.bf16.msra.mxu0 %v4346
        %4399 = vmatprep.subr.bf16.mxu0 0
        %4400 = vmatpush2.bf16.msra.mxu0 %v4345
        %4401 = vmatprep.mubr.bf16.mxu0 %v4233
        %4402 = vmatmul.mubr.bf16.gmra.mxu0 %v4232
        %v4403 = vpop.f32.mrf.mxu0
        %v4404 = vadd.f32 %v4271, %v4403
        %v4405 = vpop.f32.mrf.mxu0
        %v4406 = vpop.f32.mrf.mxu0
        %v4407 = vadd.f32 %v4271, %v4406
        %v4408 = vpop.f32.mrf.mxu0
        %4409 = vdwg.mxu0
        %v4410 = vadd.f32 %v4074, %v4404
        %v4411 = vadd.f32 %v4075, %v4407
        %4412 = vadd.xlane.f32.xlu0 %v4410
        %v4413 = vpop.xlane.xlu0 %4412
        %4414 = vadd.xlane.f32.xlu0 %v4411
        %v4415 = vpop.xlane.xlu0 %4414
        %v4416 = vmul.f32 %v4413, %v2715
        %v4417 = vmul.f32 %v4415, %v2715
        %v4418 = vsub.f32 %v4410, %v4416
        %v4419 = vsub.f32 %v4411, %v4417
        %v4420 = vmul.f32 %v4418, %v4418
        %v4421 = vmul.f32 %v4419, %v4419
        %4422 = vadd.xlane.f32.xlu0 %v4420
        %v4423 = vpop.xlane.xlu0 %4422
        %4424 = vadd.xlane.f32.xlu0 %v4421
        %v4425 = vpop.xlane.xlu0 %4424
        %v4426 = vmul.f32 %v4423, %v2715
        %v4427 = vmul.f32 %v4425, %v2715
        %v4428 = vadd.f32 %v4426, 1e-05
        %v4429 = vadd.f32 %v4427, 1e-05
        %v4430 = vrsqrt.pop %v4428
        %v4431 = vrsqrt.pop %v4429
        %v4432 = vmul.f32 %v4418, %v4430
        %v4433 = vmul.f32 %v4419, %v4431
        %v4434 = vld [vmem:[%s1202] sm:$0x1]
        %v4436 = vlaneseq
        %v4437 = vshrl.u32 %v4436, 7
        %v4438 = vsub.s32 0, %v4437
        %v4439 = vrot.slane %v4434, %v4438
        %v4441 = vmul.f32 %v4432, %v4439
        %v4442 = vmul.f32 %v4433, %v4439
        %v4443 = vld [vmem:[%s1210] sm:$0x1]
        %v4445 = vlaneseq
        %v4446 = vshrl.u32 %v4445, 7
        %v4447 = vsub.s32 0, %v4446
        %v4448 = vrot.slane %v4443, %v4447
        %v4450 = vadd.f32 %v4441, %v4448
        %v4451 = vadd.f32 %v4442, %v4448
        %4452 = vst [vmem:[#allocation2] sm:$0xff] %v4450
        %4453 = vst [vmem:[#allocation2 + $0x8] sm:$0xff] %v4451
        %p4454 = scmp.eq.s32.totalorder %s66, 1
        // Predicated region
        $region189: #{decoder_forward.1} parent=115 // pred_check
          %p4455 = pneg %p4454
        $region190: #{decoder_forward.1} parent=115 // pred_check_branch
          %4457 = sbr.rel (%p4455) target = $region192
        $region191: #{decoder_forward.1} parent=115 // pred_region
          %4458 = vadd.xlane.f32.xlu0 %v4450
          %v4459 = vpop.xlane.xlu0 %4458
          %4460 = vadd.xlane.f32.xlu0 %v4451
          %v4461 = vpop.xlane.xlu0 %4460
          %v4462 = vmul.f32 %v4459, %v2715
          %v4463 = vmul.f32 %v4461, %v2715
          %v4464 = vsub.f32 %v4450, %v4462
          %v4465 = vsub.f32 %v4451, %v4463
          %v4466 = vmul.f32 %v4464, %v4464
          %v4467 = vmul.f32 %v4465, %v4465
          %4468 = vadd.xlane.f32.xlu0 %v4466
          %v4469 = vpop.xlane.xlu0 %4468
          %4470 = vadd.xlane.f32.xlu0 %v4467
          %v4471 = vpop.xlane.xlu0 %4470
          %v4472 = vmul.f32 %v4469, %v2715
          %v4473 = vmul.f32 %v4471, %v2715
          %v4474 = vadd.f32 %v4472, 1e-05
          %v4475 = vadd.f32 %v4473, 1e-05
          %v4476 = vrsqrt.pop %v4474
          %v4477 = vrsqrt.pop %v4475
          %v4478 = vmul.f32 %v4464, %v4476
          %v4479 = vmul.f32 %v4465, %v4477
          %v4480 = vld [vmem:[#allocation27] sm:$0x1]
          %v4482 = vlaneseq
          %v4483 = vshrl.u32 %v4482, 7
          %v4484 = vsub.s32 0, %v4483
          %v4485 = vrot.slane %v4480, %v4484
          %v4487 = vmul.f32 %v4478, %v4485
          %v4488 = vmul.f32 %v4479, %v4485
          %v4489 = vld [vmem:[#allocation29] sm:$0x1]
          %v4491 = vlaneseq
          %v4492 = vshrl.u32 %v4491, 7
          %v4493 = vsub.s32 0, %v4492
          %v4494 = vrot.slane %v4489, %v4493
          %v4496 = vadd.f32 %v4487, %v4494
          %v4497 = vadd.f32 %v4488, %v4494
          %4498 = vst [vmem:[#allocation30] sm:$0xff] %v4496
          %4499 = vst [vmem:[#allocation30 + $0x8] sm:$0xff] %v4497
        $region192: #{decoder_forward.1} parent=115 // pred_fallthru
          _
        // Predicated region
        $region193: #{decoder_forward.1} parent=115 // pred_check
          %p4500 = pneg %p705
        $region194: #{decoder_forward.1} parent=115 // pred_check_branch
          %4502 = sbr.rel (%p4500) target = $region196
        $region195: #{decoder_forward.1} parent=115 // pred_region
          %s4503 = smul.u32 2, %s65
          %s4505 = ssub.s32 256, 256
          %4506 = vsyncadd [#allocation5], %s4505
          %s4507 = smul.addr %s4503, 128
          %s4508 = scalar_lea.hbm %s24, %s4507
          %s4509 = sshll.u32 [#allocation30], 4
          %s4510 = int_to_ptr.vmem [resolvable:$true] %s4509
          %4515 = dma.vmem_to_hbm [thread:$0]  %s4510, 256, %s4508, [#allocation5], 128, 128, 8
        $region196: #{decoder_forward.1} parent=115 // pred_fallthru
          _
        // Predicated region
        $region197: #{decoder_forward.1} parent=115 // pred_check
          %p4516 = pneg %p705
        $region198: #{decoder_forward.1} parent=115 // pred_check_branch
          %4518 = sbr.rel (%p4516) target = $region200
        $region199: #{decoder_forward.1} parent=115 // pred_region
          %4519 = dma.done [#allocation5], 256
        $region200: #{decoder_forward.1} parent=115 // pred_fallthru
          _
      $region116: #{decoder_forward.1} parent=5 // pred_fallthru
        _
      %p4520 = scmp.le.s32.totalorder 2, %s56
      // Predicated region
      $region201: #{decoder_forward.1} parent=5 // pred_check
        %p4521 = pneg %p4520
      $region202: #{decoder_forward.1} parent=5 // pred_check_branch
        %4523 = sbr.rel (%p4521) target = $region204
      $region203: #{decoder_forward.1} parent=5 // pred_region
        %s4524 = ssub.s32 %s56, 2
      $region204: #{decoder_forward.1} parent=5 // pred_fallthru
        _
    $region6: #{decoder_forward.1} parent=1 // loop_footer
      %s60 = sadd.s32 1, %s56
    $region7: #{decoder_forward.1} parent=1 // loop_footer_branch
      %55 = sbr.rel target = $region3
    $region8: #{decoder_forward.1} parent=1 // loop_exit
      _
    %4525 = vsyncpa [#allocation4], 1
    %s4526 = scalar_lea.sflag [#allocation4], 1
    %4527 = vsyncpa %s4526, 1
    %4528 = vsyncpa [#allocation7], 1
    %s4529 = scalar_lea.sflag [#allocation7], 1
    %4530 = vsyncpa %s4529, 1
    %4531 = vsyncpa [#allocation10], 1
    %s4532 = scalar_lea.sflag [#allocation10], 1
    %4533 = vsyncpa %s4532, 1
    %4534 = vsyncpa [#allocation13], 1
    %s4535 = scalar_lea.sflag [#allocation13], 1
    %4536 = vsyncpa %s4535, 1
    %4537 = vsyncpa [#allocation16], 1
    %s4538 = scalar_lea.sflag [#allocation16], 1
    %4539 = vsyncpa %s4538, 1
    %4540 = vsyncpa [#allocation19], 1
    %s4541 = scalar_lea.sflag [#allocation19], 1
    %4542 = vsyncpa %s4541, 1
    %4543 = vsyncpa [#allocation22], 1
    %s4544 = scalar_lea.sflag [#allocation22], 1
    %4545 = vsyncpa %s4544, 1
    %4546 = vsyncpa [#allocation25], 1
    %s4547 = scalar_lea.sflag [#allocation25], 1
    %4548 = vsyncpa %s4547, 1
    %4549 = vsyncpa [#allocation28], 1
    %4550 = vsyncpa [#allocation5], 1
    %s4551 = scalar_lea.sflag [#allocation5], 1
    %4552 = vsyncpa %s4551, 1

</llo_original>
